<compile_context>
chip_gen: v7x
topology: tpu7x:2x2x1
jax: 0.10.0
libtpu: 0.0.40
codegen_flags: <defaults>
</compile_context>

<pallas_src>
import functools

import numpy as np

import jax
import jax.numpy as jnp
from jax import lax
from jax.experimental import pallas as pl
from jax.experimental.pallas import tpu as pltpu


# ----------------------------------------------------------------------------
# Fused 2-layer LSTM + fc kernel (single invocation, everything in VMEM).
# ----------------------------------------------------------------------------
def _lstm_fc_kernel(x_ref, wih0_ref, b0_ref, wbig_ref, b1_ref,
                    fcw_ref, fcb_ref, o_ref, xp_ref, *, T, Bp, H, Cin):
    f32 = jnp.float32
    H3 = 3 * H
    H4 = 4 * H

    # ---- Layer-1 input projection for ALL timesteps, off the serial chain.
    # Cin is tiny, so do it on the VPU (broadcast mult-adds) instead of a
    # nearly-empty K=Cin MXU pass; b0 is folded in here.
    x = x_ref[...]                                       # (T*Bp, Cin)
    w0 = wih0_ref[...]                                   # (Cin, 4H)
    xp = jnp.broadcast_to(b0_ref[...], (T * Bp, H4))
    for c in range(Cin):                                 # static, tiny
        xp = xp + x[:, c:c + 1] * w0[c:c + 1, :]
    xp_ref[...] = xp

    # ---- LSTM cell. Gate columns are pre-permuted to [i | f | o | g] so the
    # three sigmoid gates are one contiguous 3H slab -> one transcendental.
    def cell(gates, c_prev):
        s = jnp.tanh(0.5 * gates[:, 0:H3]) * 0.5 + 0.5   # sigmoid(i, f, o)
        i = s[:, 0:H]
        f = s[:, H:2 * H]
        o = s[:, 2 * H:H3]
        g = jnp.tanh(gates[:, H3:H4])
        c_new = f * c_prev + i * g
        h_new = o * jnp.tanh(c_new)
        return h_new, c_new

    zeros = jnp.zeros((Bp, H), f32)
    b1 = jnp.broadcast_to(b1_ref[...], (Bp, H4))         # hoisted broadcast
    wbig = wbig_ref[...]                                 # (2H, 8H)

    # Step 0, layer 1: h1_{-1} = 0, so the recurrent term vanishes.
    h1, c1 = cell(xp_ref[0:Bp, :], zeros)
    h2, c2 = zeros, zeros

    # ---- Recurrence: ONE (Bp,2H) x (2H,8H) matmul per timestep.
    #   y[:, :4H]  = h1_t @ whh0                     -> layer-1 gates, step t+1
    #   y[:, 4H:]  = h1_t @ wih1 + h2_{t-1} @ whh1   -> layer-2 gates, step t
    # cell2(t) and cell1(t+1) are mutually independent -> schedulable overlap.
    for t in range(T):                                   # static, fully unrolled
        hcat = jnp.concatenate([h1, h2], axis=1)         # (Bp, 2H) = (8, 128)
        y = jnp.dot(hcat, wbig, preferred_element_type=f32)   # (Bp, 8H)
        h2, c2 = cell(y[:, H4:2 * H4] + b1, c2)
        if t + 1 < T:
            g1 = xp_ref[(t + 1) * Bp:(t + 2) * Bp, :] + y[:, 0:H4]
            h1, c1 = cell(g1, c1)

    # ---- fc head on the final top-layer hidden state (lane-padded to 128,
    # so the store is a full (8, 128) unmasked vst).
    o_ref[...] = (jnp.dot(h2, fcw_ref[...], preferred_element_type=f32)
                  + fcb_ref[...]).astype(o_ref.dtype)


def rnn_lstm_forward(params, x):
    """x: (B, T, n_channels), batch_first like the PyTorch module."""
    B, T, Cin = x.shape
    H = params["hidden_size"]
    C = params["fc_w"].shape[0]
    NPAD = 128                                           # lane-dense output
    Bp = max(8, ((B + 7) // 8) * 8)                      # pad batch to f32 sublane tile
    f32 = jnp.float32

    def perm(a, axis=0):
        # PyTorch gate order [i, f, g, o] -> kernel order [i, f, o, g].
        i, f, g, o = jnp.split(a.astype(f32), 4, axis=axis)
        return jnp.concatenate([i, f, o, g], axis=axis)

    # Time-major, batch padded to Bp, flattened: step t = rows [t*Bp,(t+1)*Bp).
    x_t = jnp.transpose(x.astype(f32), (1, 0, 2))                  # (T, B, Cin)
    x_pad = jnp.zeros((T, Bp, Cin), f32).at[:, :B, :].set(x_t)
    x_flat = x_pad.reshape(T * Bp, Cin)

    # Kernel-friendly weight layouts: (in, out), gate-permuted, folded biases.
    wih0 = jnp.transpose(perm(params["w_ih_l0"]))                  # (Cin, 4H)
    b0 = perm(params["b_ih_l0"] + params["b_hh_l0"]).reshape(1, 4 * H)
    whh0_t = jnp.transpose(perm(params["w_hh_l0"]))                # (H, 4H)
    wih1_t = jnp.transpose(perm(params["w_ih_l1"]))                # (H, 4H)
    whh1_t = jnp.transpose(perm(params["w_hh_l1"]))                # (H, 4H)
    b1 = perm(params["b_ih_l1"] + params["b_hh_l1"]).reshape(1, 4 * H)

    # Fused per-step weight (2H, 8H):  [[whh0, wih1], [0, whh1]].
    wbig = jnp.concatenate(
        [jnp.concatenate([whh0_t, wih1_t], axis=1),
         jnp.concatenate([jnp.zeros((H, 4 * H), f32), whh1_t], axis=1)],
        axis=0)                                                    # (2H, 8H)

    fcw = jnp.zeros((H, NPAD), f32).at[:, :C].set(
        jnp.transpose(params["fc_w"].astype(f32)))
    fcb = jnp.zeros((1, NPAD), f32).at[:, :C].set(
        params["fc_b"].astype(f32).reshape(1, C))

    kernel = functools.partial(_lstm_fc_kernel, T=T, Bp=Bp, H=H, Cin=Cin)
    out = pl.pallas_call(
        kernel,
        out_shape=jax.ShapeDtypeStruct((Bp, NPAD), f32),
        in_specs=[pl.BlockSpec(memory_space=pltpu.MemorySpace.VMEM)] * 7,
        out_specs=pl.BlockSpec(memory_space=pltpu.MemorySpace.VMEM),
        scratch_shapes=[pltpu.VMEM((T * Bp, 4 * H), f32)],
    )(x_flat, wih0, b0, wbig, b1, fcw, fcb)
    return out[:B, :C]


# ----------------------------------------------------------------------------
# Parameters (deterministic, synthetic; PyTorch nn.LSTM / nn.Linear layout).
# ----------------------------------------------------------------------------
def init_params(key, n_channels=2, hidden_size=64, num_layers=2, num_classes=3):
    H = hidden_size
    bound = 1.0 / np.sqrt(H)

    def u(k, shape):
        return jax.random.uniform(k, shape, jnp.float32, -bound, bound)

    keys = jax.random.split(key, 4 * num_layers + 2)
    params = {"hidden_size": H}
    idx = 0
    for l in range(num_layers):
        in_dim = n_channels if l == 0 else H
        params[f"w_ih_l{l}"] = u(keys[idx], (4 * H, in_dim)); idx += 1
        params[f"w_hh_l{l}"] = u(keys[idx], (4 * H, H)); idx += 1
        params[f"b_ih_l{l}"] = u(keys[idx], (4 * H,)); idx += 1
        params[f"b_hh_l{l}"] = u(keys[idx], (4 * H,)); idx += 1
    params["fc_w"] = u(keys[idx], (num_classes, H)); idx += 1
    params["fc_b"] = u(keys[idx], (num_classes,))
    return params


# ----------------------------------------------------------------------------
# Pure-JAX reference for validation (PyTorch gate order, high precision).
# ----------------------------------------------------------------------------
def reference_forward(params, x):
    x = x.astype(jnp.float32)
    B, T, _ = x.shape
    H = params["hidden_size"]
    hp = lax.Precision.HIGHEST
    sigmoid = lambda z: 1.0 / (1.0 + jnp.exp(-z))
    h = [jnp.zeros((B, H), jnp.float32) for _ in range(2)]
    c = [jnp.zeros((B, H), jnp.float32) for _ in range(2)]
    for t in range(T):
        inp = x[:, t, :]
        for l in range(2):
            w_ih = params[f"w_ih_l{l}"]
            w_hh = params[f"w_hh_l{l}"]
            b = params[f"b_ih_l{l}"] + params[f"b_hh_l{l}"]
            gates = (jnp.dot(inp, w_ih.T, precision=hp)
                     + jnp.dot(h[l], w_hh.T, precision=hp) + b)
            i_g = sigmoid(gates[:, 0:H])
            f_g = sigmoid(gates[:, H:2 * H])
            g_g = jnp.tanh(gates[:, 2 * H:3 * H])
            o_g = sigmoid(gates[:, 3 * H:4 * H])
            c[l] = f_g * c[l] + i_g * g_g
            h[l] = o_g * jnp.tanh(c[l])
            inp = h[l]
    return jnp.dot(h[1], params["fc_w"].T, precision=hp) + params["fc_b"]


if __name__ == "__main__":
    key = jax.random.PRNGKey(0)
    pkey, xkey = jax.random.split(key)
    params = init_params(pkey)

    B, T, C = 2, 16, 2                      # batch=2, seq=16, n_channels=2
    x = jax.random.normal(xkey, (B, T, C), jnp.float32)

    out = jax.block_until_ready(rnn_lstm_forward(params, x))
    ref = jax.block_until_ready(reference_forward(params, x))

    assert out.shape == (B, 3), out.shape
    np.testing.assert_allclose(np.asarray(out), np.asarray(ref),
                               rtol=2e-3, atol=2e-3)
    print("KERNEL_OK")
</pallas_src>

<mosaic_0001>
module attributes {stable_mosaic.version = 11 : i64} {
  func.func @_lstm_fc_kernel(%arg0: memref<128x2xf32, #tpu.memory_space<vmem>>, %arg1: memref<2x256xf32, #tpu.memory_space<vmem>>, %arg2: memref<1x256xf32, #tpu.memory_space<vmem>>, %arg3: memref<128x512xf32, #tpu.memory_space<vmem>>, %arg4: memref<1x256xf32, #tpu.memory_space<vmem>>, %arg5: memref<64x128xf32, #tpu.memory_space<vmem>>, %arg6: memref<1x128xf32, #tpu.memory_space<vmem>>, %arg7: memref<8x128xf32, #tpu.memory_space<vmem>>, %arg8: memref<128x256xf32, #tpu.memory_space<vmem>>) attributes {dimension_semantics = [], scalar_prefetch = 0 : i64, scratch_operands = 1 : i64, tpu.core_type = #tpu.core_type<tc>} {
    %c0 = arith.constant 0 : index
    %c0_0 = arith.constant 0 : index
    %0 = vector.load %arg0[%c0, %c0_0] : memref<128x2xf32, #tpu.memory_space<vmem>>, vector<128x2xf32>
    %c0_1 = arith.constant 0 : index
    %c0_2 = arith.constant 0 : index
    %1 = vector.load %arg1[%c0_1, %c0_2] : memref<2x256xf32, #tpu.memory_space<vmem>>, vector<2x256xf32>
    %c0_3 = arith.constant 0 : index
    %c0_4 = arith.constant 0 : index
    %2 = vector.load %arg2[%c0_3, %c0_4] : memref<1x256xf32, #tpu.memory_space<vmem>>, vector<1x256xf32>
    %3 = vector.shape_cast %2 : vector<1x256xf32> to vector<1x256xf32>
    %4 = vector.broadcast %3 : vector<1x256xf32> to vector<128x256xf32>
    %5 = vector.extract_strided_slice %0 {offsets = [0, 0], sizes = [128, 1], strides = [1, 1]} : vector<128x2xf32> to vector<128x1xf32>
    %6 = vector.extract_strided_slice %1 {offsets = [0, 0], sizes = [1, 256], strides = [1, 1]} : vector<2x256xf32> to vector<1x256xf32>
    %7 = vector.broadcast %5 : vector<128x1xf32> to vector<128x256xf32>
    %8 = vector.broadcast %6 : vector<1x256xf32> to vector<128x256xf32>
    %9 = arith.mulf %7, %8 : vector<128x256xf32>
    %10 = arith.addf %4, %9 : vector<128x256xf32>
    %11 = vector.extract_strided_slice %0 {offsets = [0, 1], sizes = [128, 1], strides = [1, 1]} : vector<128x2xf32> to vector<128x1xf32>
    %12 = vector.extract_strided_slice %1 {offsets = [1, 0], sizes = [1, 256], strides = [1, 1]} : vector<2x256xf32> to vector<1x256xf32>
    %13 = vector.broadcast %11 : vector<128x1xf32> to vector<128x256xf32>
    %14 = vector.broadcast %12 : vector<1x256xf32> to vector<128x256xf32>
    %15 = arith.mulf %13, %14 : vector<128x256xf32>
    %16 = arith.addf %10, %15 : vector<128x256xf32>
    %c0_5 = arith.constant 0 : index
    %c0_6 = arith.constant 0 : index
    %17 = vector.load %arg8[%c0_5, %c0_6] : memref<128x256xf32, #tpu.memory_space<vmem>>, vector<128x256xf32>
    tpu.vector_store %arg8[%c0_5, %c0_6], %16 {strides = array<i32>} : memref<128x256xf32, #tpu.memory_space<vmem>>, vector<128x256xf32>,
    %cst = arith.constant 0.000000e+00 : f32
    %18 = vector.broadcast %cst : f32 to vector<8x64xf32>
    %c0_7 = arith.constant 0 : index
    %c0_8 = arith.constant 0 : index
    %19 = vector.load %arg4[%c0_7, %c0_8] : memref<1x256xf32, #tpu.memory_space<vmem>>, vector<1x256xf32>
    %20 = vector.shape_cast %19 : vector<1x256xf32> to vector<1x256xf32>
    %21 = vector.broadcast %20 : vector<1x256xf32> to vector<8x256xf32>
    %c0_9 = arith.constant 0 : index
    %c0_10 = arith.constant 0 : index
    %22 = vector.load %arg3[%c0_9, %c0_10] : memref<128x512xf32, #tpu.memory_space<vmem>>, vector<128x512xf32>
    %c0_11 = arith.constant 0 : index
    %c0_12 = arith.constant 0 : index
    %23 = vector.load %arg8[%c0_11, %c0_12] : memref<128x256xf32, #tpu.memory_space<vmem>>, vector<8x256xf32>
    %24 = vector.extract_strided_slice %23 {offsets = [0, 0], sizes = [8, 192], strides = [1, 1]} : vector<8x256xf32> to vector<8x192xf32>
    %cst_13 = arith.constant 5.000000e-01 : f32
    %25 = vector.broadcast %cst_13 : f32 to vector<8x192xf32>
    %26 = arith.mulf %25, %24 : vector<8x192xf32>
    %27 = math.tanh %26 : vector<8x192xf32>
    %cst_14 = arith.constant 5.000000e-01 : f32
    %28 = vector.broadcast %cst_14 : f32 to vector<8x192xf32>
    %29 = arith.mulf %27, %28 : vector<8x192xf32>
    %cst_15 = arith.constant 5.000000e-01 : f32
    %30 = vector.broadcast %cst_15 : f32 to vector<8x192xf32>
    %31 = arith.addf %29, %30 : vector<8x192xf32>
    %32 = vector.extract_strided_slice %31 {offsets = [0, 0], sizes = [8, 64], strides = [1, 1]} : vector<8x192xf32> to vector<8x64xf32>
    %33 = vector.extract_strided_slice %31 {offsets = [0, 64], sizes = [8, 64], strides = [1, 1]} : vector<8x192xf32> to vector<8x64xf32>
    %34 = vector.extract_strided_slice %31 {offsets = [0, 128], sizes = [8, 64], strides = [1, 1]} : vector<8x192xf32> to vector<8x64xf32>
    %35 = vector.extract_strided_slice %23 {offsets = [0, 192], sizes = [8, 64], strides = [1, 1]} : vector<8x256xf32> to vector<8x64xf32>
    %36 = math.tanh %35 : vector<8x64xf32>
    %37 = arith.mulf %33, %18 : vector<8x64xf32>
    %38 = arith.mulf %32, %36 : vector<8x64xf32>
    %39 = arith.addf %37, %38 : vector<8x64xf32>
    %40 = math.tanh %39 : vector<8x64xf32>
    %41 = arith.mulf %34, %40 : vector<8x64xf32>
    %42 = tpu.concatenate %41, %18 in 1 : vector<8x64xf32>, vector<8x64xf32> -> vector<8x128xf32>
    %cst_16 = arith.constant dense<0.000000e+00> : vector<8x512xf32>
    %43 = tpu.matmul %42, %22, %cst_16 {dimension_numbers = #tpu.dot_dimension_numbers<[1], [0], [0], [1], [0, 0, 1, 1], [], []>} : vector<8x128xf32>, vector<128x512xf32>, vector<8x512xf32> -> vector<8x512xf32>
    %44 = vector.extract_strided_slice %43 {offsets = [0, 256], sizes = [8, 256], strides = [1, 1]} : vector<8x512xf32> to vector<8x256xf32>
    %45 = arith.addf %44, %21 : vector<8x256xf32>
    %46 = vector.extract_strided_slice %45 {offsets = [0, 0], sizes = [8, 192], strides = [1, 1]} : vector<8x256xf32> to vector<8x192xf32>
    %cst_17 = arith.constant 5.000000e-01 : f32
    %47 = vector.broadcast %cst_17 : f32 to vector<8x192xf32>
    %48 = arith.mulf %47, %46 : vector<8x192xf32>
    %49 = math.tanh %48 : vector<8x192xf32>
    %cst_18 = arith.constant 5.000000e-01 : f32
    %50 = vector.broadcast %cst_18 : f32 to vector<8x192xf32>
    %51 = arith.mulf %49, %50 : vector<8x192xf32>
    %cst_19 = arith.constant 5.000000e-01 : f32
    %52 = vector.broadcast %cst_19 : f32 to vector<8x192xf32>
    %53 = arith.addf %51, %52 : vector<8x192xf32>
    %54 = vector.extract_strided_slice %53 {offsets = [0, 0], sizes = [8, 64], strides = [1, 1]} : vector<8x192xf32> to vector<8x64xf32>
    %55 = vector.extract_strided_slice %53 {offsets = [0, 64], sizes = [8, 64], strides = [1, 1]} : vector<8x192xf32> to vector<8x64xf32>
    %56 = vector.extract_strided_slice %53 {offsets = [0, 128], sizes = [8, 64], strides = [1, 1]} : vector<8x192xf32> to vector<8x64xf32>
    %57 = vector.extract_strided_slice %45 {offsets = [0, 192], sizes = [8, 64], strides = [1, 1]} : vector<8x256xf32> to vector<8x64xf32>
    %58 = math.tanh %57 : vector<8x64xf32>
    %59 = arith.mulf %55, %18 : vector<8x64xf32>
    %60 = arith.mulf %54, %58 : vector<8x64xf32>
    %61 = arith.addf %59, %60 : vector<8x64xf32>
    %62 = math.tanh %61 : vector<8x64xf32>
    %63 = arith.mulf %56, %62 : vector<8x64xf32>
    %c8 = arith.constant 8 : index
    %c0_20 = arith.constant 0 : index
    %64 = vector.load %arg8[%c8, %c0_20] : memref<128x256xf32, #tpu.memory_space<vmem>>, vector<8x256xf32>
    %65 = vector.extract_strided_slice %43 {offsets = [0, 0], sizes = [8, 256], strides = [1, 1]} : vector<8x512xf32> to vector<8x256xf32>
    %66 = arith.addf %64, %65 : vector<8x256xf32>
    %67 = vector.extract_strided_slice %66 {offsets = [0, 0], sizes = [8, 192], strides = [1, 1]} : vector<8x256xf32> to vector<8x192xf32>
    %cst_21 = arith.constant 5.000000e-01 : f32
    %68 = vector.broadcast %cst_21 : f32 to vector<8x192xf32>
    %69 = arith.mulf %68, %67 : vector<8x192xf32>
    %70 = math.tanh %69 : vector<8x192xf32>
    %cst_22 = arith.constant 5.000000e-01 : f32
    %71 = vector.broadcast %cst_22 : f32 to vector<8x192xf32>
    %72 = arith.mulf %70, %71 : vector<8x192xf32>
    %cst_23 = arith.constant 5.000000e-01 : f32
    %73 = vector.broadcast %cst_23 : f32 to vector<8x192xf32>
    %74 = arith.addf %72, %73 : vector<8x192xf32>
    %75 = vector.extract_strided_slice %74 {offsets = [0, 0], sizes = [8, 64], strides = [1, 1]} : vector<8x192xf32> to vector<8x64xf32>
    %76 = vector.extract_strided_slice %74 {offsets = [0, 64], sizes = [8, 64], strides = [1, 1]} : vector<8x192xf32> to vector<8x64xf32>
    %77 = vector.extract_strided_slice %74 {offsets = [0, 128], sizes = [8, 64], strides = [1, 1]} : vector<8x192xf32> to vector<8x64xf32>
    %78 = vector.extract_strided_slice %66 {offsets = [0, 192], sizes = [8, 64], strides = [1, 1]} : vector<8x256xf32> to vector<8x64xf32>
    %79 = math.tanh %78 : vector<8x64xf32>
    %80 = arith.mulf %76, %39 : vector<8x64xf32>
    %81 = arith.mulf %75, %79 : vector<8x64xf32>
    %82 = arith.addf %80, %81 : vector<8x64xf32>
    %83 = math.tanh %82 : vector<8x64xf32>
    %84 = arith.mulf %77, %83 : vector<8x64xf32>
    %85 = tpu.concatenate %84, %63 in 1 : vector<8x64xf32>, vector<8x64xf32> -> vector<8x128xf32>
    %cst_24 = arith.constant dense<0.000000e+00> : vector<8x512xf32>
    %86 = tpu.matmul %85, %22, %cst_24 {dimension_numbers = #tpu.dot_dimension_numbers<[1], [0], [0], [1], [0, 0, 1, 1], [], []>} : vector<8x128xf32>, vector<128x512xf32>, vector<8x512xf32> -> vector<8x512xf32>
    %87 = vector.extract_strided_slice %86 {offsets = [0, 256], sizes = [8, 256], strides = [1, 1]} : vector<8x512xf32> to vector<8x256xf32>
    %88 = arith.addf %87, %21 : vector<8x256xf32>
    %89 = vector.extract_strided_slice %88 {offsets = [0, 0], sizes = [8, 192], strides = [1, 1]} : vector<8x256xf32> to vector<8x192xf32>
    %cst_25 = arith.constant 5.000000e-01 : f32
    %90 = vector.broadcast %cst_25 : f32 to vector<8x192xf32>
    %91 = arith.mulf %90, %89 : vector<8x192xf32>
    %92 = math.tanh %91 : vector<8x192xf32>
    %cst_26 = arith.constant 5.000000e-01 : f32
    %93 = vector.broadcast %cst_26 : f32 to vector<8x192xf32>
    %94 = arith.mulf %92, %93 : vector<8x192xf32>
    %cst_27 = arith.constant 5.000000e-01 : f32
    %95 = vector.broadcast %cst_27 : f32 to vector<8x192xf32>
    %96 = arith.addf %94, %95 : vector<8x192xf32>
    %97 = vector.extract_strided_slice %96 {offsets = [0, 0], sizes = [8, 64], strides = [1, 1]} : vector<8x192xf32> to vector<8x64xf32>
    %98 = vector.extract_strided_slice %96 {offsets = [0, 64], sizes = [8, 64], strides = [1, 1]} : vector<8x192xf32> to vector<8x64xf32>
    %99 = vector.extract_strided_slice %96 {offsets = [0, 128], sizes = [8, 64], strides = [1, 1]} : vector<8x192xf32> to vector<8x64xf32>
    %100 = vector.extract_strided_slice %88 {offsets = [0, 192], sizes = [8, 64], strides = [1, 1]} : vector<8x256xf32> to vector<8x64xf32>
    %101 = math.tanh %100 : vector<8x64xf32>
    %102 = arith.mulf %98, %61 : vector<8x64xf32>
    %103 = arith.mulf %97, %101 : vector<8x64xf32>
    %104 = arith.addf %102, %103 : vector<8x64xf32>
    %105 = math.tanh %104 : vector<8x64xf32>
    %106 = arith.mulf %99, %105 : vector<8x64xf32>
    %c16 = arith.constant 16 : index
    %c0_28 = arith.constant 0 : index
    %107 = vector.load %arg8[%c16, %c0_28] : memref<128x256xf32, #tpu.memory_space<vmem>>, vector<8x256xf32>
    %108 = vector.extract_strided_slice %86 {offsets = [0, 0], sizes = [8, 256], strides = [1, 1]} : vector<8x512xf32> to vector<8x256xf32>
    %109 = arith.addf %107, %108 : vector<8x256xf32>
    %110 = vector.extract_strided_slice %109 {offsets = [0, 0], sizes = [8, 192], strides = [1, 1]} : vector<8x256xf32> to vector<8x192xf32>
    %cst_29 = arith.constant 5.000000e-01 : f32
    %111 = vector.broadcast %cst_29 : f32 to vector<8x192xf32>
    %112 = arith.mulf %111, %110 : vector<8x192xf32>
    %113 = math.tanh %112 : vector<8x192xf32>
    %cst_30 = arith.constant 5.000000e-01 : f32
    %114 = vector.broadcast %cst_30 : f32 to vector<8x192xf32>
    %115 = arith.mulf %113, %114 : vector<8x192xf32>
    %cst_31 = arith.constant 5.000000e-01 : f32
    %116 = vector.broadcast %cst_31 : f32 to vector<8x192xf32>
    %117 = arith.addf %115, %116 : vector<8x192xf32>
    %118 = vector.extract_strided_slice %117 {offsets = [0, 0], sizes = [8, 64], strides = [1, 1]} : vector<8x192xf32> to vector<8x64xf32>
    %119 = vector.extract_strided_slice %117 {offsets = [0, 64], sizes = [8, 64], strides = [1, 1]} : vector<8x192xf32> to vector<8x64xf32>
    %120 = vector.extract_strided_slice %117 {offsets = [0, 128], sizes = [8, 64], strides = [1, 1]} : vector<8x192xf32> to vector<8x64xf32>
    %121 = vector.extract_strided_slice %109 {offsets = [0, 192], sizes = [8, 64], strides = [1, 1]} : vector<8x256xf32> to vector<8x64xf32>
    %122 = math.tanh %121 : vector<8x64xf32>
    %123 = arith.mulf %119, %82 : vector<8x64xf32>
    %124 = arith.mulf %118, %122 : vector<8x64xf32>
    %125 = arith.addf %123, %124 : vector<8x64xf32>
    %126 = math.tanh %125 : vector<8x64xf32>
    %127 = arith.mulf %120, %126 : vector<8x64xf32>
    %128 = tpu.concatenate %127, %106 in 1 : vector<8x64xf32>, vector<8x64xf32> -> vector<8x128xf32>
    %cst_32 = arith.constant dense<0.000000e+00> : vector<8x512xf32>
    %129 = tpu.matmul %128, %22, %cst_32 {dimension_numbers = #tpu.dot_dimension_numbers<[1], [0], [0], [1], [0, 0, 1, 1], [], []>} : vector<8x128xf32>, vector<128x512xf32>, vector<8x512xf32> -> vector<8x512xf32>
    %130 = vector.extract_strided_slice %129 {offsets = [0, 256], sizes = [8, 256], strides = [1, 1]} : vector<8x512xf32> to vector<8x256xf32>
    %131 = arith.addf %130, %21 : vector<8x256xf32>
    %132 = vector.extract_strided_slice %131 {offsets = [0, 0], sizes = [8, 192], strides = [1, 1]} : vector<8x256xf32> to vector<8x192xf32>
    %cst_33 = arith.constant 5.000000e-01 : f32
    %133 = vector.broadcast %cst_33 : f32 to vector<8x192xf32>
    %134 = arith.mulf %133, %132 : vector<8x192xf32>
    %135 = math.tanh %134 : vector<8x192xf32>
    %cst_34 = arith.constant 5.000000e-01 : f32
    %136 = vector.broadcast %cst_34 : f32 to vector<8x192xf32>
    %137 = arith.mulf %135, %136 : vector<8x192xf32>
    %cst_35 = arith.constant 5.000000e-01 : f32
    %138 = vector.broadcast %cst_35 : f32 to vector<8x192xf32>
    %139 = arith.addf %137, %138 : vector<8x192xf32>
    %140 = vector.extract_strided_slice %139 {offsets = [0, 0], sizes = [8, 64], strides = [1, 1]} : vector<8x192xf32> to vector<8x64xf32>
    %141 = vector.extract_strided_slice %139 {offsets = [0, 64], sizes = [8, 64], strides = [1, 1]} : vector<8x192xf32> to vector<8x64xf32>
    %142 = vector.extract_strided_slice %139 {offsets = [0, 128], sizes = [8, 64], strides = [1, 1]} : vector<8x192xf32> to vector<8x64xf32>
    %143 = vector.extract_strided_slice %131 {offsets = [0, 192], sizes = [8, 64], strides = [1, 1]} : vector<8x256xf32> to vector<8x64xf32>
    %144 = math.tanh %143 : vector<8x64xf32>
    %145 = arith.mulf %141, %104 : vector<8x64xf32>
    %146 = arith.mulf %140, %144 : vector<8x64xf32>
    %147 = arith.addf %145, %146 : vector<8x64xf32>
    %148 = math.tanh %147 : vector<8x64xf32>
    %149 = arith.mulf %142, %148 : vector<8x64xf32>
    %c24 = arith.constant 24 : index
    %c0_36 = arith.constant 0 : index
    %150 = vector.load %arg8[%c24, %c0_36] : memref<128x256xf32, #tpu.memory_space<vmem>>, vector<8x256xf32>
    %151 = vector.extract_strided_slice %129 {offsets = [0, 0], sizes = [8, 256], strides = [1, 1]} : vector<8x512xf32> to vector<8x256xf32>
    %152 = arith.addf %150, %151 : vector<8x256xf32>
    %153 = vector.extract_strided_slice %152 {offsets = [0, 0], sizes = [8, 192], strides = [1, 1]} : vector<8x256xf32> to vector<8x192xf32>
    %cst_37 = arith.constant 5.000000e-01 : f32
    %154 = vector.broadcast %cst_37 : f32 to vector<8x192xf32>
    %155 = arith.mulf %154, %153 : vector<8x192xf32>
    %156 = math.tanh %155 : vector<8x192xf32>
    %cst_38 = arith.constant 5.000000e-01 : f32
    %157 = vector.broadcast %cst_38 : f32 to vector<8x192xf32>
    %158 = arith.mulf %156, %157 : vector<8x192xf32>
    %cst_39 = arith.constant 5.000000e-01 : f32
    %159 = vector.broadcast %cst_39 : f32 to vector<8x192xf32>
    %160 = arith.addf %158, %159 : vector<8x192xf32>
    %161 = vector.extract_strided_slice %160 {offsets = [0, 0], sizes = [8, 64], strides = [1, 1]} : vector<8x192xf32> to vector<8x64xf32>
    %162 = vector.extract_strided_slice %160 {offsets = [0, 64], sizes = [8, 64], strides = [1, 1]} : vector<8x192xf32> to vector<8x64xf32>
    %163 = vector.extract_strided_slice %160 {offsets = [0, 128], sizes = [8, 64], strides = [1, 1]} : vector<8x192xf32> to vector<8x64xf32>
    %164 = vector.extract_strided_slice %152 {offsets = [0, 192], sizes = [8, 64], strides = [1, 1]} : vector<8x256xf32> to vector<8x64xf32>
    %165 = math.tanh %164 : vector<8x64xf32>
    %166 = arith.mulf %162, %125 : vector<8x64xf32>
    %167 = arith.mulf %161, %165 : vector<8x64xf32>
    %168 = arith.addf %166, %167 : vector<8x64xf32>
    %169 = math.tanh %168 : vector<8x64xf32>
    %170 = arith.mulf %163, %169 : vector<8x64xf32>
    %171 = tpu.concatenate %170, %149 in 1 : vector<8x64xf32>, vector<8x64xf32> -> vector<8x128xf32>
    %cst_40 = arith.constant dense<0.000000e+00> : vector<8x512xf32>
    %172 = tpu.matmul %171, %22, %cst_40 {dimension_numbers = #tpu.dot_dimension_numbers<[1], [0], [0], [1], [0, 0, 1, 1], [], []>} : vector<8x128xf32>, vector<128x512xf32>, vector<8x512xf32> -> vector<8x512xf32>
    %173 = vector.extract_strided_slice %172 {offsets = [0, 256], sizes = [8, 256], strides = [1, 1]} : vector<8x512xf32> to vector<8x256xf32>
    %174 = arith.addf %173, %21 : vector<8x256xf32>
    %175 = vector.extract_strided_slice %174 {offsets = [0, 0], sizes = [8, 192], strides = [1, 1]} : vector<8x256xf32> to vector<8x192xf32>
    %cst_41 = arith.constant 5.000000e-01 : f32
    %176 = vector.broadcast %cst_41 : f32 to vector<8x192xf32>
    %177 = arith.mulf %176, %175 : vector<8x192xf32>
    %178 = math.tanh %177 : vector<8x192xf32>
    %cst_42 = arith.constant 5.000000e-01 : f32
    %179 = vector.broadcast %cst_42 : f32 to vector<8x192xf32>
    %180 = arith.mulf %178, %179 : vector<8x192xf32>
    %cst_43 = arith.constant 5.000000e-01 : f32
    %181 = vector.broadcast %cst_43 : f32 to vector<8x192xf32>
    %182 = arith.addf %180, %181 : vector<8x192xf32>
    %183 = vector.extract_strided_slice %182 {offsets = [0, 0], sizes = [8, 64], strides = [1, 1]} : vector<8x192xf32> to vector<8x64xf32>
    %184 = vector.extract_strided_slice %182 {offsets = [0, 64], sizes = [8, 64], strides = [1, 1]} : vector<8x192xf32> to vector<8x64xf32>
    %185 = vector.extract_strided_slice %182 {offsets = [0, 128], sizes = [8, 64], strides = [1, 1]} : vector<8x192xf32> to vector<8x64xf32>
    %186 = vector.extract_strided_slice %174 {offsets = [0, 192], sizes = [8, 64], strides = [1, 1]} : vector<8x256xf32> to vector<8x64xf32>
    %187 = math.tanh %186 : vector<8x64xf32>
    %188 = arith.mulf %184, %147 : vector<8x64xf32>
    %189 = arith.mulf %183, %187 : vector<8x64xf32>
    %190 = arith.addf %188, %189 : vector<8x64xf32>
    %191 = math.tanh %190 : vector<8x64xf32>
    %192 = arith.mulf %185, %191 : vector<8x64xf32>
    %c32 = arith.constant 32 : index
    %c0_44 = arith.constant 0 : index
    %193 = vector.load %arg8[%c32, %c0_44] : memref<128x256xf32, #tpu.memory_space<vmem>>, vector<8x256xf32>
    %194 = vector.extract_strided_slice %172 {offsets = [0, 0], sizes = [8, 256], strides = [1, 1]} : vector<8x512xf32> to vector<8x256xf32>
    %195 = arith.addf %193, %194 : vector<8x256xf32>
    %196 = vector.extract_strided_slice %195 {offsets = [0, 0], sizes = [8, 192], strides = [1, 1]} : vector<8x256xf32> to vector<8x192xf32>
    %cst_45 = arith.constant 5.000000e-01 : f32
    %197 = vector.broadcast %cst_45 : f32 to vector<8x192xf32>
    %198 = arith.mulf %197, %196 : vector<8x192xf32>
    %199 = math.tanh %198 : vector<8x192xf32>
    %cst_46 = arith.constant 5.000000e-01 : f32
    %200 = vector.broadcast %cst_46 : f32 to vector<8x192xf32>
    %201 = arith.mulf %199, %200 : vector<8x192xf32>
    %cst_47 = arith.constant 5.000000e-01 : f32
    %202 = vector.broadcast %cst_47 : f32 to vector<8x192xf32>
    %203 = arith.addf %201, %202 : vector<8x192xf32>
    %204 = vector.extract_strided_slice %203 {offsets = [0, 0], sizes = [8, 64], strides = [1, 1]} : vector<8x192xf32> to vector<8x64xf32>
    %205 = vector.extract_strided_slice %203 {offsets = [0, 64], sizes = [8, 64], strides = [1, 1]} : vector<8x192xf32> to vector<8x64xf32>
    %206 = vector.extract_strided_slice %203 {offsets = [0, 128], sizes = [8, 64], strides = [1, 1]} : vector<8x192xf32> to vector<8x64xf32>
    %207 = vector.extract_strided_slice %195 {offsets = [0, 192], sizes = [8, 64], strides = [1, 1]} : vector<8x256xf32> to vector<8x64xf32>
    %208 = math.tanh %207 : vector<8x64xf32>
    %209 = arith.mulf %205, %168 : vector<8x64xf32>
    %210 = arith.mulf %204, %208 : vector<8x64xf32>
    %211 = arith.addf %209, %210 : vector<8x64xf32>
    %212 = math.tanh %211 : vector<8x64xf32>
    %213 = arith.mulf %206, %212 : vector<8x64xf32>
    %214 = tpu.concatenate %213, %192 in 1 : vector<8x64xf32>, vector<8x64xf32> -> vector<8x128xf32>
    %cst_48 = arith.constant dense<0.000000e+00> : vector<8x512xf32>
    %215 = tpu.matmul %214, %22, %cst_48 {dimension_numbers = #tpu.dot_dimension_numbers<[1], [0], [0], [1], [0, 0, 1, 1], [], []>} : vector<8x128xf32>, vector<128x512xf32>, vector<8x512xf32> -> vector<8x512xf32>
    %216 = vector.extract_strided_slice %215 {offsets = [0, 256], sizes = [8, 256], strides = [1, 1]} : vector<8x512xf32> to vector<8x256xf32>
    %217 = arith.addf %216, %21 : vector<8x256xf32>
    %218 = vector.extract_strided_slice %217 {offsets = [0, 0], sizes = [8, 192], strides = [1, 1]} : vector<8x256xf32> to vector<8x192xf32>
    %cst_49 = arith.constant 5.000000e-01 : f32
    %219 = vector.broadcast %cst_49 : f32 to vector<8x192xf32>
    %220 = arith.mulf %219, %218 : vector<8x192xf32>
    %221 = math.tanh %220 : vector<8x192xf32>
    %cst_50 = arith.constant 5.000000e-01 : f32
    %222 = vector.broadcast %cst_50 : f32 to vector<8x192xf32>
    %223 = arith.mulf %221, %222 : vector<8x192xf32>
    %cst_51 = arith.constant 5.000000e-01 : f32
    %224 = vector.broadcast %cst_51 : f32 to vector<8x192xf32>
    %225 = arith.addf %223, %224 : vector<8x192xf32>
    %226 = vector.extract_strided_slice %225 {offsets = [0, 0], sizes = [8, 64], strides = [1, 1]} : vector<8x192xf32> to vector<8x64xf32>
    %227 = vector.extract_strided_slice %225 {offsets = [0, 64], sizes = [8, 64], strides = [1, 1]} : vector<8x192xf32> to vector<8x64xf32>
    %228 = vector.extract_strided_slice %225 {offsets = [0, 128], sizes = [8, 64], strides = [1, 1]} : vector<8x192xf32> to vector<8x64xf32>
    %229 = vector.extract_strided_slice %217 {offsets = [0, 192], sizes = [8, 64], strides = [1, 1]} : vector<8x256xf32> to vector<8x64xf32>
    %230 = math.tanh %229 : vector<8x64xf32>
    %231 = arith.mulf %227, %190 : vector<8x64xf32>
    %232 = arith.mulf %226, %230 : vector<8x64xf32>
    %233 = arith.addf %231, %232 : vector<8x64xf32>
    %234 = math.tanh %233 : vector<8x64xf32>
    %235 = arith.mulf %228, %234 : vector<8x64xf32>
    %c40 = arith.constant 40 : index
    %c0_52 = arith.constant 0 : index
    %236 = vector.load %arg8[%c40, %c0_52] : memref<128x256xf32, #tpu.memory_space<vmem>>, vector<8x256xf32>
    %237 = vector.extract_strided_slice %215 {offsets = [0, 0], sizes = [8, 256], strides = [1, 1]} : vector<8x512xf32> to vector<8x256xf32>
    %238 = arith.addf %236, %237 : vector<8x256xf32>
    %239 = vector.extract_strided_slice %238 {offsets = [0, 0], sizes = [8, 192], strides = [1, 1]} : vector<8x256xf32> to vector<8x192xf32>
    %cst_53 = arith.constant 5.000000e-01 : f32
    %240 = vector.broadcast %cst_53 : f32 to vector<8x192xf32>
    %241 = arith.mulf %240, %239 : vector<8x192xf32>
    %242 = math.tanh %241 : vector<8x192xf32>
    %cst_54 = arith.constant 5.000000e-01 : f32
    %243 = vector.broadcast %cst_54 : f32 to vector<8x192xf32>
    %244 = arith.mulf %242, %243 : vector<8x192xf32>
    %cst_55 = arith.constant 5.000000e-01 : f32
    %245 = vector.broadcast %cst_55 : f32 to vector<8x192xf32>
    %246 = arith.addf %244, %245 : vector<8x192xf32>
    %247 = vector.extract_strided_slice %246 {offsets = [0, 0], sizes = [8, 64], strides = [1, 1]} : vector<8x192xf32> to vector<8x64xf32>
    %248 = vector.extract_strided_slice %246 {offsets = [0, 64], sizes = [8, 64], strides = [1, 1]} : vector<8x192xf32> to vector<8x64xf32>
    %249 = vector.extract_strided_slice %246 {offsets = [0, 128], sizes = [8, 64], strides = [1, 1]} : vector<8x192xf32> to vector<8x64xf32>
    %250 = vector.extract_strided_slice %238 {offsets = [0, 192], sizes = [8, 64], strides = [1, 1]} : vector<8x256xf32> to vector<8x64xf32>
    %251 = math.tanh %250 : vector<8x64xf32>
    %252 = arith.mulf %248, %211 : vector<8x64xf32>
    %253 = arith.mulf %247, %251 : vector<8x64xf32>
    %254 = arith.addf %252, %253 : vector<8x64xf32>
    %255 = math.tanh %254 : vector<8x64xf32>
    %256 = arith.mulf %249, %255 : vector<8x64xf32>
    %257 = tpu.concatenate %256, %235 in 1 : vector<8x64xf32>, vector<8x64xf32> -> vector<8x128xf32>
    %cst_56 = arith.constant dense<0.000000e+00> : vector<8x512xf32>
    %258 = tpu.matmul %257, %22, %cst_56 {dimension_numbers = #tpu.dot_dimension_numbers<[1], [0], [0], [1], [0, 0, 1, 1], [], []>} : vector<8x128xf32>, vector<128x512xf32>, vector<8x512xf32> -> vector<8x512xf32>
    %259 = vector.extract_strided_slice %258 {offsets = [0, 256], sizes = [8, 256], strides = [1, 1]} : vector<8x512xf32> to vector<8x256xf32>
    %260 = arith.addf %259, %21 : vector<8x256xf32>
    %261 = vector.extract_strided_slice %260 {offsets = [0, 0], sizes = [8, 192], strides = [1, 1]} : vector<8x256xf32> to vector<8x192xf32>
    %cst_57 = arith.constant 5.000000e-01 : f32
    %262 = vector.broadcast %cst_57 : f32 to vector<8x192xf32>
    %263 = arith.mulf %262, %261 : vector<8x192xf32>
    %264 = math.tanh %263 : vector<8x192xf32>
    %cst_58 = arith.constant 5.000000e-01 : f32
    %265 = vector.broadcast %cst_58 : f32 to vector<8x192xf32>
    %266 = arith.mulf %264, %265 : vector<8x192xf32>
    %cst_59 = arith.constant 5.000000e-01 : f32
    %267 = vector.broadcast %cst_59 : f32 to vector<8x192xf32>
    %268 = arith.addf %266, %267 : vector<8x192xf32>
    %269 = vector.extract_strided_slice %268 {offsets = [0, 0], sizes = [8, 64], strides = [1, 1]} : vector<8x192xf32> to vector<8x64xf32>
    %270 = vector.extract_strided_slice %268 {offsets = [0, 64], sizes = [8, 64], strides = [1, 1]} : vector<8x192xf32> to vector<8x64xf32>
    %271 = vector.extract_strided_slice %268 {offsets = [0, 128], sizes = [8, 64], strides = [1, 1]} : vector<8x192xf32> to vector<8x64xf32>
    %272 = vector.extract_strided_slice %260 {offsets = [0, 192], sizes = [8, 64], strides = [1, 1]} : vector<8x256xf32> to vector<8x64xf32>
    %273 = math.tanh %272 : vector<8x64xf32>
    %274 = arith.mulf %270, %233 : vector<8x64xf32>
    %275 = arith.mulf %269, %273 : vector<8x64xf32>
    %276 = arith.addf %274, %275 : vector<8x64xf32>
    %277 = math.tanh %276 : vector<8x64xf32>
    %278 = arith.mulf %271, %277 : vector<8x64xf32>
    %c48 = arith.constant 48 : index
    %c0_60 = arith.constant 0 : index
    %279 = vector.load %arg8[%c48, %c0_60] : memref<128x256xf32, #tpu.memory_space<vmem>>, vector<8x256xf32>
    %280 = vector.extract_strided_slice %258 {offsets = [0, 0], sizes = [8, 256], strides = [1, 1]} : vector<8x512xf32> to vector<8x256xf32>
    %281 = arith.addf %279, %280 : vector<8x256xf32>
    %282 = vector.extract_strided_slice %281 {offsets = [0, 0], sizes = [8, 192], strides = [1, 1]} : vector<8x256xf32> to vector<8x192xf32>
    %cst_61 = arith.constant 5.000000e-01 : f32
    %283 = vector.broadcast %cst_61 : f32 to vector<8x192xf32>
    %284 = arith.mulf %283, %282 : vector<8x192xf32>
    %285 = math.tanh %284 : vector<8x192xf32>
    %cst_62 = arith.constant 5.000000e-01 : f32
    %286 = vector.broadcast %cst_62 : f32 to vector<8x192xf32>
    %287 = arith.mulf %285, %286 : vector<8x192xf32>
    %cst_63 = arith.constant 5.000000e-01 : f32
    %288 = vector.broadcast %cst_63 : f32 to vector<8x192xf32>
    %289 = arith.addf %287, %288 : vector<8x192xf32>
    %290 = vector.extract_strided_slice %289 {offsets = [0, 0], sizes = [8, 64], strides = [1, 1]} : vector<8x192xf32> to vector<8x64xf32>
    %291 = vector.extract_strided_slice %289 {offsets = [0, 64], sizes = [8, 64], strides = [1, 1]} : vector<8x192xf32> to vector<8x64xf32>
    %292 = vector.extract_strided_slice %289 {offsets = [0, 128], sizes = [8, 64], strides = [1, 1]} : vector<8x192xf32> to vector<8x64xf32>
    %293 = vector.extract_strided_slice %281 {offsets = [0, 192], sizes = [8, 64], strides = [1, 1]} : vector<8x256xf32> to vector<8x64xf32>
    %294 = math.tanh %293 : vector<8x64xf32>
    %295 = arith.mulf %291, %254 : vector<8x64xf32>
    %296 = arith.mulf %290, %294 : vector<8x64xf32>
    %297 = arith.addf %295, %296 : vector<8x64xf32>
    %298 = math.tanh %297 : vector<8x64xf32>
    %299 = arith.mulf %292, %298 : vector<8x64xf32>
    %300 = tpu.concatenate %299, %278 in 1 : vector<8x64xf32>, vector<8x64xf32> -> vector<8x128xf32>
    %cst_64 = arith.constant dense<0.000000e+00> : vector<8x512xf32>
    %301 = tpu.matmul %300, %22, %cst_64 {dimension_numbers = #tpu.dot_dimension_numbers<[1], [0], [0], [1], [0, 0, 1, 1], [], []>} : vector<8x128xf32>, vector<128x512xf32>, vector<8x512xf32> -> vector<8x512xf32>
    %302 = vector.extract_strided_slice %301 {offsets = [0, 256], sizes = [8, 256], strides = [1, 1]} : vector<8x512xf32> to vector<8x256xf32>
    %303 = arith.addf %302, %21 : vector<8x256xf32>
    %304 = vector.extract_strided_slice %303 {offsets = [0, 0], sizes = [8, 192], strides = [1, 1]} : vector<8x256xf32> to vector<8x192xf32>
    %cst_65 = arith.constant 5.000000e-01 : f32
    %305 = vector.broadcast %cst_65 : f32 to vector<8x192xf32>
    %306 = arith.mulf %305, %304 : vector<8x192xf32>
    %307 = math.tanh %306 : vector<8x192xf32>
    %cst_66 = arith.constant 5.000000e-01 : f32
    %308 = vector.broadcast %cst_66 : f32 to vector<8x192xf32>
    %309 = arith.mulf %307, %308 : vector<8x192xf32>
    %cst_67 = arith.constant 5.000000e-01 : f32
    %310 = vector.broadcast %cst_67 : f32 to vector<8x192xf32>
    %311 = arith.addf %309, %310 : vector<8x192xf32>
    %312 = vector.extract_strided_slice %311 {offsets = [0, 0], sizes = [8, 64], strides = [1, 1]} : vector<8x192xf32> to vector<8x64xf32>
    %313 = vector.extract_strided_slice %311 {offsets = [0, 64], sizes = [8, 64], strides = [1, 1]} : vector<8x192xf32> to vector<8x64xf32>
    %314 = vector.extract_strided_slice %311 {offsets = [0, 128], sizes = [8, 64], strides = [1, 1]} : vector<8x192xf32> to vector<8x64xf32>
    %315 = vector.extract_strided_slice %303 {offsets = [0, 192], sizes = [8, 64], strides = [1, 1]} : vector<8x256xf32> to vector<8x64xf32>
    %316 = math.tanh %315 : vector<8x64xf32>
    %317 = arith.mulf %313, %276 : vector<8x64xf32>
    %318 = arith.mulf %312, %316 : vector<8x64xf32>
    %319 = arith.addf %317, %318 : vector<8x64xf32>
    %320 = math.tanh %319 : vector<8x64xf32>
    %321 = arith.mulf %314, %320 : vector<8x64xf32>
    %c56 = arith.constant 56 : index
    %c0_68 = arith.constant 0 : index
    %322 = vector.load %arg8[%c56, %c0_68] : memref<128x256xf32, #tpu.memory_space<vmem>>, vector<8x256xf32>
    %323 = vector.extract_strided_slice %301 {offsets = [0, 0], sizes = [8, 256], strides = [1, 1]} : vector<8x512xf32> to vector<8x256xf32>
    %324 = arith.addf %322, %323 : vector<8x256xf32>
    %325 = vector.extract_strided_slice %324 {offsets = [0, 0], sizes = [8, 192], strides = [1, 1]} : vector<8x256xf32> to vector<8x192xf32>
    %cst_69 = arith.constant 5.000000e-01 : f32
    %326 = vector.broadcast %cst_69 : f32 to vector<8x192xf32>
    %327 = arith.mulf %326, %325 : vector<8x192xf32>
    %328 = math.tanh %327 : vector<8x192xf32>
    %cst_70 = arith.constant 5.000000e-01 : f32
    %329 = vector.broadcast %cst_70 : f32 to vector<8x192xf32>
    %330 = arith.mulf %328, %329 : vector<8x192xf32>
    %cst_71 = arith.constant 5.000000e-01 : f32
    %331 = vector.broadcast %cst_71 : f32 to vector<8x192xf32>
    %332 = arith.addf %330, %331 : vector<8x192xf32>
    %333 = vector.extract_strided_slice %332 {offsets = [0, 0], sizes = [8, 64], strides = [1, 1]} : vector<8x192xf32> to vector<8x64xf32>
    %334 = vector.extract_strided_slice %332 {offsets = [0, 64], sizes = [8, 64], strides = [1, 1]} : vector<8x192xf32> to vector<8x64xf32>
    %335 = vector.extract_strided_slice %332 {offsets = [0, 128], sizes = [8, 64], strides = [1, 1]} : vector<8x192xf32> to vector<8x64xf32>
    %336 = vector.extract_strided_slice %324 {offsets = [0, 192], sizes = [8, 64], strides = [1, 1]} : vector<8x256xf32> to vector<8x64xf32>
    %337 = math.tanh %336 : vector<8x64xf32>
    %338 = arith.mulf %334, %297 : vector<8x64xf32>
    %339 = arith.mulf %333, %337 : vector<8x64xf32>
    %340 = arith.addf %338, %339 : vector<8x64xf32>
    %341 = math.tanh %340 : vector<8x64xf32>
    %342 = arith.mulf %335, %341 : vector<8x64xf32>
    %343 = tpu.concatenate %342, %321 in 1 : vector<8x64xf32>, vector<8x64xf32> -> vector<8x128xf32>
    %cst_72 = arith.constant dense<0.000000e+00> : vector<8x512xf32>
    %344 = tpu.matmul %343, %22, %cst_72 {dimension_numbers = #tpu.dot_dimension_numbers<[1], [0], [0], [1], [0, 0, 1, 1], [], []>} : vector<8x128xf32>, vector<128x512xf32>, vector<8x512xf32> -> vector<8x512xf32>
    %345 = vector.extract_strided_slice %344 {offsets = [0, 256], sizes = [8, 256], strides = [1, 1]} : vector<8x512xf32> to vector<8x256xf32>
    %346 = arith.addf %345, %21 : vector<8x256xf32>
    %347 = vector.extract_strided_slice %346 {offsets = [0, 0], sizes = [8, 192], strides = [1, 1]} : vector<8x256xf32> to vector<8x192xf32>
    %cst_73 = arith.constant 5.000000e-01 : f32
    %348 = vector.broadcast %cst_73 : f32 to vector<8x192xf32>
    %349 = arith.mulf %348, %347 : vector<8x192xf32>
    %350 = math.tanh %349 : vector<8x192xf32>
    %cst_74 = arith.constant 5.000000e-01 : f32
    %351 = vector.broadcast %cst_74 : f32 to vector<8x192xf32>
    %352 = arith.mulf %350, %351 : vector<8x192xf32>
    %cst_75 = arith.constant 5.000000e-01 : f32
    %353 = vector.broadcast %cst_75 : f32 to vector<8x192xf32>
    %354 = arith.addf %352, %353 : vector<8x192xf32>
    %355 = vector.extract_strided_slice %354 {offsets = [0, 0], sizes = [8, 64], strides = [1, 1]} : vector<8x192xf32> to vector<8x64xf32>
    %356 = vector.extract_strided_slice %354 {offsets = [0, 64], sizes = [8, 64], strides = [1, 1]} : vector<8x192xf32> to vector<8x64xf32>
    %357 = vector.extract_strided_slice %354 {offsets = [0, 128], sizes = [8, 64], strides = [1, 1]} : vector<8x192xf32> to vector<8x64xf32>
    %358 = vector.extract_strided_slice %346 {offsets = [0, 192], sizes = [8, 64], strides = [1, 1]} : vector<8x256xf32> to vector<8x64xf32>
    %359 = math.tanh %358 : vector<8x64xf32>
    %360 = arith.mulf %356, %319 : vector<8x64xf32>
    %361 = arith.mulf %355, %359 : vector<8x64xf32>
    %362 = arith.addf %360, %361 : vector<8x64xf32>
    %363 = math.tanh %362 : vector<8x64xf32>
    %364 = arith.mulf %357, %363 : vector<8x64xf32>
    %c64 = arith.constant 64 : index
    %c0_76 = arith.constant 0 : index
    %365 = vector.load %arg8[%c64, %c0_76] : memref<128x256xf32, #tpu.memory_space<vmem>>, vector<8x256xf32>
    %366 = vector.extract_strided_slice %344 {offsets = [0, 0], sizes = [8, 256], strides = [1, 1]} : vector<8x512xf32> to vector<8x256xf32>
    %367 = arith.addf %365, %366 : vector<8x256xf32>
    %368 = vector.extract_strided_slice %367 {offsets = [0, 0], sizes = [8, 192], strides = [1, 1]} : vector<8x256xf32> to vector<8x192xf32>
    %cst_77 = arith.constant 5.000000e-01 : f32
    %369 = vector.broadcast %cst_77 : f32 to vector<8x192xf32>
    %370 = arith.mulf %369, %368 : vector<8x192xf32>
    %371 = math.tanh %370 : vector<8x192xf32>
    %cst_78 = arith.constant 5.000000e-01 : f32
    %372 = vector.broadcast %cst_78 : f32 to vector<8x192xf32>
    %373 = arith.mulf %371, %372 : vector<8x192xf32>
    %cst_79 = arith.constant 5.000000e-01 : f32
    %374 = vector.broadcast %cst_79 : f32 to vector<8x192xf32>
    %375 = arith.addf %373, %374 : vector<8x192xf32>
    %376 = vector.extract_strided_slice %375 {offsets = [0, 0], sizes = [8, 64], strides = [1, 1]} : vector<8x192xf32> to vector<8x64xf32>
    %377 = vector.extract_strided_slice %375 {offsets = [0, 64], sizes = [8, 64], strides = [1, 1]} : vector<8x192xf32> to vector<8x64xf32>
    %378 = vector.extract_strided_slice %375 {offsets = [0, 128], sizes = [8, 64], strides = [1, 1]} : vector<8x192xf32> to vector<8x64xf32>
    %379 = vector.extract_strided_slice %367 {offsets = [0, 192], sizes = [8, 64], strides = [1, 1]} : vector<8x256xf32> to vector<8x64xf32>
    %380 = math.tanh %379 : vector<8x64xf32>
    %381 = arith.mulf %377, %340 : vector<8x64xf32>
    %382 = arith.mulf %376, %380 : vector<8x64xf32>
    %383 = arith.addf %381, %382 : vector<8x64xf32>
    %384 = math.tanh %383 : vector<8x64xf32>
    %385 = arith.mulf %378, %384 : vector<8x64xf32>
    %386 = tpu.concatenate %385, %364 in 1 : vector<8x64xf32>, vector<8x64xf32> -> vector<8x128xf32>
    %cst_80 = arith.constant dense<0.000000e+00> : vector<8x512xf32>
    %387 = tpu.matmul %386, %22, %cst_80 {dimension_numbers = #tpu.dot_dimension_numbers<[1], [0], [0], [1], [0, 0, 1, 1], [], []>} : vector<8x128xf32>, vector<128x512xf32>, vector<8x512xf32> -> vector<8x512xf32>
    %388 = vector.extract_strided_slice %387 {offsets = [0, 256], sizes = [8, 256], strides = [1, 1]} : vector<8x512xf32> to vector<8x256xf32>
    %389 = arith.addf %388, %21 : vector<8x256xf32>
    %390 = vector.extract_strided_slice %389 {offsets = [0, 0], sizes = [8, 192], strides = [1, 1]} : vector<8x256xf32> to vector<8x192xf32>
    %cst_81 = arith.constant 5.000000e-01 : f32
    %391 = vector.broadcast %cst_81 : f32 to vector<8x192xf32>
    %392 = arith.mulf %391, %390 : vector<8x192xf32>
    %393 = math.tanh %392 : vector<8x192xf32>
    %cst_82 = arith.constant 5.000000e-01 : f32
    %394 = vector.broadcast %cst_82 : f32 to vector<8x192xf32>
    %395 = arith.mulf %393, %394 : vector<8x192xf32>
    %cst_83 = arith.constant 5.000000e-01 : f32
    %396 = vector.broadcast %cst_83 : f32 to vector<8x192xf32>
    %397 = arith.addf %395, %396 : vector<8x192xf32>
    %398 = vector.extract_strided_slice %397 {offsets = [0, 0], sizes = [8, 64], strides = [1, 1]} : vector<8x192xf32> to vector<8x64xf32>
    %399 = vector.extract_strided_slice %397 {offsets = [0, 64], sizes = [8, 64], strides = [1, 1]} : vector<8x192xf32> to vector<8x64xf32>
    %400 = vector.extract_strided_slice %397 {offsets = [0, 128], sizes = [8, 64], strides = [1, 1]} : vector<8x192xf32> to vector<8x64xf32>
    %401 = vector.extract_strided_slice %389 {offsets = [0, 192], sizes = [8, 64], strides = [1, 1]} : vector<8x256xf32> to vector<8x64xf32>
    %402 = math.tanh %401 : vector<8x64xf32>
    %403 = arith.mulf %399, %362 : vector<8x64xf32>
    %404 = arith.mulf %398, %402 : vector<8x64xf32>
    %405 = arith.addf %403, %404 : vector<8x64xf32>
    %406 = math.tanh %405 : vector<8x64xf32>
    %407 = arith.mulf %400, %406 : vector<8x64xf32>
    %c72 = arith.constant 72 : index
    %c0_84 = arith.constant 0 : index
    %408 = vector.load %arg8[%c72, %c0_84] : memref<128x256xf32, #tpu.memory_space<vmem>>, vector<8x256xf32>
    %409 = vector.extract_strided_slice %387 {offsets = [0, 0], sizes = [8, 256], strides = [1, 1]} : vector<8x512xf32> to vector<8x256xf32>
    %410 = arith.addf %408, %409 : vector<8x256xf32>
    %411 = vector.extract_strided_slice %410 {offsets = [0, 0], sizes = [8, 192], strides = [1, 1]} : vector<8x256xf32> to vector<8x192xf32>
    %cst_85 = arith.constant 5.000000e-01 : f32
    %412 = vector.broadcast %cst_85 : f32 to vector<8x192xf32>
    %413 = arith.mulf %412, %411 : vector<8x192xf32>
    %414 = math.tanh %413 : vector<8x192xf32>
    %cst_86 = arith.constant 5.000000e-01 : f32
    %415 = vector.broadcast %cst_86 : f32 to vector<8x192xf32>
    %416 = arith.mulf %414, %415 : vector<8x192xf32>
    %cst_87 = arith.constant 5.000000e-01 : f32
    %417 = vector.broadcast %cst_87 : f32 to vector<8x192xf32>
    %418 = arith.addf %416, %417 : vector<8x192xf32>
    %419 = vector.extract_strided_slice %418 {offsets = [0, 0], sizes = [8, 64], strides = [1, 1]} : vector<8x192xf32> to vector<8x64xf32>
    %420 = vector.extract_strided_slice %418 {offsets = [0, 64], sizes = [8, 64], strides = [1, 1]} : vector<8x192xf32> to vector<8x64xf32>
    %421 = vector.extract_strided_slice %418 {offsets = [0, 128], sizes = [8, 64], strides = [1, 1]} : vector<8x192xf32> to vector<8x64xf32>
    %422 = vector.extract_strided_slice %410 {offsets = [0, 192], sizes = [8, 64], strides = [1, 1]} : vector<8x256xf32> to vector<8x64xf32>
    %423 = math.tanh %422 : vector<8x64xf32>
    %424 = arith.mulf %420, %383 : vector<8x64xf32>
    %425 = arith.mulf %419, %423 : vector<8x64xf32>
    %426 = arith.addf %424, %425 : vector<8x64xf32>
    %427 = math.tanh %426 : vector<8x64xf32>
    %428 = arith.mulf %421, %427 : vector<8x64xf32>
    %429 = tpu.concatenate %428, %407 in 1 : vector<8x64xf32>, vector<8x64xf32> -> vector<8x128xf32>
    %cst_88 = arith.constant dense<0.000000e+00> : vector<8x512xf32>
    %430 = tpu.matmul %429, %22, %cst_88 {dimension_numbers = #tpu.dot_dimension_numbers<[1], [0], [0], [1], [0, 0, 1, 1], [], []>} : vector<8x128xf32>, vector<128x512xf32>, vector<8x512xf32> -> vector<8x512xf32>
    %431 = vector.extract_strided_slice %430 {offsets = [0, 256], sizes = [8, 256], strides = [1, 1]} : vector<8x512xf32> to vector<8x256xf32>
    %432 = arith.addf %431, %21 : vector<8x256xf32>
    %433 = vector.extract_strided_slice %432 {offsets = [0, 0], sizes = [8, 192], strides = [1, 1]} : vector<8x256xf32> to vector<8x192xf32>
    %cst_89 = arith.constant 5.000000e-01 : f32
    %434 = vector.broadcast %cst_89 : f32 to vector<8x192xf32>
    %435 = arith.mulf %434, %433 : vector<8x192xf32>
    %436 = math.tanh %435 : vector<8x192xf32>
    %cst_90 = arith.constant 5.000000e-01 : f32
    %437 = vector.broadcast %cst_90 : f32 to vector<8x192xf32>
    %438 = arith.mulf %436, %437 : vector<8x192xf32>
    %cst_91 = arith.constant 5.000000e-01 : f32
    %439 = vector.broadcast %cst_91 : f32 to vector<8x192xf32>
    %440 = arith.addf %438, %439 : vector<8x192xf32>
    %441 = vector.extract_strided_slice %440 {offsets = [0, 0], sizes = [8, 64], strides = [1, 1]} : vector<8x192xf32> to vector<8x64xf32>
    %442 = vector.extract_strided_slice %440 {offsets = [0, 64], sizes = [8, 64], strides = [1, 1]} : vector<8x192xf32> to vector<8x64xf32>
    %443 = vector.extract_strided_slice %440 {offsets = [0, 128], sizes = [8, 64], strides = [1, 1]} : vector<8x192xf32> to vector<8x64xf32>
    %444 = vector.extract_strided_slice %432 {offsets = [0, 192], sizes = [8, 64], strides = [1, 1]} : vector<8x256xf32> to vector<8x64xf32>
    %445 = math.tanh %444 : vector<8x64xf32>
    %446 = arith.mulf %442, %405 : vector<8x64xf32>
    %447 = arith.mulf %441, %445 : vector<8x64xf32>
    %448 = arith.addf %446, %447 : vector<8x64xf32>
    %449 = math.tanh %448 : vector<8x64xf32>
    %450 = arith.mulf %443, %449 : vector<8x64xf32>
    %c80 = arith.constant 80 : index
    %c0_92 = arith.constant 0 : index
    %451 = vector.load %arg8[%c80, %c0_92] : memref<128x256xf32, #tpu.memory_space<vmem>>, vector<8x256xf32>
    %452 = vector.extract_strided_slice %430 {offsets = [0, 0], sizes = [8, 256], strides = [1, 1]} : vector<8x512xf32> to vector<8x256xf32>
    %453 = arith.addf %451, %452 : vector<8x256xf32>
    %454 = vector.extract_strided_slice %453 {offsets = [0, 0], sizes = [8, 192], strides = [1, 1]} : vector<8x256xf32> to vector<8x192xf32>
    %cst_93 = arith.constant 5.000000e-01 : f32
    %455 = vector.broadcast %cst_93 : f32 to vector<8x192xf32>
    %456 = arith.mulf %455, %454 : vector<8x192xf32>
    %457 = math.tanh %456 : vector<8x192xf32>
    %cst_94 = arith.constant 5.000000e-01 : f32
    %458 = vector.broadcast %cst_94 : f32 to vector<8x192xf32>
    %459 = arith.mulf %457, %458 : vector<8x192xf32>
    %cst_95 = arith.constant 5.000000e-01 : f32
    %460 = vector.broadcast %cst_95 : f32 to vector<8x192xf32>
    %461 = arith.addf %459, %460 : vector<8x192xf32>
    %462 = vector.extract_strided_slice %461 {offsets = [0, 0], sizes = [8, 64], strides = [1, 1]} : vector<8x192xf32> to vector<8x64xf32>
    %463 = vector.extract_strided_slice %461 {offsets = [0, 64], sizes = [8, 64], strides = [1, 1]} : vector<8x192xf32> to vector<8x64xf32>
    %464 = vector.extract_strided_slice %461 {offsets = [0, 128], sizes = [8, 64], strides = [1, 1]} : vector<8x192xf32> to vector<8x64xf32>
    %465 = vector.extract_strided_slice %453 {offsets = [0, 192], sizes = [8, 64], strides = [1, 1]} : vector<8x256xf32> to vector<8x64xf32>
    %466 = math.tanh %465 : vector<8x64xf32>
    %467 = arith.mulf %463, %426 : vector<8x64xf32>
    %468 = arith.mulf %462, %466 : vector<8x64xf32>
    %469 = arith.addf %467, %468 : vector<8x64xf32>
    %470 = math.tanh %469 : vector<8x64xf32>
    %471 = arith.mulf %464, %470 : vector<8x64xf32>
    %472 = tpu.concatenate %471, %450 in 1 : vector<8x64xf32>, vector<8x64xf32> -> vector<8x128xf32>
    %cst_96 = arith.constant dense<0.000000e+00> : vector<8x512xf32>
    %473 = tpu.matmul %472, %22, %cst_96 {dimension_numbers = #tpu.dot_dimension_numbers<[1], [0], [0], [1], [0, 0, 1, 1], [], []>} : vector<8x128xf32>, vector<128x512xf32>, vector<8x512xf32> -> vector<8x512xf32>
    %474 = vector.extract_strided_slice %473 {offsets = [0, 256], sizes = [8, 256], strides = [1, 1]} : vector<8x512xf32> to vector<8x256xf32>
    %475 = arith.addf %474, %21 : vector<8x256xf32>
    %476 = vector.extract_strided_slice %475 {offsets = [0, 0], sizes = [8, 192], strides = [1, 1]} : vector<8x256xf32> to vector<8x192xf32>
    %cst_97 = arith.constant 5.000000e-01 : f32
    %477 = vector.broadcast %cst_97 : f32 to vector<8x192xf32>
    %478 = arith.mulf %477, %476 : vector<8x192xf32>
    %479 = math.tanh %478 : vector<8x192xf32>
    %cst_98 = arith.constant 5.000000e-01 : f32
    %480 = vector.broadcast %cst_98 : f32 to vector<8x192xf32>
    %481 = arith.mulf %479, %480 : vector<8x192xf32>
    %cst_99 = arith.constant 5.000000e-01 : f32
    %482 = vector.broadcast %cst_99 : f32 to vector<8x192xf32>
    %483 = arith.addf %481, %482 : vector<8x192xf32>
    %484 = vector.extract_strided_slice %483 {offsets = [0, 0], sizes = [8, 64], strides = [1, 1]} : vector<8x192xf32> to vector<8x64xf32>
    %485 = vector.extract_strided_slice %483 {offsets = [0, 64], sizes = [8, 64], strides = [1, 1]} : vector<8x192xf32> to vector<8x64xf32>
    %486 = vector.extract_strided_slice %483 {offsets = [0, 128], sizes = [8, 64], strides = [1, 1]} : vector<8x192xf32> to vector<8x64xf32>
    %487 = vector.extract_strided_slice %475 {offsets = [0, 192], sizes = [8, 64], strides = [1, 1]} : vector<8x256xf32> to vector<8x64xf32>
    %488 = math.tanh %487 : vector<8x64xf32>
    %489 = arith.mulf %485, %448 : vector<8x64xf32>
    %490 = arith.mulf %484, %488 : vector<8x64xf32>
    %491 = arith.addf %489, %490 : vector<8x64xf32>
    %492 = math.tanh %491 : vector<8x64xf32>
    %493 = arith.mulf %486, %492 : vector<8x64xf32>
    %c88 = arith.constant 88 : index
    %c0_100 = arith.constant 0 : index
    %494 = vector.load %arg8[%c88, %c0_100] : memref<128x256xf32, #tpu.memory_space<vmem>>, vector<8x256xf32>
    %495 = vector.extract_strided_slice %473 {offsets = [0, 0], sizes = [8, 256], strides = [1, 1]} : vector<8x512xf32> to vector<8x256xf32>
    %496 = arith.addf %494, %495 : vector<8x256xf32>
    %497 = vector.extract_strided_slice %496 {offsets = [0, 0], sizes = [8, 192], strides = [1, 1]} : vector<8x256xf32> to vector<8x192xf32>
    %cst_101 = arith.constant 5.000000e-01 : f32
    %498 = vector.broadcast %cst_101 : f32 to vector<8x192xf32>
    %499 = arith.mulf %498, %497 : vector<8x192xf32>
    %500 = math.tanh %499 : vector<8x192xf32>
    %cst_102 = arith.constant 5.000000e-01 : f32
    %501 = vector.broadcast %cst_102 : f32 to vector<8x192xf32>
    %502 = arith.mulf %500, %501 : vector<8x192xf32>
    %cst_103 = arith.constant 5.000000e-01 : f32
    %503 = vector.broadcast %cst_103 : f32 to vector<8x192xf32>
    %504 = arith.addf %502, %503 : vector<8x192xf32>
    %505 = vector.extract_strided_slice %504 {offsets = [0, 0], sizes = [8, 64], strides = [1, 1]} : vector<8x192xf32> to vector<8x64xf32>
    %506 = vector.extract_strided_slice %504 {offsets = [0, 64], sizes = [8, 64], strides = [1, 1]} : vector<8x192xf32> to vector<8x64xf32>
    %507 = vector.extract_strided_slice %504 {offsets = [0, 128], sizes = [8, 64], strides = [1, 1]} : vector<8x192xf32> to vector<8x64xf32>
    %508 = vector.extract_strided_slice %496 {offsets = [0, 192], sizes = [8, 64], strides = [1, 1]} : vector<8x256xf32> to vector<8x64xf32>
    %509 = math.tanh %508 : vector<8x64xf32>
    %510 = arith.mulf %506, %469 : vector<8x64xf32>
    %511 = arith.mulf %505, %509 : vector<8x64xf32>
    %512 = arith.addf %510, %511 : vector<8x64xf32>
    %513 = math.tanh %512 : vector<8x64xf32>
    %514 = arith.mulf %507, %513 : vector<8x64xf32>
    %515 = tpu.concatenate %514, %493 in 1 : vector<8x64xf32>, vector<8x64xf32> -> vector<8x128xf32>
    %cst_104 = arith.constant dense<0.000000e+00> : vector<8x512xf32>
    %516 = tpu.matmul %515, %22, %cst_104 {dimension_numbers = #tpu.dot_dimension_numbers<[1], [0], [0], [1], [0, 0, 1, 1], [], []>} : vector<8x128xf32>, vector<128x512xf32>, vector<8x512xf32> -> vector<8x512xf32>
    %517 = vector.extract_strided_slice %516 {offsets = [0, 256], sizes = [8, 256], strides = [1, 1]} : vector<8x512xf32> to vector<8x256xf32>
    %518 = arith.addf %517, %21 : vector<8x256xf32>
    %519 = vector.extract_strided_slice %518 {offsets = [0, 0], sizes = [8, 192], strides = [1, 1]} : vector<8x256xf32> to vector<8x192xf32>
    %cst_105 = arith.constant 5.000000e-01 : f32
    %520 = vector.broadcast %cst_105 : f32 to vector<8x192xf32>
    %521 = arith.mulf %520, %519 : vector<8x192xf32>
    %522 = math.tanh %521 : vector<8x192xf32>
    %cst_106 = arith.constant 5.000000e-01 : f32
    %523 = vector.broadcast %cst_106 : f32 to vector<8x192xf32>
    %524 = arith.mulf %522, %523 : vector<8x192xf32>
    %cst_107 = arith.constant 5.000000e-01 : f32
    %525 = vector.broadcast %cst_107 : f32 to vector<8x192xf32>
    %526 = arith.addf %524, %525 : vector<8x192xf32>
    %527 = vector.extract_strided_slice %526 {offsets = [0, 0], sizes = [8, 64], strides = [1, 1]} : vector<8x192xf32> to vector<8x64xf32>
    %528 = vector.extract_strided_slice %526 {offsets = [0, 64], sizes = [8, 64], strides = [1, 1]} : vector<8x192xf32> to vector<8x64xf32>
    %529 = vector.extract_strided_slice %526 {offsets = [0, 128], sizes = [8, 64], strides = [1, 1]} : vector<8x192xf32> to vector<8x64xf32>
    %530 = vector.extract_strided_slice %518 {offsets = [0, 192], sizes = [8, 64], strides = [1, 1]} : vector<8x256xf32> to vector<8x64xf32>
    %531 = math.tanh %530 : vector<8x64xf32>
    %532 = arith.mulf %528, %491 : vector<8x64xf32>
    %533 = arith.mulf %527, %531 : vector<8x64xf32>
    %534 = arith.addf %532, %533 : vector<8x64xf32>
    %535 = math.tanh %534 : vector<8x64xf32>
    %536 = arith.mulf %529, %535 : vector<8x64xf32>
    %c96 = arith.constant 96 : index
    %c0_108 = arith.constant 0 : index
    %537 = vector.load %arg8[%c96, %c0_108] : memref<128x256xf32, #tpu.memory_space<vmem>>, vector<8x256xf32>
    %538 = vector.extract_strided_slice %516 {offsets = [0, 0], sizes = [8, 256], strides = [1, 1]} : vector<8x512xf32> to vector<8x256xf32>
    %539 = arith.addf %537, %538 : vector<8x256xf32>
    %540 = vector.extract_strided_slice %539 {offsets = [0, 0], sizes = [8, 192], strides = [1, 1]} : vector<8x256xf32> to vector<8x192xf32>
    %cst_109 = arith.constant 5.000000e-01 : f32
    %541 = vector.broadcast %cst_109 : f32 to vector<8x192xf32>
    %542 = arith.mulf %541, %540 : vector<8x192xf32>
    %543 = math.tanh %542 : vector<8x192xf32>
    %cst_110 = arith.constant 5.000000e-01 : f32
    %544 = vector.broadcast %cst_110 : f32 to vector<8x192xf32>
    %545 = arith.mulf %543, %544 : vector<8x192xf32>
    %cst_111 = arith.constant 5.000000e-01 : f32
    %546 = vector.broadcast %cst_111 : f32 to vector<8x192xf32>
    %547 = arith.addf %545, %546 : vector<8x192xf32>
    %548 = vector.extract_strided_slice %547 {offsets = [0, 0], sizes = [8, 64], strides = [1, 1]} : vector<8x192xf32> to vector<8x64xf32>
    %549 = vector.extract_strided_slice %547 {offsets = [0, 64], sizes = [8, 64], strides = [1, 1]} : vector<8x192xf32> to vector<8x64xf32>
    %550 = vector.extract_strided_slice %547 {offsets = [0, 128], sizes = [8, 64], strides = [1, 1]} : vector<8x192xf32> to vector<8x64xf32>
    %551 = vector.extract_strided_slice %539 {offsets = [0, 192], sizes = [8, 64], strides = [1, 1]} : vector<8x256xf32> to vector<8x64xf32>
    %552 = math.tanh %551 : vector<8x64xf32>
    %553 = arith.mulf %549, %512 : vector<8x64xf32>
    %554 = arith.mulf %548, %552 : vector<8x64xf32>
    %555 = arith.addf %553, %554 : vector<8x64xf32>
    %556 = math.tanh %555 : vector<8x64xf32>
    %557 = arith.mulf %550, %556 : vector<8x64xf32>
    %558 = tpu.concatenate %557, %536 in 1 : vector<8x64xf32>, vector<8x64xf32> -> vector<8x128xf32>
    %cst_112 = arith.constant dense<0.000000e+00> : vector<8x512xf32>
    %559 = tpu.matmul %558, %22, %cst_112 {dimension_numbers = #tpu.dot_dimension_numbers<[1], [0], [0], [1], [0, 0, 1, 1], [], []>} : vector<8x128xf32>, vector<128x512xf32>, vector<8x512xf32> -> vector<8x512xf32>
    %560 = vector.extract_strided_slice %559 {offsets = [0, 256], sizes = [8, 256], strides = [1, 1]} : vector<8x512xf32> to vector<8x256xf32>
    %561 = arith.addf %560, %21 : vector<8x256xf32>
    %562 = vector.extract_strided_slice %561 {offsets = [0, 0], sizes = [8, 192], strides = [1, 1]} : vector<8x256xf32> to vector<8x192xf32>
    %cst_113 = arith.constant 5.000000e-01 : f32
    %563 = vector.broadcast %cst_113 : f32 to vector<8x192xf32>
    %564 = arith.mulf %563, %562 : vector<8x192xf32>
    %565 = math.tanh %564 : vector<8x192xf32>
    %cst_114 = arith.constant 5.000000e-01 : f32
    %566 = vector.broadcast %cst_114 : f32 to vector<8x192xf32>
    %567 = arith.mulf %565, %566 : vector<8x192xf32>
    %cst_115 = arith.constant 5.000000e-01 : f32
    %568 = vector.broadcast %cst_115 : f32 to vector<8x192xf32>
    %569 = arith.addf %567, %568 : vector<8x192xf32>
    %570 = vector.extract_strided_slice %569 {offsets = [0, 0], sizes = [8, 64], strides = [1, 1]} : vector<8x192xf32> to vector<8x64xf32>
    %571 = vector.extract_strided_slice %569 {offsets = [0, 64], sizes = [8, 64], strides = [1, 1]} : vector<8x192xf32> to vector<8x64xf32>
    %572 = vector.extract_strided_slice %569 {offsets = [0, 128], sizes = [8, 64], strides = [1, 1]} : vector<8x192xf32> to vector<8x64xf32>
    %573 = vector.extract_strided_slice %561 {offsets = [0, 192], sizes = [8, 64], strides = [1, 1]} : vector<8x256xf32> to vector<8x64xf32>
    %574 = math.tanh %573 : vector<8x64xf32>
    %575 = arith.mulf %571, %534 : vector<8x64xf32>
    %576 = arith.mulf %570, %574 : vector<8x64xf32>
    %577 = arith.addf %575, %576 : vector<8x64xf32>
    %578 = math.tanh %577 : vector<8x64xf32>
    %579 = arith.mulf %572, %578 : vector<8x64xf32>
    %c104 = arith.constant 104 : index
    %c0_116 = arith.constant 0 : index
    %580 = vector.load %arg8[%c104, %c0_116] : memref<128x256xf32, #tpu.memory_space<vmem>>, vector<8x256xf32>
    %581 = vector.extract_strided_slice %559 {offsets = [0, 0], sizes = [8, 256], strides = [1, 1]} : vector<8x512xf32> to vector<8x256xf32>
    %582 = arith.addf %580, %581 : vector<8x256xf32>
    %583 = vector.extract_strided_slice %582 {offsets = [0, 0], sizes = [8, 192], strides = [1, 1]} : vector<8x256xf32> to vector<8x192xf32>
    %cst_117 = arith.constant 5.000000e-01 : f32
    %584 = vector.broadcast %cst_117 : f32 to vector<8x192xf32>
    %585 = arith.mulf %584, %583 : vector<8x192xf32>
    %586 = math.tanh %585 : vector<8x192xf32>
    %cst_118 = arith.constant 5.000000e-01 : f32
    %587 = vector.broadcast %cst_118 : f32 to vector<8x192xf32>
    %588 = arith.mulf %586, %587 : vector<8x192xf32>
    %cst_119 = arith.constant 5.000000e-01 : f32
    %589 = vector.broadcast %cst_119 : f32 to vector<8x192xf32>
    %590 = arith.addf %588, %589 : vector<8x192xf32>
    %591 = vector.extract_strided_slice %590 {offsets = [0, 0], sizes = [8, 64], strides = [1, 1]} : vector<8x192xf32> to vector<8x64xf32>
    %592 = vector.extract_strided_slice %590 {offsets = [0, 64], sizes = [8, 64], strides = [1, 1]} : vector<8x192xf32> to vector<8x64xf32>
    %593 = vector.extract_strided_slice %590 {offsets = [0, 128], sizes = [8, 64], strides = [1, 1]} : vector<8x192xf32> to vector<8x64xf32>
    %594 = vector.extract_strided_slice %582 {offsets = [0, 192], sizes = [8, 64], strides = [1, 1]} : vector<8x256xf32> to vector<8x64xf32>
    %595 = math.tanh %594 : vector<8x64xf32>
    %596 = arith.mulf %592, %555 : vector<8x64xf32>
    %597 = arith.mulf %591, %595 : vector<8x64xf32>
    %598 = arith.addf %596, %597 : vector<8x64xf32>
    %599 = math.tanh %598 : vector<8x64xf32>
    %600 = arith.mulf %593, %599 : vector<8x64xf32>
    %601 = tpu.concatenate %600, %579 in 1 : vector<8x64xf32>, vector<8x64xf32> -> vector<8x128xf32>
    %cst_120 = arith.constant dense<0.000000e+00> : vector<8x512xf32>
    %602 = tpu.matmul %601, %22, %cst_120 {dimension_numbers = #tpu.dot_dimension_numbers<[1], [0], [0], [1], [0, 0, 1, 1], [], []>} : vector<8x128xf32>, vector<128x512xf32>, vector<8x512xf32> -> vector<8x512xf32>
    %603 = vector.extract_strided_slice %602 {offsets = [0, 256], sizes = [8, 256], strides = [1, 1]} : vector<8x512xf32> to vector<8x256xf32>
    %604 = arith.addf %603, %21 : vector<8x256xf32>
    %605 = vector.extract_strided_slice %604 {offsets = [0, 0], sizes = [8, 192], strides = [1, 1]} : vector<8x256xf32> to vector<8x192xf32>
    %cst_121 = arith.constant 5.000000e-01 : f32
    %606 = vector.broadcast %cst_121 : f32 to vector<8x192xf32>
    %607 = arith.mulf %606, %605 : vector<8x192xf32>
    %608 = math.tanh %607 : vector<8x192xf32>
    %cst_122 = arith.constant 5.000000e-01 : f32
    %609 = vector.broadcast %cst_122 : f32 to vector<8x192xf32>
    %610 = arith.mulf %608, %609 : vector<8x192xf32>
    %cst_123 = arith.constant 5.000000e-01 : f32
    %611 = vector.broadcast %cst_123 : f32 to vector<8x192xf32>
    %612 = arith.addf %610, %611 : vector<8x192xf32>
    %613 = vector.extract_strided_slice %612 {offsets = [0, 0], sizes = [8, 64], strides = [1, 1]} : vector<8x192xf32> to vector<8x64xf32>
    %614 = vector.extract_strided_slice %612 {offsets = [0, 64], sizes = [8, 64], strides = [1, 1]} : vector<8x192xf32> to vector<8x64xf32>
    %615 = vector.extract_strided_slice %612 {offsets = [0, 128], sizes = [8, 64], strides = [1, 1]} : vector<8x192xf32> to vector<8x64xf32>
    %616 = vector.extract_strided_slice %604 {offsets = [0, 192], sizes = [8, 64], strides = [1, 1]} : vector<8x256xf32> to vector<8x64xf32>
    %617 = math.tanh %616 : vector<8x64xf32>
    %618 = arith.mulf %614, %577 : vector<8x64xf32>
    %619 = arith.mulf %613, %617 : vector<8x64xf32>
    %620 = arith.addf %618, %619 : vector<8x64xf32>
    %621 = math.tanh %620 : vector<8x64xf32>
    %622 = arith.mulf %615, %621 : vector<8x64xf32>
    %c112 = arith.constant 112 : index
    %c0_124 = arith.constant 0 : index
    %623 = vector.load %arg8[%c112, %c0_124] : memref<128x256xf32, #tpu.memory_space<vmem>>, vector<8x256xf32>
    %624 = vector.extract_strided_slice %602 {offsets = [0, 0], sizes = [8, 256], strides = [1, 1]} : vector<8x512xf32> to vector<8x256xf32>
    %625 = arith.addf %623, %624 : vector<8x256xf32>
    %626 = vector.extract_strided_slice %625 {offsets = [0, 0], sizes = [8, 192], strides = [1, 1]} : vector<8x256xf32> to vector<8x192xf32>
    %cst_125 = arith.constant 5.000000e-01 : f32
    %627 = vector.broadcast %cst_125 : f32 to vector<8x192xf32>
    %628 = arith.mulf %627, %626 : vector<8x192xf32>
    %629 = math.tanh %628 : vector<8x192xf32>
    %cst_126 = arith.constant 5.000000e-01 : f32
    %630 = vector.broadcast %cst_126 : f32 to vector<8x192xf32>
    %631 = arith.mulf %629, %630 : vector<8x192xf32>
    %cst_127 = arith.constant 5.000000e-01 : f32
    %632 = vector.broadcast %cst_127 : f32 to vector<8x192xf32>
    %633 = arith.addf %631, %632 : vector<8x192xf32>
    %634 = vector.extract_strided_slice %633 {offsets = [0, 0], sizes = [8, 64], strides = [1, 1]} : vector<8x192xf32> to vector<8x64xf32>
    %635 = vector.extract_strided_slice %633 {offsets = [0, 64], sizes = [8, 64], strides = [1, 1]} : vector<8x192xf32> to vector<8x64xf32>
    %636 = vector.extract_strided_slice %633 {offsets = [0, 128], sizes = [8, 64], strides = [1, 1]} : vector<8x192xf32> to vector<8x64xf32>
    %637 = vector.extract_strided_slice %625 {offsets = [0, 192], sizes = [8, 64], strides = [1, 1]} : vector<8x256xf32> to vector<8x64xf32>
    %638 = math.tanh %637 : vector<8x64xf32>
    %639 = arith.mulf %635, %598 : vector<8x64xf32>
    %640 = arith.mulf %634, %638 : vector<8x64xf32>
    %641 = arith.addf %639, %640 : vector<8x64xf32>
    %642 = math.tanh %641 : vector<8x64xf32>
    %643 = arith.mulf %636, %642 : vector<8x64xf32>
    %644 = tpu.concatenate %643, %622 in 1 : vector<8x64xf32>, vector<8x64xf32> -> vector<8x128xf32>
    %cst_128 = arith.constant dense<0.000000e+00> : vector<8x512xf32>
    %645 = tpu.matmul %644, %22, %cst_128 {dimension_numbers = #tpu.dot_dimension_numbers<[1], [0], [0], [1], [0, 0, 1, 1], [], []>} : vector<8x128xf32>, vector<128x512xf32>, vector<8x512xf32> -> vector<8x512xf32>
    %646 = vector.extract_strided_slice %645 {offsets = [0, 256], sizes = [8, 256], strides = [1, 1]} : vector<8x512xf32> to vector<8x256xf32>
    %647 = arith.addf %646, %21 : vector<8x256xf32>
    %648 = vector.extract_strided_slice %647 {offsets = [0, 0], sizes = [8, 192], strides = [1, 1]} : vector<8x256xf32> to vector<8x192xf32>
    %cst_129 = arith.constant 5.000000e-01 : f32
    %649 = vector.broadcast %cst_129 : f32 to vector<8x192xf32>
    %650 = arith.mulf %649, %648 : vector<8x192xf32>
    %651 = math.tanh %650 : vector<8x192xf32>
    %cst_130 = arith.constant 5.000000e-01 : f32
    %652 = vector.broadcast %cst_130 : f32 to vector<8x192xf32>
    %653 = arith.mulf %651, %652 : vector<8x192xf32>
    %cst_131 = arith.constant 5.000000e-01 : f32
    %654 = vector.broadcast %cst_131 : f32 to vector<8x192xf32>
    %655 = arith.addf %653, %654 : vector<8x192xf32>
    %656 = vector.extract_strided_slice %655 {offsets = [0, 0], sizes = [8, 64], strides = [1, 1]} : vector<8x192xf32> to vector<8x64xf32>
    %657 = vector.extract_strided_slice %655 {offsets = [0, 64], sizes = [8, 64], strides = [1, 1]} : vector<8x192xf32> to vector<8x64xf32>
    %658 = vector.extract_strided_slice %655 {offsets = [0, 128], sizes = [8, 64], strides = [1, 1]} : vector<8x192xf32> to vector<8x64xf32>
    %659 = vector.extract_strided_slice %647 {offsets = [0, 192], sizes = [8, 64], strides = [1, 1]} : vector<8x256xf32> to vector<8x64xf32>
    %660 = math.tanh %659 : vector<8x64xf32>
    %661 = arith.mulf %657, %620 : vector<8x64xf32>
    %662 = arith.mulf %656, %660 : vector<8x64xf32>
    %663 = arith.addf %661, %662 : vector<8x64xf32>
    %664 = math.tanh %663 : vector<8x64xf32>
    %665 = arith.mulf %658, %664 : vector<8x64xf32>
    %c120 = arith.constant 120 : index
    %c0_132 = arith.constant 0 : index
    %666 = vector.load %arg8[%c120, %c0_132] : memref<128x256xf32, #tpu.memory_space<vmem>>, vector<8x256xf32>
    %667 = vector.extract_strided_slice %645 {offsets = [0, 0], sizes = [8, 256], strides = [1, 1]} : vector<8x512xf32> to vector<8x256xf32>
    %668 = arith.addf %666, %667 : vector<8x256xf32>
    %669 = vector.extract_strided_slice %668 {offsets = [0, 0], sizes = [8, 192], strides = [1, 1]} : vector<8x256xf32> to vector<8x192xf32>
    %cst_133 = arith.constant 5.000000e-01 : f32
    %670 = vector.broadcast %cst_133 : f32 to vector<8x192xf32>
    %671 = arith.mulf %670, %669 : vector<8x192xf32>
    %672 = math.tanh %671 : vector<8x192xf32>
    %cst_134 = arith.constant 5.000000e-01 : f32
    %673 = vector.broadcast %cst_134 : f32 to vector<8x192xf32>
    %674 = arith.mulf %672, %673 : vector<8x192xf32>
    %cst_135 = arith.constant 5.000000e-01 : f32
    %675 = vector.broadcast %cst_135 : f32 to vector<8x192xf32>
    %676 = arith.addf %674, %675 : vector<8x192xf32>
    %677 = vector.extract_strided_slice %676 {offsets = [0, 0], sizes = [8, 64], strides = [1, 1]} : vector<8x192xf32> to vector<8x64xf32>
    %678 = vector.extract_strided_slice %676 {offsets = [0, 64], sizes = [8, 64], strides = [1, 1]} : vector<8x192xf32> to vector<8x64xf32>
    %679 = vector.extract_strided_slice %676 {offsets = [0, 128], sizes = [8, 64], strides = [1, 1]} : vector<8x192xf32> to vector<8x64xf32>
    %680 = vector.extract_strided_slice %668 {offsets = [0, 192], sizes = [8, 64], strides = [1, 1]} : vector<8x256xf32> to vector<8x64xf32>
    %681 = math.tanh %680 : vector<8x64xf32>
    %682 = arith.mulf %678, %641 : vector<8x64xf32>
    %683 = arith.mulf %677, %681 : vector<8x64xf32>
    %684 = arith.addf %682, %683 : vector<8x64xf32>
    %685 = math.tanh %684 : vector<8x64xf32>
    %686 = arith.mulf %679, %685 : vector<8x64xf32>
    %687 = tpu.concatenate %686, %665 in 1 : vector<8x64xf32>, vector<8x64xf32> -> vector<8x128xf32>
    %cst_136 = arith.constant dense<0.000000e+00> : vector<8x512xf32>
    %688 = tpu.matmul %687, %22, %cst_136 {dimension_numbers = #tpu.dot_dimension_numbers<[1], [0], [0], [1], [0, 0, 1, 1], [], []>} : vector<8x128xf32>, vector<128x512xf32>, vector<8x512xf32> -> vector<8x512xf32>
    %689 = vector.extract_strided_slice %688 {offsets = [0, 256], sizes = [8, 256], strides = [1, 1]} : vector<8x512xf32> to vector<8x256xf32>
    %690 = arith.addf %689, %21 : vector<8x256xf32>
    %691 = vector.extract_strided_slice %690 {offsets = [0, 0], sizes = [8, 192], strides = [1, 1]} : vector<8x256xf32> to vector<8x192xf32>
    %cst_137 = arith.constant 5.000000e-01 : f32
    %692 = vector.broadcast %cst_137 : f32 to vector<8x192xf32>
    %693 = arith.mulf %692, %691 : vector<8x192xf32>
    %694 = math.tanh %693 : vector<8x192xf32>
    %cst_138 = arith.constant 5.000000e-01 : f32
    %695 = vector.broadcast %cst_138 : f32 to vector<8x192xf32>
    %696 = arith.mulf %694, %695 : vector<8x192xf32>
    %cst_139 = arith.constant 5.000000e-01 : f32
    %697 = vector.broadcast %cst_139 : f32 to vector<8x192xf32>
    %698 = arith.addf %696, %697 : vector<8x192xf32>
    %699 = vector.extract_strided_slice %698 {offsets = [0, 0], sizes = [8, 64], strides = [1, 1]} : vector<8x192xf32> to vector<8x64xf32>
    %700 = vector.extract_strided_slice %698 {offsets = [0, 64], sizes = [8, 64], strides = [1, 1]} : vector<8x192xf32> to vector<8x64xf32>
    %701 = vector.extract_strided_slice %698 {offsets = [0, 128], sizes = [8, 64], strides = [1, 1]} : vector<8x192xf32> to vector<8x64xf32>
    %702 = vector.extract_strided_slice %690 {offsets = [0, 192], sizes = [8, 64], strides = [1, 1]} : vector<8x256xf32> to vector<8x64xf32>
    %703 = math.tanh %702 : vector<8x64xf32>
    %704 = arith.mulf %700, %663 : vector<8x64xf32>
    %705 = arith.mulf %699, %703 : vector<8x64xf32>
    %706 = arith.addf %704, %705 : vector<8x64xf32>
    %707 = math.tanh %706 : vector<8x64xf32>
    %708 = arith.mulf %701, %707 : vector<8x64xf32>
    %c0_140 = arith.constant 0 : index
    %c0_141 = arith.constant 0 : index
    %709 = vector.load %arg5[%c0_140, %c0_141] : memref<64x128xf32, #tpu.memory_space<vmem>>, vector<64x128xf32>
    %cst_142 = arith.constant dense<0.000000e+00> : vector<8x128xf32>
    %710 = tpu.matmul %708, %709, %cst_142 {dimension_numbers = #tpu.dot_dimension_numbers<[1], [0], [0], [1], [0, 0, 1, 1], [], []>} : vector<8x64xf32>, vector<64x128xf32>, vector<8x128xf32> -> vector<8x128xf32>
    %c0_143 = arith.constant 0 : index
    %c0_144 = arith.constant 0 : index
    %711 = vector.load %arg6[%c0_143, %c0_144] : memref<1x128xf32, #tpu.memory_space<vmem>>, vector<1x128xf32>
    %712 = vector.broadcast %711 : vector<1x128xf32> to vector<8x128xf32>
    %713 = arith.addf %710, %712 : vector<8x128xf32>
    %c0_145 = arith.constant 0 : index
    %c0_146 = arith.constant 0 : index
    %714 = vector.load %arg7[%c0_145, %c0_146] : memref<8x128xf32, #tpu.memory_space<vmem>>, vector<8x128xf32>
    tpu.vector_store %arg7[%c0_145, %c0_146], %713 {strides = array<i32>} : memref<8x128xf32, #tpu.memory_space<vmem>>, vector<8x128xf32>,
    return
  }
}

</mosaic_0001>

<llo_original>
// kernel: tpu_custom_call.1
$region0: #{tpu_custom_call.1}
  #allocation0 [shape = 'u32[]', space=smem, size = 0x4, offset = 0x4, fixed_abs, tag = 'smem constant byte address 0x4 - core index']
  #allocation1 [shape = 'u32[144,128]{1,0:T(1,128)}', space=vmem, size = 0x12000, scoped, tag = 'internal scratch']
  #allocation2 [shape = 'f32[128,256]{1,0:T(8,128)}', space=vmem, size = 0x20000, scoped, tag = 'scratch operand']
  %s0 = inlined_call_operand.vmem [shape: f32[128,2], index: 0, kind: input, shape index: {}]
  %s1 = inlined_call_operand.vmem [shape: f32[2,256], index: 1, kind: input, shape index: {}]
  %s2 = inlined_call_operand.vmem [shape: f32[1,256], index: 2, kind: input, shape index: {}]
  %s3 = inlined_call_operand.hbm [shape: f32[128,512], index: 3, kind: input, shape index: {}]
  %s4 = inlined_call_operand.vmem [shape: f32[1,256], index: 4, kind: input, shape index: {}]
  %s5 = inlined_call_operand.vmem [shape: f32[64,128], index: 5, kind: input, shape index: {}]
  %s6 = inlined_call_operand.vmem [shape: f32[1,128], index: 6, kind: input, shape index: {}]
  %s7 = inlined_call_operand.hbm [shape: f32[8,128], index: 7, kind: output, shape index: {}]
  %s8 = sld [smem:[#allocation0]]
  $region42: #{tpu_custom_call.1} parent=0
    _
  %s10 = ssub.s32 1, %s8
  %s11 = scalar_select 0, %s10, %s8
  $region1: #{tpu_custom_call.1} parent=0
    #allocation3 [shape = 'u8[262144]{0}', space=vmem, size = 0x40000, scoped, tag = 'input window, operand 3, single buffered']
    #allocation4 [shape = 's32[1]{0}', space=sflag, size = 0x4, scoped, tag = 'scoped memory for tpu_custom_call.1']
    #allocation5 [shape = 's32[1]{0}', space=sflag, size = 0x4, scoped, tag = 'scoped memory for tpu_custom_call.1']
    #allocation6 [shape = 'u8[4096]{0}', space=vmem, size = 0x1000, scoped, tag = 'output window, operand 0, single buffered']
    %12 = vsyncpa [#allocation4], 0
    %13 = vsyncpa [#allocation5], 0
    // Predicated region
    $region2: #{tpu_custom_call.1} parent=1 // pred_check
      _
    $region3: #{tpu_custom_call.1} parent=1 // pred_check_branch
      %15 = sbr.rel (0) target = $region5
    $region4: #{tpu_custom_call.1} parent=1 // pred_region
      _
    $region5: #{tpu_custom_call.1} parent=1 // pred_fallthru
      _
    // Predicated region
    $region6: #{tpu_custom_call.1} parent=1 // pred_check
      _
    $region7: #{tpu_custom_call.1} parent=1 // pred_check_branch
      %17 = sbr.rel (0) target = $region9
    $region8: #{tpu_custom_call.1} parent=1 // pred_region
      _
    $region9: #{tpu_custom_call.1} parent=1 // pred_fallthru
      _
    // Predicated region
    $region10: #{tpu_custom_call.1} parent=1 // pred_check
      _
    $region11: #{tpu_custom_call.1} parent=1 // pred_check_branch
      %19 = sbr.rel (0) target = $region13
    $region12: #{tpu_custom_call.1} parent=1 // pred_region
      _
    $region13: #{tpu_custom_call.1} parent=1 // pred_fallthru
      _
    // Predicated region
    $region14: #{tpu_custom_call.1} parent=1 // pred_check
      _
    $region15: #{tpu_custom_call.1} parent=1 // pred_check_branch
      %21 = sbr.rel (0) target = $region17
    $region16: #{tpu_custom_call.1} parent=1 // pred_region
      %s23 = ssub.s32 8192, 8192
      %24 = vsyncadd [#allocation4], %s23
      %s25 = sshll.u32 [#allocation3], 4
      %s26 = int_to_ptr.vmem [resolvable:$true] %s25
      %31 = dma.hbm_to_vmem [thread:$0]  %s3, 8192, %s26, [#allocation4], 512, 512, 32
    $region17: #{tpu_custom_call.1} parent=1 // pred_fallthru
      _
    // Predicated region
    $region18: #{tpu_custom_call.1} parent=1 // pred_check
      _
    $region19: #{tpu_custom_call.1} parent=1 // pred_check_branch
      %33 = sbr.rel (0) target = $region21
    $region20: #{tpu_custom_call.1} parent=1 // pred_region
      _
    $region21: #{tpu_custom_call.1} parent=1 // pred_fallthru
      _
    // Predicated region
    $region22: #{tpu_custom_call.1} parent=1 // pred_check
      _
    $region23: #{tpu_custom_call.1} parent=1 // pred_check_branch
      %35 = sbr.rel (0) target = $region25
    $region24: #{tpu_custom_call.1} parent=1 // pred_region
      _
    $region25: #{tpu_custom_call.1} parent=1 // pred_fallthru
      _
    // Predicated region
    $region26: #{tpu_custom_call.1} parent=1 // pred_check
      _
    $region27: #{tpu_custom_call.1} parent=1 // pred_check_branch
      %37 = sbr.rel (0) target = $region29
    $region28: #{tpu_custom_call.1} parent=1 // pred_region
      _
    $region29: #{tpu_custom_call.1} parent=1 // pred_fallthru
      _
    // Predicated region
    $region30: #{tpu_custom_call.1} parent=1 // pred_check
      _
    $region31: #{tpu_custom_call.1} parent=1 // pred_check_branch
      %39 = sbr.rel (0) target = $region33
    $region32: #{tpu_custom_call.1} parent=1 // pred_region
      %40 = dma.done [#allocation4], 8192
    $region33: #{tpu_custom_call.1} parent=1 // pred_fallthru
      _
    %v41 = vld [vmem:[%s0] sm:$0xff]
    %v42 = vld [vmem:[%s0 + $0x8] sm:$0xff]
    %v43 = vld [vmem:[%s0 + $0x10] sm:$0xff]
    %v44 = vld [vmem:[%s0 + $0x18] sm:$0xff]
    %v45 = vld [vmem:[%s0 + $0x20] sm:$0xff]
    %v46 = vld [vmem:[%s0 + $0x28] sm:$0xff]
    %v47 = vld [vmem:[%s0 + $0x30] sm:$0xff]
    %v48 = vld [vmem:[%s0 + $0x38] sm:$0xff]
    %v49 = vld [vmem:[%s0 + $0x40] sm:$0xff]
    %v50 = vld [vmem:[%s0 + $0x48] sm:$0xff]
    %v51 = vld [vmem:[%s0 + $0x50] sm:$0xff]
    %v52 = vld [vmem:[%s0 + $0x58] sm:$0xff]
    %v53 = vld [vmem:[%s0 + $0x60] sm:$0xff]
    %v54 = vld [vmem:[%s0 + $0x68] sm:$0xff]
    %v55 = vld [vmem:[%s0 + $0x70] sm:$0xff]
    %v56 = vld [vmem:[%s0 + $0x78] sm:$0xff]
    %v57 = vld [vmem:[%s1] sm:$0xf]
    %v58 = vld [vmem:[%s2] sm:$0x3]
    %v60 = vlaneseq
    %v61 = vshrl.u32 %v60, 7
    %v62 = vsub.s32 0, %v61
    %v63 = vrot.slane %v58, %v62
    %v64 = vlaneseq
    %v65 = vshrl.u32 %v64, 7
    %v66 = vsub.s32 1, %v65
    %v67 = vrot.slane %v58, %v66
    %71 = vset.pattern.permute.xlu0 0
    %72 = vperm.xlu0 %71, %v41
    %v73 = vpop.permute.xlu0 %72
    %76 = vset.pattern.permute.xlu0 0
    %77 = vperm.xlu0 %76, %v42
    %v78 = vpop.permute.xlu0 %77
    %81 = vset.pattern.permute.xlu0 0
    %82 = vperm.xlu0 %81, %v43
    %v83 = vpop.permute.xlu0 %82
    %86 = vset.pattern.permute.xlu0 0
    %87 = vperm.xlu0 %86, %v44
    %v88 = vpop.permute.xlu0 %87
    %91 = vset.pattern.permute.xlu0 0
    %92 = vperm.xlu0 %91, %v45
    %v93 = vpop.permute.xlu0 %92
    %96 = vset.pattern.permute.xlu0 0
    %97 = vperm.xlu0 %96, %v46
    %v98 = vpop.permute.xlu0 %97
    %101 = vset.pattern.permute.xlu0 0
    %102 = vperm.xlu0 %101, %v47
    %v103 = vpop.permute.xlu0 %102
    %106 = vset.pattern.permute.xlu0 0
    %107 = vperm.xlu0 %106, %v48
    %v108 = vpop.permute.xlu0 %107
    %111 = vset.pattern.permute.xlu0 0
    %112 = vperm.xlu0 %111, %v49
    %v113 = vpop.permute.xlu0 %112
    %116 = vset.pattern.permute.xlu0 0
    %117 = vperm.xlu0 %116, %v50
    %v118 = vpop.permute.xlu0 %117
    %121 = vset.pattern.permute.xlu0 0
    %122 = vperm.xlu0 %121, %v51
    %v123 = vpop.permute.xlu0 %122
    %126 = vset.pattern.permute.xlu0 0
    %127 = vperm.xlu0 %126, %v52
    %v128 = vpop.permute.xlu0 %127
    %131 = vset.pattern.permute.xlu0 0
    %132 = vperm.xlu0 %131, %v53
    %v133 = vpop.permute.xlu0 %132
    %136 = vset.pattern.permute.xlu0 0
    %137 = vperm.xlu0 %136, %v54
    %v138 = vpop.permute.xlu0 %137
    %141 = vset.pattern.permute.xlu0 0
    %142 = vperm.xlu0 %141, %v55
    %v143 = vpop.permute.xlu0 %142
    %146 = vset.pattern.permute.xlu0 0
    %147 = vperm.xlu0 %146, %v56
    %v148 = vpop.permute.xlu0 %147
    %v151 = vlaneseq
    %v152 = vshrl.u32 %v151, 7
    %v153 = vsub.s32 0, %v152
    %v154 = vrot.slane %v57, %v153
    %v155 = vlaneseq
    %v156 = vshrl.u32 %v155, 7
    %v157 = vsub.s32 2, %v156
    %v158 = vrot.slane %v57, %v157
    %v161 = vlaneseq
    %v162 = vshrl.u32 %v161, 7
    %v163 = vsub.s32 0, %v162
    %v164 = vrot.slane %v154, %v163
    %v165 = vlaneseq
    %v166 = vshrl.u32 %v165, 7
    %v167 = vsub.s32 0, %v166
    %v168 = vrot.slane %v158, %v167
    %v169 = vmul.f32 %v73, %v164
    %v170 = vmul.f32 %v73, %v168
    %v171 = vmul.f32 %v78, %v164
    %v172 = vmul.f32 %v78, %v168
    %v173 = vmul.f32 %v83, %v164
    %v174 = vmul.f32 %v83, %v168
    %v175 = vmul.f32 %v88, %v164
    %v176 = vmul.f32 %v88, %v168
    %v177 = vmul.f32 %v93, %v164
    %v178 = vmul.f32 %v93, %v168
    %v179 = vmul.f32 %v98, %v164
    %v180 = vmul.f32 %v98, %v168
    %v181 = vmul.f32 %v103, %v164
    %v182 = vmul.f32 %v103, %v168
    %v183 = vmul.f32 %v108, %v164
    %v184 = vmul.f32 %v108, %v168
    %v185 = vmul.f32 %v113, %v164
    %v186 = vmul.f32 %v113, %v168
    %v187 = vmul.f32 %v118, %v164
    %v188 = vmul.f32 %v118, %v168
    %v189 = vmul.f32 %v123, %v164
    %v190 = vmul.f32 %v123, %v168
    %v191 = vmul.f32 %v128, %v164
    %v192 = vmul.f32 %v128, %v168
    %v193 = vmul.f32 %v133, %v164
    %v194 = vmul.f32 %v133, %v168
    %v195 = vmul.f32 %v138, %v164
    %v196 = vmul.f32 %v138, %v168
    %v197 = vmul.f32 %v143, %v164
    %v198 = vmul.f32 %v143, %v168
    %v199 = vmul.f32 %v148, %v164
    %v200 = vmul.f32 %v148, %v168
    %v201 = vadd.f32 %v63, %v169
    %v202 = vadd.f32 %v67, %v170
    %v203 = vadd.f32 %v63, %v171
    %v204 = vadd.f32 %v67, %v172
    %v205 = vadd.f32 %v63, %v173
    %v206 = vadd.f32 %v67, %v174
    %v207 = vadd.f32 %v63, %v175
    %v208 = vadd.f32 %v67, %v176
    %v209 = vadd.f32 %v63, %v177
    %v210 = vadd.f32 %v67, %v178
    %v211 = vadd.f32 %v63, %v179
    %v212 = vadd.f32 %v67, %v180
    %v213 = vadd.f32 %v63, %v181
    %v214 = vadd.f32 %v67, %v182
    %v215 = vadd.f32 %v63, %v183
    %v216 = vadd.f32 %v67, %v184
    %v217 = vadd.f32 %v63, %v185
    %v218 = vadd.f32 %v67, %v186
    %v219 = vadd.f32 %v63, %v187
    %v220 = vadd.f32 %v67, %v188
    %v221 = vadd.f32 %v63, %v189
    %v222 = vadd.f32 %v67, %v190
    %v223 = vadd.f32 %v63, %v191
    %v224 = vadd.f32 %v67, %v192
    %v225 = vadd.f32 %v63, %v193
    %v226 = vadd.f32 %v67, %v194
    %v227 = vadd.f32 %v63, %v195
    %v228 = vadd.f32 %v67, %v196
    %v229 = vadd.f32 %v63, %v197
    %v230 = vadd.f32 %v67, %v198
    %v231 = vadd.f32 %v63, %v199
    %v232 = vadd.f32 %v67, %v200
    %233 = vset.pattern.permute.xlu0 1
    %234 = vperm.xlu0 %233, %v41
    %v235 = vpop.permute.xlu0 %234
    %237 = vset.pattern.permute.xlu0 1
    %238 = vperm.xlu0 %237, %v42
    %v239 = vpop.permute.xlu0 %238
    %241 = vset.pattern.permute.xlu0 1
    %242 = vperm.xlu0 %241, %v43
    %v243 = vpop.permute.xlu0 %242
    %245 = vset.pattern.permute.xlu0 1
    %246 = vperm.xlu0 %245, %v44
    %v247 = vpop.permute.xlu0 %246
    %249 = vset.pattern.permute.xlu0 1
    %250 = vperm.xlu0 %249, %v45
    %v251 = vpop.permute.xlu0 %250
    %253 = vset.pattern.permute.xlu0 1
    %254 = vperm.xlu0 %253, %v46
    %v255 = vpop.permute.xlu0 %254
    %257 = vset.pattern.permute.xlu0 1
    %258 = vperm.xlu0 %257, %v47
    %v259 = vpop.permute.xlu0 %258
    %261 = vset.pattern.permute.xlu0 1
    %262 = vperm.xlu0 %261, %v48
    %v263 = vpop.permute.xlu0 %262
    %265 = vset.pattern.permute.xlu0 1
    %266 = vperm.xlu0 %265, %v49
    %v267 = vpop.permute.xlu0 %266
    %269 = vset.pattern.permute.xlu0 1
    %270 = vperm.xlu0 %269, %v50
    %v271 = vpop.permute.xlu0 %270
    %273 = vset.pattern.permute.xlu0 1
    %274 = vperm.xlu0 %273, %v51
    %v275 = vpop.permute.xlu0 %274
    %277 = vset.pattern.permute.xlu0 1
    %278 = vperm.xlu0 %277, %v52
    %v279 = vpop.permute.xlu0 %278
    %281 = vset.pattern.permute.xlu0 1
    %282 = vperm.xlu0 %281, %v53
    %v283 = vpop.permute.xlu0 %282
    %285 = vset.pattern.permute.xlu0 1
    %286 = vperm.xlu0 %285, %v54
    %v287 = vpop.permute.xlu0 %286
    %289 = vset.pattern.permute.xlu0 1
    %290 = vperm.xlu0 %289, %v55
    %v291 = vpop.permute.xlu0 %290
    %293 = vset.pattern.permute.xlu0 1
    %294 = vperm.xlu0 %293, %v56
    %v295 = vpop.permute.xlu0 %294
    %v297 = vlaneseq
    %v298 = vshrl.u32 %v297, 7
    %v299 = vsub.s32 1, %v298
    %v300 = vrot.slane %v57, %v299
    %v301 = vlaneseq
    %v302 = vshrl.u32 %v301, 7
    %v303 = vsub.s32 3, %v302
    %v304 = vrot.slane %v57, %v303
    %v307 = vlaneseq
    %v308 = vshrl.u32 %v307, 7
    %v309 = vsub.s32 1, %v308
    %v310 = vrot.slane %v300, %v309
    %v311 = vlaneseq
    %v312 = vshrl.u32 %v311, 7
    %v313 = vsub.s32 1, %v312
    %v314 = vrot.slane %v304, %v313
    %v315 = vmul.f32 %v235, %v310
    %v316 = vmul.f32 %v235, %v314
    %v317 = vmul.f32 %v239, %v310
    %v318 = vmul.f32 %v239, %v314
    %v319 = vmul.f32 %v243, %v310
    %v320 = vmul.f32 %v243, %v314
    %v321 = vmul.f32 %v247, %v310
    %v322 = vmul.f32 %v247, %v314
    %v323 = vmul.f32 %v251, %v310
    %v324 = vmul.f32 %v251, %v314
    %v325 = vmul.f32 %v255, %v310
    %v326 = vmul.f32 %v255, %v314
    %v327 = vmul.f32 %v259, %v310
    %v328 = vmul.f32 %v259, %v314
    %v329 = vmul.f32 %v263, %v310
    %v330 = vmul.f32 %v263, %v314
    %v331 = vmul.f32 %v267, %v310
    %v332 = vmul.f32 %v267, %v314
    %v333 = vmul.f32 %v271, %v310
    %v334 = vmul.f32 %v271, %v314
    %v335 = vmul.f32 %v275, %v310
    %v336 = vmul.f32 %v275, %v314
    %v337 = vmul.f32 %v279, %v310
    %v338 = vmul.f32 %v279, %v314
    %v339 = vmul.f32 %v283, %v310
    %v340 = vmul.f32 %v283, %v314
    %v341 = vmul.f32 %v287, %v310
    %v342 = vmul.f32 %v287, %v314
    %v343 = vmul.f32 %v291, %v310
    %v344 = vmul.f32 %v291, %v314
    %v345 = vmul.f32 %v295, %v310
    %v346 = vmul.f32 %v295, %v314
    %v347 = vadd.f32 %v201, %v315
    %v348 = vadd.f32 %v202, %v316
    %v349 = vadd.f32 %v203, %v317
    %v350 = vadd.f32 %v204, %v318
    %v351 = vadd.f32 %v205, %v319
    %v352 = vadd.f32 %v206, %v320
    %v353 = vadd.f32 %v207, %v321
    %v354 = vadd.f32 %v208, %v322
    %v355 = vadd.f32 %v209, %v323
    %v356 = vadd.f32 %v210, %v324
    %v357 = vadd.f32 %v211, %v325
    %v358 = vadd.f32 %v212, %v326
    %v359 = vadd.f32 %v213, %v327
    %v360 = vadd.f32 %v214, %v328
    %v361 = vadd.f32 %v215, %v329
    %v362 = vadd.f32 %v216, %v330
    %v363 = vadd.f32 %v217, %v331
    %v364 = vadd.f32 %v218, %v332
    %v365 = vadd.f32 %v219, %v333
    %v366 = vadd.f32 %v220, %v334
    %v367 = vadd.f32 %v221, %v335
    %v368 = vadd.f32 %v222, %v336
    %v369 = vadd.f32 %v223, %v337
    %v370 = vadd.f32 %v224, %v338
    %v371 = vadd.f32 %v225, %v339
    %v372 = vadd.f32 %v226, %v340
    %v373 = vadd.f32 %v227, %v341
    %v374 = vadd.f32 %v228, %v342
    %v375 = vadd.f32 %v229, %v343
    %v376 = vadd.f32 %v230, %v344
    %v377 = vadd.f32 %v231, %v345
    %v378 = vadd.f32 %v232, %v346
    %379 = vst [vmem:[#allocation2] sm:$0xff] %v347
    %380 = vst [vmem:[#allocation2 + $0x8] sm:$0xff] %v348
    %381 = vst [vmem:[#allocation2 + $0x10] sm:$0xff] %v349
    %382 = vst [vmem:[#allocation2 + $0x18] sm:$0xff] %v350
    %383 = vst [vmem:[#allocation2 + $0x20] sm:$0xff] %v351
    %384 = vst [vmem:[#allocation2 + $0x28] sm:$0xff] %v352
    %385 = vst [vmem:[#allocation2 + $0x30] sm:$0xff] %v353
    %386 = vst [vmem:[#allocation2 + $0x38] sm:$0xff] %v354
    %387 = vst [vmem:[#allocation2 + $0x40] sm:$0xff] %v355
    %388 = vst [vmem:[#allocation2 + $0x48] sm:$0xff] %v356
    %389 = vst [vmem:[#allocation2 + $0x50] sm:$0xff] %v357
    %390 = vst [vmem:[#allocation2 + $0x58] sm:$0xff] %v358
    %391 = vst [vmem:[#allocation2 + $0x60] sm:$0xff] %v359
    %392 = vst [vmem:[#allocation2 + $0x68] sm:$0xff] %v360
    %393 = vst [vmem:[#allocation2 + $0x70] sm:$0xff] %v361
    %394 = vst [vmem:[#allocation2 + $0x78] sm:$0xff] %v362
    %395 = vst [vmem:[#allocation2 + $0x80] sm:$0xff] %v363
    %396 = vst [vmem:[#allocation2 + $0x88] sm:$0xff] %v364
    %397 = vst [vmem:[#allocation2 + $0x90] sm:$0xff] %v365
    %398 = vst [vmem:[#allocation2 + $0x98] sm:$0xff] %v366
    %399 = vst [vmem:[#allocation2 + $0xa0] sm:$0xff] %v367
    %400 = vst [vmem:[#allocation2 + $0xa8] sm:$0xff] %v368
    %401 = vst [vmem:[#allocation2 + $0xb0] sm:$0xff] %v369
    %402 = vst [vmem:[#allocation2 + $0xb8] sm:$0xff] %v370
    %403 = vst [vmem:[#allocation2 + $0xc0] sm:$0xff] %v371
    %404 = vst [vmem:[#allocation2 + $0xc8] sm:$0xff] %v372
    %405 = vst [vmem:[#allocation2 + $0xd0] sm:$0xff] %v373
    %406 = vst [vmem:[#allocation2 + $0xd8] sm:$0xff] %v374
    %407 = vst [vmem:[#allocation2 + $0xe0] sm:$0xff] %v375
    %408 = vst [vmem:[#allocation2 + $0xe8] sm:$0xff] %v376
    %409 = vst [vmem:[#allocation2 + $0xf0] sm:$0xff] %v377
    %410 = vst [vmem:[#allocation2 + $0xf8] sm:$0xff] %v378
    %v411 = vld [vmem:[%s4] sm:$0x3]
    %v413 = vlaneseq
    %v414 = vshrl.u32 %v413, 7
    %v415 = vsub.s32 0, %v414
    %v416 = vrot.slane %v411, %v415
    %v417 = vlaneseq
    %v418 = vshrl.u32 %v417, 7
    %v419 = vsub.s32 1, %v418
    %v420 = vrot.slane %v411, %v419
    %v423 = vld [vmem:[#allocation3] sm:$0xff]
    %v424 = vld [vmem:[#allocation3 + $0x8] sm:$0xff]
    %v425 = vld [vmem:[#allocation3 + $0x10] sm:$0xff]
    %v426 = vld [vmem:[#allocation3 + $0x18] sm:$0xff]
    %v427 = vld [vmem:[#allocation3 + $0x20] sm:$0xff]
    %v428 = vld [vmem:[#allocation3 + $0x28] sm:$0xff]
    %v429 = vld [vmem:[#allocation3 + $0x30] sm:$0xff]
    %v430 = vld [vmem:[#allocation3 + $0x38] sm:$0xff]
    %v431 = vld [vmem:[#allocation3 + $0x40] sm:$0xff]
    %v432 = vld [vmem:[#allocation3 + $0x48] sm:$0xff]
    %v433 = vld [vmem:[#allocation3 + $0x50] sm:$0xff]
    %v434 = vld [vmem:[#allocation3 + $0x58] sm:$0xff]
    %v435 = vld [vmem:[#allocation3 + $0x60] sm:$0xff]
    %v436 = vld [vmem:[#allocation3 + $0x68] sm:$0xff]
    %v437 = vld [vmem:[#allocation3 + $0x70] sm:$0xff]
    %v438 = vld [vmem:[#allocation3 + $0x78] sm:$0xff]
    %v439 = vld [vmem:[#allocation3 + $0x80] sm:$0xff]
    %v440 = vld [vmem:[#allocation3 + $0x88] sm:$0xff]
    %v441 = vld [vmem:[#allocation3 + $0x90] sm:$0xff]
    %v442 = vld [vmem:[#allocation3 + $0x98] sm:$0xff]
    %v443 = vld [vmem:[#allocation3 + $0xa0] sm:$0xff]
    %v444 = vld [vmem:[#allocation3 + $0xa8] sm:$0xff]
    %v445 = vld [vmem:[#allocation3 + $0xb0] sm:$0xff]
    %v446 = vld [vmem:[#allocation3 + $0xb8] sm:$0xff]
    %v447 = vld [vmem:[#allocation3 + $0xc0] sm:$0xff]
    %v448 = vld [vmem:[#allocation3 + $0xc8] sm:$0xff]
    %v449 = vld [vmem:[#allocation3 + $0xd0] sm:$0xff]
    %v450 = vld [vmem:[#allocation3 + $0xd8] sm:$0xff]
    %v451 = vld [vmem:[#allocation3 + $0xe0] sm:$0xff]
    %v452 = vld [vmem:[#allocation3 + $0xe8] sm:$0xff]
    %v453 = vld [vmem:[#allocation3 + $0xf0] sm:$0xff]
    %v454 = vld [vmem:[#allocation3 + $0xf8] sm:$0xff]
    %v455 = vld [vmem:[#allocation3 + $0x100] sm:$0xff]
    %v456 = vld [vmem:[#allocation3 + $0x108] sm:$0xff]
    %v457 = vld [vmem:[#allocation3 + $0x110] sm:$0xff]
    %v458 = vld [vmem:[#allocation3 + $0x118] sm:$0xff]
    %v459 = vld [vmem:[#allocation3 + $0x120] sm:$0xff]
    %v460 = vld [vmem:[#allocation3 + $0x128] sm:$0xff]
    %v461 = vld [vmem:[#allocation3 + $0x130] sm:$0xff]
    %v462 = vld [vmem:[#allocation3 + $0x138] sm:$0xff]
    %v463 = vld [vmem:[#allocation3 + $0x140] sm:$0xff]
    %v464 = vld [vmem:[#allocation3 + $0x148] sm:$0xff]
    %v465 = vld [vmem:[#allocation3 + $0x150] sm:$0xff]
    %v466 = vld [vmem:[#allocation3 + $0x158] sm:$0xff]
    %v467 = vld [vmem:[#allocation3 + $0x160] sm:$0xff]
    %v468 = vld [vmem:[#allocation3 + $0x168] sm:$0xff]
    %v469 = vld [vmem:[#allocation3 + $0x170] sm:$0xff]
    %v470 = vld [vmem:[#allocation3 + $0x178] sm:$0xff]
    %v471 = vld [vmem:[#allocation3 + $0x180] sm:$0xff]
    %v472 = vld [vmem:[#allocation3 + $0x188] sm:$0xff]
    %v473 = vld [vmem:[#allocation3 + $0x190] sm:$0xff]
    %v474 = vld [vmem:[#allocation3 + $0x198] sm:$0xff]
    %v475 = vld [vmem:[#allocation3 + $0x1a0] sm:$0xff]
    %v476 = vld [vmem:[#allocation3 + $0x1a8] sm:$0xff]
    %v477 = vld [vmem:[#allocation3 + $0x1b0] sm:$0xff]
    %v478 = vld [vmem:[#allocation3 + $0x1b8] sm:$0xff]
    %v479 = vld [vmem:[#allocation3 + $0x1c0] sm:$0xff]
    %v480 = vld [vmem:[#allocation3 + $0x1c8] sm:$0xff]
    %v481 = vld [vmem:[#allocation3 + $0x1d0] sm:$0xff]
    %v482 = vld [vmem:[#allocation3 + $0x1d8] sm:$0xff]
    %v483 = vld [vmem:[#allocation3 + $0x1e0] sm:$0xff]
    %v484 = vld [vmem:[#allocation3 + $0x1e8] sm:$0xff]
    %v485 = vld [vmem:[#allocation3 + $0x1f0] sm:$0xff]
    %v486 = vld [vmem:[#allocation3 + $0x1f8] sm:$0xff]
    %v487 = vld [vmem:[#allocation2] sm:$0xff]
    %v488 = vld [vmem:[#allocation2 + $0x8] sm:$0xff]
    %v489 = vmul.f32 %v487, 0.5
    %v490 = vmul.f32 %v488, 0.5
    %v491 = vtanh.pop %v489
    %v492 = vtanh.pop %v490
    %v493 = vmul.f32 %v491, 0.5
    %v494 = vmul.f32 %v492, 0.5
    %v495 = vadd.f32 %v493, 0.5
    %v496 = vadd.f32 %v494, 0.5
    %v497 = vtanh.pop %v488
    %v498 = vmul.f32 %v495, 0.0
    %500 = vrot.lane.b32.xlu0 %v497, 64
    %v501 = vpop.permute.xlu0 %500
    %v503 = vmul.f32 %v495, %v501
    %505 = vrot.lane.b32.xlu0 %v503, 64
    %v506 = vpop.permute.xlu0 %505
    %v508 = vadd.f32 %v498, %v506
    %v509 = vtanh.pop %v508
    %511 = vrot.lane.b32.xlu0 %v509, 64
    %v512 = vpop.permute.xlu0 %511
    %v514 = vmul.f32 %v496, %v512
    %vm515 = vcmask 523264
    %v516 = vsel %vm515, %v514, 0.0
    %517 = vmatprep.subr.mxu0 %v424
    %518 = vmatpush1.msra.mxu0 %v423
    %519 = vmatprep.subr.mxu0 %v428
    %520 = vmatpush1.msra.mxu0 %v427
    %521 = vmatprep.subr.mxu0 %v432
    %522 = vmatpush1.msra.mxu0 %v431
    %523 = vmatprep.subr.mxu0 %v436
    %524 = vmatpush1.msra.mxu0 %v435
    %525 = vmatprep.subr.mxu0 %v440
    %526 = vmatpush1.msra.mxu0 %v439
    %527 = vmatprep.subr.mxu0 %v444
    %528 = vmatpush1.msra.mxu0 %v443
    %529 = vmatprep.subr.mxu0 %v448
    %530 = vmatpush1.msra.mxu0 %v447
    %531 = vmatprep.subr.mxu0 %v452
    %532 = vmatpush1.msra.mxu0 %v451
    %533 = vmatprep.subr.mxu0 %v456
    %534 = vmatpush1.msra.mxu0 %v455
    %535 = vmatprep.subr.mxu0 %v460
    %536 = vmatpush1.msra.mxu0 %v459
    %537 = vmatprep.subr.mxu0 %v464
    %538 = vmatpush1.msra.mxu0 %v463
    %539 = vmatprep.subr.mxu0 %v468
    %540 = vmatpush1.msra.mxu0 %v467
    %541 = vmatprep.subr.mxu0 %v472
    %542 = vmatpush1.msra.mxu0 %v471
    %543 = vmatprep.subr.mxu0 %v476
    %544 = vmatpush1.msra.mxu0 %v475
    %545 = vmatprep.subr.mxu0 %v480
    %546 = vmatpush1.msra.mxu0 %v479
    %547 = vmatprep.subr.mxu0 %v484
    %548 = vmatpush1.msra.mxu0 %v483
    %549 = vmatprep.subr.mxu0 0.0
    %550 = vmatpush1.msra.mxu0 0.0
    %551 = vmatprep.subr.mxu0 0.0
    %552 = vmatpush1.msra.mxu0 0.0
    %553 = vmatprep.subr.mxu0 0.0
    %554 = vmatpush1.msra.mxu0 0.0
    %555 = vmatprep.subr.mxu0 0.0
    %556 = vmatpush1.msra.mxu0 0.0
    %557 = vmatprep.subr.mxu0 0.0
    %558 = vmatpush1.msra.mxu0 0.0
    %559 = vmatprep.subr.mxu0 0.0
    %560 = vmatpush1.msra.mxu0 0.0
    %561 = vmatprep.subr.mxu0 0.0
    %562 = vmatpush1.msra.mxu0 0.0
    %563 = vmatprep.subr.mxu0 0.0
    %564 = vmatpush1.msra.mxu0 0.0
    %565 = vmatprep.subr.mxu0 0.0
    %566 = vmatpush1.msra.mxu0 0.0
    %567 = vmatprep.subr.mxu0 0.0
    %568 = vmatpush1.msra.mxu0 0.0
    %569 = vmatprep.subr.mxu0 0.0
    %570 = vmatpush1.msra.mxu0 0.0
    %571 = vmatprep.subr.mxu0 0.0
    %572 = vmatpush1.msra.mxu0 0.0
    %573 = vmatprep.subr.mxu0 0.0
    %574 = vmatpush1.msra.mxu0 0.0
    %575 = vmatprep.subr.mxu0 0.0
    %576 = vmatpush1.msra.mxu0 0.0
    %577 = vmatprep.subr.mxu0 0.0
    %578 = vmatpush1.msra.mxu0 0.0
    %579 = vmatprep.subr.mxu0 0.0
    %580 = vmatpush1.msra.mxu0 0.0
    %581 = vmatprep.mubr.f32.mxu0 0.0
    %582 = vmatmul.mubr.f32.gmra.mrb[0].mxu0 %v516
    %v583 = vpop.f32.mrb[0].mxu0
    %v584 = vadd.f32 0.0, %v583
    %v585 = vpop.f32.mrb[0].mxu0
    %v586 = vadd.f32 0.0, %v585
    %587 = vdwg.mxu0
    %588 = vmatprep.subr.mxu0 %v426
    %589 = vmatpush1.msra.mxu0 %v425
    %590 = vmatprep.subr.mxu0 %v430
    %591 = vmatpush1.msra.mxu0 %v429
    %592 = vmatprep.subr.mxu0 %v434
    %593 = vmatpush1.msra.mxu0 %v433
    %594 = vmatprep.subr.mxu0 %v438
    %595 = vmatpush1.msra.mxu0 %v437
    %596 = vmatprep.subr.mxu0 %v442
    %597 = vmatpush1.msra.mxu0 %v441
    %598 = vmatprep.subr.mxu0 %v446
    %599 = vmatpush1.msra.mxu0 %v445
    %600 = vmatprep.subr.mxu0 %v450
    %601 = vmatpush1.msra.mxu0 %v449
    %602 = vmatprep.subr.mxu0 %v454
    %603 = vmatpush1.msra.mxu0 %v453
    %604 = vmatprep.subr.mxu0 %v458
    %605 = vmatpush1.msra.mxu0 %v457
    %606 = vmatprep.subr.mxu0 %v462
    %607 = vmatpush1.msra.mxu0 %v461
    %608 = vmatprep.subr.mxu0 %v466
    %609 = vmatpush1.msra.mxu0 %v465
    %610 = vmatprep.subr.mxu0 %v470
    %611 = vmatpush1.msra.mxu0 %v469
    %612 = vmatprep.subr.mxu0 %v474
    %613 = vmatpush1.msra.mxu0 %v473
    %614 = vmatprep.subr.mxu0 %v478
    %615 = vmatpush1.msra.mxu0 %v477
    %616 = vmatprep.subr.mxu0 %v482
    %617 = vmatpush1.msra.mxu0 %v481
    %618 = vmatprep.subr.mxu0 %v486
    %619 = vmatpush1.msra.mxu0 %v485
    %620 = vmatprep.subr.mxu0 0.0
    %621 = vmatpush1.msra.mxu0 0.0
    %622 = vmatprep.subr.mxu0 0.0
    %623 = vmatpush1.msra.mxu0 0.0
    %624 = vmatprep.subr.mxu0 0.0
    %625 = vmatpush1.msra.mxu0 0.0
    %626 = vmatprep.subr.mxu0 0.0
    %627 = vmatpush1.msra.mxu0 0.0
    %628 = vmatprep.subr.mxu0 0.0
    %629 = vmatpush1.msra.mxu0 0.0
    %630 = vmatprep.subr.mxu0 0.0
    %631 = vmatpush1.msra.mxu0 0.0
    %632 = vmatprep.subr.mxu0 0.0
    %633 = vmatpush1.msra.mxu0 0.0
    %634 = vmatprep.subr.mxu0 0.0
    %635 = vmatpush1.msra.mxu0 0.0
    %636 = vmatprep.subr.mxu0 0.0
    %637 = vmatpush1.msra.mxu0 0.0
    %638 = vmatprep.subr.mxu0 0.0
    %639 = vmatpush1.msra.mxu0 0.0
    %640 = vmatprep.subr.mxu0 0.0
    %641 = vmatpush1.msra.mxu0 0.0
    %642 = vmatprep.subr.mxu0 0.0
    %643 = vmatpush1.msra.mxu0 0.0
    %644 = vmatprep.subr.mxu0 0.0
    %645 = vmatpush1.msra.mxu0 0.0
    %646 = vmatprep.subr.mxu0 0.0
    %647 = vmatpush1.msra.mxu0 0.0
    %648 = vmatprep.subr.mxu0 0.0
    %649 = vmatpush1.msra.mxu0 0.0
    %650 = vmatprep.subr.mxu0 0.0
    %651 = vmatpush1.msra.mxu0 0.0
    %652 = vmatprep.mubr.f32.mxu0 0.0
    %653 = vmatmul.mubr.f32.gmra.mrb[0].mxu0 %v516
    %v654 = vpop.f32.mrb[0].mxu0
    %v655 = vadd.f32 0.0, %v654
    %v656 = vpop.f32.mrb[0].mxu0
    %v657 = vadd.f32 0.0, %v656
    %658 = vdwg.mxu0
    %v659 = vadd.f32 %v655, %v416
    %v660 = vadd.f32 %v657, %v420
    %v661 = vmul.f32 %v659, 0.5
    %v662 = vmul.f32 %v660, 0.5
    %v663 = vtanh.pop %v661
    %v664 = vtanh.pop %v662
    %v665 = vmul.f32 %v663, 0.5
    %v666 = vmul.f32 %v664, 0.5
    %v667 = vadd.f32 %v665, 0.5
    %v668 = vadd.f32 %v666, 0.5
    %v669 = vtanh.pop %v660
    %v670 = vmul.f32 %v667, 0.0
    %672 = vrot.lane.b32.xlu0 %v669, 64
    %v673 = vpop.permute.xlu0 %672
    %v675 = vmul.f32 %v667, %v673
    %677 = vrot.lane.b32.xlu0 %v675, 64
    %v678 = vpop.permute.xlu0 %677
    %v680 = vadd.f32 %v670, %v678
    %v681 = vtanh.pop %v680
    %683 = vrot.lane.b32.xlu0 %v681, 64
    %v684 = vpop.permute.xlu0 %683
    %v686 = vmul.f32 %v668, %v684
    %v687 = vld [vmem:[#allocation2 + $0x10] sm:$0xff]
    %v688 = vld [vmem:[#allocation2 + $0x18] sm:$0xff]
    %v689 = vadd.f32 %v687, %v584
    %v690 = vadd.f32 %v688, %v586
    %v691 = vmul.f32 %v689, 0.5
    %v692 = vmul.f32 %v690, 0.5
    %v693 = vtanh.pop %v691
    %v694 = vtanh.pop %v692
    %v695 = vmul.f32 %v693, 0.5
    %v696 = vmul.f32 %v694, 0.5
    %v697 = vadd.f32 %v695, 0.5
    %v698 = vadd.f32 %v696, 0.5
    %v699 = vtanh.pop %v690
    %v700 = vmul.f32 %v697, %v508
    %702 = vrot.lane.b32.xlu0 %v699, 64
    %v703 = vpop.permute.xlu0 %702
    %v705 = vmul.f32 %v697, %v703
    %707 = vrot.lane.b32.xlu0 %v705, 64
    %v708 = vpop.permute.xlu0 %707
    %v710 = vadd.f32 %v700, %v708
    %v711 = vtanh.pop %v710
    %713 = vrot.lane.b32.xlu0 %v711, 64
    %v714 = vpop.permute.xlu0 %713
    %v716 = vmul.f32 %v698, %v714
    %718 = vrot.lane.b32.xlu0 %v686, 64
    %v719 = vpop.permute.xlu0 %718
    %v721 = vsel %vm515, %v716, %v719
    %722 = vmatprep.subr.mxu0 %v424
    %723 = vmatpush1.msra.mxu0 %v423
    %724 = vmatprep.subr.mxu0 %v428
    %725 = vmatpush1.msra.mxu0 %v427
    %726 = vmatprep.subr.mxu0 %v432
    %727 = vmatpush1.msra.mxu0 %v431
    %728 = vmatprep.subr.mxu0 %v436
    %729 = vmatpush1.msra.mxu0 %v435
    %730 = vmatprep.subr.mxu0 %v440
    %731 = vmatpush1.msra.mxu0 %v439
    %732 = vmatprep.subr.mxu0 %v444
    %733 = vmatpush1.msra.mxu0 %v443
    %734 = vmatprep.subr.mxu0 %v448
    %735 = vmatpush1.msra.mxu0 %v447
    %736 = vmatprep.subr.mxu0 %v452
    %737 = vmatpush1.msra.mxu0 %v451
    %738 = vmatprep.subr.mxu0 %v456
    %739 = vmatpush1.msra.mxu0 %v455
    %740 = vmatprep.subr.mxu0 %v460
    %741 = vmatpush1.msra.mxu0 %v459
    %742 = vmatprep.subr.mxu0 %v464
    %743 = vmatpush1.msra.mxu0 %v463
    %744 = vmatprep.subr.mxu0 %v468
    %745 = vmatpush1.msra.mxu0 %v467
    %746 = vmatprep.subr.mxu0 %v472
    %747 = vmatpush1.msra.mxu0 %v471
    %748 = vmatprep.subr.mxu0 %v476
    %749 = vmatpush1.msra.mxu0 %v475
    %750 = vmatprep.subr.mxu0 %v480
    %751 = vmatpush1.msra.mxu0 %v479
    %752 = vmatprep.subr.mxu0 %v484
    %753 = vmatpush1.msra.mxu0 %v483
    %754 = vmatprep.subr.mxu0 0.0
    %755 = vmatpush1.msra.mxu0 0.0
    %756 = vmatprep.subr.mxu0 0.0
    %757 = vmatpush1.msra.mxu0 0.0
    %758 = vmatprep.subr.mxu0 0.0
    %759 = vmatpush1.msra.mxu0 0.0
    %760 = vmatprep.subr.mxu0 0.0
    %761 = vmatpush1.msra.mxu0 0.0
    %762 = vmatprep.subr.mxu0 0.0
    %763 = vmatpush1.msra.mxu0 0.0
    %764 = vmatprep.subr.mxu0 0.0
    %765 = vmatpush1.msra.mxu0 0.0
    %766 = vmatprep.subr.mxu0 0.0
    %767 = vmatpush1.msra.mxu0 0.0
    %768 = vmatprep.subr.mxu0 0.0
    %769 = vmatpush1.msra.mxu0 0.0
    %770 = vmatprep.subr.mxu0 0.0
    %771 = vmatpush1.msra.mxu0 0.0
    %772 = vmatprep.subr.mxu0 0.0
    %773 = vmatpush1.msra.mxu0 0.0
    %774 = vmatprep.subr.mxu0 0.0
    %775 = vmatpush1.msra.mxu0 0.0
    %776 = vmatprep.subr.mxu0 0.0
    %777 = vmatpush1.msra.mxu0 0.0
    %778 = vmatprep.subr.mxu0 0.0
    %779 = vmatpush1.msra.mxu0 0.0
    %780 = vmatprep.subr.mxu0 0.0
    %781 = vmatpush1.msra.mxu0 0.0
    %782 = vmatprep.subr.mxu0 0.0
    %783 = vmatpush1.msra.mxu0 0.0
    %784 = vmatprep.subr.mxu0 0.0
    %785 = vmatpush1.msra.mxu0 0.0
    %786 = vmatprep.mubr.f32.mxu0 0.0
    %787 = vmatmul.mubr.f32.gmra.mrb[0].mxu0 %v721
    %v788 = vpop.f32.mrb[0].mxu0
    %v789 = vadd.f32 0.0, %v788
    %v790 = vpop.f32.mrb[0].mxu0
    %v791 = vadd.f32 0.0, %v790
    %792 = vdwg.mxu0
    %793 = vmatprep.subr.mxu0 %v426
    %794 = vmatpush1.msra.mxu0 %v425
    %795 = vmatprep.subr.mxu0 %v430
    %796 = vmatpush1.msra.mxu0 %v429
    %797 = vmatprep.subr.mxu0 %v434
    %798 = vmatpush1.msra.mxu0 %v433
    %799 = vmatprep.subr.mxu0 %v438
    %800 = vmatpush1.msra.mxu0 %v437
    %801 = vmatprep.subr.mxu0 %v442
    %802 = vmatpush1.msra.mxu0 %v441
    %803 = vmatprep.subr.mxu0 %v446
    %804 = vmatpush1.msra.mxu0 %v445
    %805 = vmatprep.subr.mxu0 %v450
    %806 = vmatpush1.msra.mxu0 %v449
    %807 = vmatprep.subr.mxu0 %v454
    %808 = vmatpush1.msra.mxu0 %v453
    %809 = vmatprep.subr.mxu0 %v458
    %810 = vmatpush1.msra.mxu0 %v457
    %811 = vmatprep.subr.mxu0 %v462
    %812 = vmatpush1.msra.mxu0 %v461
    %813 = vmatprep.subr.mxu0 %v466
    %814 = vmatpush1.msra.mxu0 %v465
    %815 = vmatprep.subr.mxu0 %v470
    %816 = vmatpush1.msra.mxu0 %v469
    %817 = vmatprep.subr.mxu0 %v474
    %818 = vmatpush1.msra.mxu0 %v473
    %819 = vmatprep.subr.mxu0 %v478
    %820 = vmatpush1.msra.mxu0 %v477
    %821 = vmatprep.subr.mxu0 %v482
    %822 = vmatpush1.msra.mxu0 %v481
    %823 = vmatprep.subr.mxu0 %v486
    %824 = vmatpush1.msra.mxu0 %v485
    %825 = vmatprep.subr.mxu0 0.0
    %826 = vmatpush1.msra.mxu0 0.0
    %827 = vmatprep.subr.mxu0 0.0
    %828 = vmatpush1.msra.mxu0 0.0
    %829 = vmatprep.subr.mxu0 0.0
    %830 = vmatpush1.msra.mxu0 0.0
    %831 = vmatprep.subr.mxu0 0.0
    %832 = vmatpush1.msra.mxu0 0.0
    %833 = vmatprep.subr.mxu0 0.0
    %834 = vmatpush1.msra.mxu0 0.0
    %835 = vmatprep.subr.mxu0 0.0
    %836 = vmatpush1.msra.mxu0 0.0
    %837 = vmatprep.subr.mxu0 0.0
    %838 = vmatpush1.msra.mxu0 0.0
    %839 = vmatprep.subr.mxu0 0.0
    %840 = vmatpush1.msra.mxu0 0.0
    %841 = vmatprep.subr.mxu0 0.0
    %842 = vmatpush1.msra.mxu0 0.0
    %843 = vmatprep.subr.mxu0 0.0
    %844 = vmatpush1.msra.mxu0 0.0
    %845 = vmatprep.subr.mxu0 0.0
    %846 = vmatpush1.msra.mxu0 0.0
    %847 = vmatprep.subr.mxu0 0.0
    %848 = vmatpush1.msra.mxu0 0.0
    %849 = vmatprep.subr.mxu0 0.0
    %850 = vmatpush1.msra.mxu0 0.0
    %851 = vmatprep.subr.mxu0 0.0
    %852 = vmatpush1.msra.mxu0 0.0
    %853 = vmatprep.subr.mxu0 0.0
    %854 = vmatpush1.msra.mxu0 0.0
    %855 = vmatprep.subr.mxu0 0.0
    %856 = vmatpush1.msra.mxu0 0.0
    %857 = vmatprep.mubr.f32.mxu0 0.0
    %858 = vmatmul.mubr.f32.gmra.mrb[0].mxu0 %v721
    %v859 = vpop.f32.mrb[0].mxu0
    %v860 = vadd.f32 0.0, %v859
    %v861 = vpop.f32.mrb[0].mxu0
    %v862 = vadd.f32 0.0, %v861
    %863 = vdwg.mxu0
    %v864 = vadd.f32 %v860, %v416
    %v865 = vadd.f32 %v862, %v420
    %v866 = vmul.f32 %v864, 0.5
    %v867 = vmul.f32 %v865, 0.5
    %v868 = vtanh.pop %v866
    %v869 = vtanh.pop %v867
    %v870 = vmul.f32 %v868, 0.5
    %v871 = vmul.f32 %v869, 0.5
    %v872 = vadd.f32 %v870, 0.5
    %v873 = vadd.f32 %v871, 0.5
    %v874 = vtanh.pop %v865
    %v875 = vmul.f32 %v872, %v680
    %877 = vrot.lane.b32.xlu0 %v874, 64
    %v878 = vpop.permute.xlu0 %877
    %v880 = vmul.f32 %v872, %v878
    %882 = vrot.lane.b32.xlu0 %v880, 64
    %v883 = vpop.permute.xlu0 %882
    %v885 = vadd.f32 %v875, %v883
    %v886 = vtanh.pop %v885
    %888 = vrot.lane.b32.xlu0 %v886, 64
    %v889 = vpop.permute.xlu0 %888
    %v891 = vmul.f32 %v873, %v889
    %v892 = vld [vmem:[#allocation2 + $0x20] sm:$0xff]
    %v893 = vld [vmem:[#allocation2 + $0x28] sm:$0xff]
    %v894 = vadd.f32 %v892, %v789
    %v895 = vadd.f32 %v893, %v791
    %v896 = vmul.f32 %v894, 0.5
    %v897 = vmul.f32 %v895, 0.5
    %v898 = vtanh.pop %v896
    %v899 = vtanh.pop %v897
    %v900 = vmul.f32 %v898, 0.5
    %v901 = vmul.f32 %v899, 0.5
    %v902 = vadd.f32 %v900, 0.5
    %v903 = vadd.f32 %v901, 0.5
    %v904 = vtanh.pop %v895
    %v905 = vmul.f32 %v902, %v710
    %907 = vrot.lane.b32.xlu0 %v904, 64
    %v908 = vpop.permute.xlu0 %907
    %v910 = vmul.f32 %v902, %v908
    %912 = vrot.lane.b32.xlu0 %v910, 64
    %v913 = vpop.permute.xlu0 %912
    %v915 = vadd.f32 %v905, %v913
    %v916 = vtanh.pop %v915
    %918 = vrot.lane.b32.xlu0 %v916, 64
    %v919 = vpop.permute.xlu0 %918
    %v921 = vmul.f32 %v903, %v919
    %923 = vrot.lane.b32.xlu0 %v891, 64
    %v924 = vpop.permute.xlu0 %923
    %v926 = vsel %vm515, %v921, %v924
    %927 = vmatprep.subr.mxu0 %v424
    %928 = vmatpush1.msra.mxu0 %v423
    %929 = vmatprep.subr.mxu0 %v428
    %930 = vmatpush1.msra.mxu0 %v427
    %931 = vmatprep.subr.mxu0 %v432
    %932 = vmatpush1.msra.mxu0 %v431
    %933 = vmatprep.subr.mxu0 %v436
    %934 = vmatpush1.msra.mxu0 %v435
    %935 = vmatprep.subr.mxu0 %v440
    %936 = vmatpush1.msra.mxu0 %v439
    %937 = vmatprep.subr.mxu0 %v444
    %938 = vmatpush1.msra.mxu0 %v443
    %939 = vmatprep.subr.mxu0 %v448
    %940 = vmatpush1.msra.mxu0 %v447
    %941 = vmatprep.subr.mxu0 %v452
    %942 = vmatpush1.msra.mxu0 %v451
    %943 = vmatprep.subr.mxu0 %v456
    %944 = vmatpush1.msra.mxu0 %v455
    %945 = vmatprep.subr.mxu0 %v460
    %946 = vmatpush1.msra.mxu0 %v459
    %947 = vmatprep.subr.mxu0 %v464
    %948 = vmatpush1.msra.mxu0 %v463
    %949 = vmatprep.subr.mxu0 %v468
    %950 = vmatpush1.msra.mxu0 %v467
    %951 = vmatprep.subr.mxu0 %v472
    %952 = vmatpush1.msra.mxu0 %v471
    %953 = vmatprep.subr.mxu0 %v476
    %954 = vmatpush1.msra.mxu0 %v475
    %955 = vmatprep.subr.mxu0 %v480
    %956 = vmatpush1.msra.mxu0 %v479
    %957 = vmatprep.subr.mxu0 %v484
    %958 = vmatpush1.msra.mxu0 %v483
    %959 = vmatprep.subr.mxu0 0.0
    %960 = vmatpush1.msra.mxu0 0.0
    %961 = vmatprep.subr.mxu0 0.0
    %962 = vmatpush1.msra.mxu0 0.0
    %963 = vmatprep.subr.mxu0 0.0
    %964 = vmatpush1.msra.mxu0 0.0
    %965 = vmatprep.subr.mxu0 0.0
    %966 = vmatpush1.msra.mxu0 0.0
    %967 = vmatprep.subr.mxu0 0.0
    %968 = vmatpush1.msra.mxu0 0.0
    %969 = vmatprep.subr.mxu0 0.0
    %970 = vmatpush1.msra.mxu0 0.0
    %971 = vmatprep.subr.mxu0 0.0
    %972 = vmatpush1.msra.mxu0 0.0
    %973 = vmatprep.subr.mxu0 0.0
    %974 = vmatpush1.msra.mxu0 0.0
    %975 = vmatprep.subr.mxu0 0.0
    %976 = vmatpush1.msra.mxu0 0.0
    %977 = vmatprep.subr.mxu0 0.0
    %978 = vmatpush1.msra.mxu0 0.0
    %979 = vmatprep.subr.mxu0 0.0
    %980 = vmatpush1.msra.mxu0 0.0
    %981 = vmatprep.subr.mxu0 0.0
    %982 = vmatpush1.msra.mxu0 0.0
    %983 = vmatprep.subr.mxu0 0.0
    %984 = vmatpush1.msra.mxu0 0.0
    %985 = vmatprep.subr.mxu0 0.0
    %986 = vmatpush1.msra.mxu0 0.0
    %987 = vmatprep.subr.mxu0 0.0
    %988 = vmatpush1.msra.mxu0 0.0
    %989 = vmatprep.subr.mxu0 0.0
    %990 = vmatpush1.msra.mxu0 0.0
    %991 = vmatprep.mubr.f32.mxu0 0.0
    %992 = vmatmul.mubr.f32.gmra.mrb[0].mxu0 %v926
    %v993 = vpop.f32.mrb[0].mxu0
    %v994 = vadd.f32 0.0, %v993
    %v995 = vpop.f32.mrb[0].mxu0
    %v996 = vadd.f32 0.0, %v995
    %997 = vdwg.mxu0
    %998 = vmatprep.subr.mxu0 %v426
    %999 = vmatpush1.msra.mxu0 %v425
    %1000 = vmatprep.subr.mxu0 %v430
    %1001 = vmatpush1.msra.mxu0 %v429
    %1002 = vmatprep.subr.mxu0 %v434
    %1003 = vmatpush1.msra.mxu0 %v433
    %1004 = vmatprep.subr.mxu0 %v438
    %1005 = vmatpush1.msra.mxu0 %v437
    %1006 = vmatprep.subr.mxu0 %v442
    %1007 = vmatpush1.msra.mxu0 %v441
    %1008 = vmatprep.subr.mxu0 %v446
    %1009 = vmatpush1.msra.mxu0 %v445
    %1010 = vmatprep.subr.mxu0 %v450
    %1011 = vmatpush1.msra.mxu0 %v449
    %1012 = vmatprep.subr.mxu0 %v454
    %1013 = vmatpush1.msra.mxu0 %v453
    %1014 = vmatprep.subr.mxu0 %v458
    %1015 = vmatpush1.msra.mxu0 %v457
    %1016 = vmatprep.subr.mxu0 %v462
    %1017 = vmatpush1.msra.mxu0 %v461
    %1018 = vmatprep.subr.mxu0 %v466
    %1019 = vmatpush1.msra.mxu0 %v465
    %1020 = vmatprep.subr.mxu0 %v470
    %1021 = vmatpush1.msra.mxu0 %v469
    %1022 = vmatprep.subr.mxu0 %v474
    %1023 = vmatpush1.msra.mxu0 %v473
    %1024 = vmatprep.subr.mxu0 %v478
    %1025 = vmatpush1.msra.mxu0 %v477
    %1026 = vmatprep.subr.mxu0 %v482
    %1027 = vmatpush1.msra.mxu0 %v481
    %1028 = vmatprep.subr.mxu0 %v486
    %1029 = vmatpush1.msra.mxu0 %v485
    %1030 = vmatprep.subr.mxu0 0.0
    %1031 = vmatpush1.msra.mxu0 0.0
    %1032 = vmatprep.subr.mxu0 0.0
    %1033 = vmatpush1.msra.mxu0 0.0
    %1034 = vmatprep.subr.mxu0 0.0
    %1035 = vmatpush1.msra.mxu0 0.0
    %1036 = vmatprep.subr.mxu0 0.0
    %1037 = vmatpush1.msra.mxu0 0.0
    %1038 = vmatprep.subr.mxu0 0.0
    %1039 = vmatpush1.msra.mxu0 0.0
    %1040 = vmatprep.subr.mxu0 0.0
    %1041 = vmatpush1.msra.mxu0 0.0
    %1042 = vmatprep.subr.mxu0 0.0
    %1043 = vmatpush1.msra.mxu0 0.0
    %1044 = vmatprep.subr.mxu0 0.0
    %1045 = vmatpush1.msra.mxu0 0.0
    %1046 = vmatprep.subr.mxu0 0.0
    %1047 = vmatpush1.msra.mxu0 0.0
    %1048 = vmatprep.subr.mxu0 0.0
    %1049 = vmatpush1.msra.mxu0 0.0
    %1050 = vmatprep.subr.mxu0 0.0
    %1051 = vmatpush1.msra.mxu0 0.0
    %1052 = vmatprep.subr.mxu0 0.0
    %1053 = vmatpush1.msra.mxu0 0.0
    %1054 = vmatprep.subr.mxu0 0.0
    %1055 = vmatpush1.msra.mxu0 0.0
    %1056 = vmatprep.subr.mxu0 0.0
    %1057 = vmatpush1.msra.mxu0 0.0
    %1058 = vmatprep.subr.mxu0 0.0
    %1059 = vmatpush1.msra.mxu0 0.0
    %1060 = vmatprep.subr.mxu0 0.0
    %1061 = vmatpush1.msra.mxu0 0.0
    %1062 = vmatprep.mubr.f32.mxu0 0.0
    %1063 = vmatmul.mubr.f32.gmra.mrb[0].mxu0 %v926
    %v1064 = vpop.f32.mrb[0].mxu0
    %v1065 = vadd.f32 0.0, %v1064
    %v1066 = vpop.f32.mrb[0].mxu0
    %v1067 = vadd.f32 0.0, %v1066
    %1068 = vdwg.mxu0
    %v1069 = vadd.f32 %v1065, %v416
    %v1070 = vadd.f32 %v1067, %v420
    %v1071 = vmul.f32 %v1069, 0.5
    %v1072 = vmul.f32 %v1070, 0.5
    %v1073 = vtanh.pop %v1071
    %v1074 = vtanh.pop %v1072
    %v1075 = vmul.f32 %v1073, 0.5
    %v1076 = vmul.f32 %v1074, 0.5
    %v1077 = vadd.f32 %v1075, 0.5
    %v1078 = vadd.f32 %v1076, 0.5
    %v1079 = vtanh.pop %v1070
    %v1080 = vmul.f32 %v1077, %v885
    %1082 = vrot.lane.b32.xlu0 %v1079, 64
    %v1083 = vpop.permute.xlu0 %1082
    %v1085 = vmul.f32 %v1077, %v1083
    %1087 = vrot.lane.b32.xlu0 %v1085, 64
    %v1088 = vpop.permute.xlu0 %1087
    %v1090 = vadd.f32 %v1080, %v1088
    %v1091 = vtanh.pop %v1090
    %1093 = vrot.lane.b32.xlu0 %v1091, 64
    %v1094 = vpop.permute.xlu0 %1093
    %v1096 = vmul.f32 %v1078, %v1094
    %v1097 = vld [vmem:[#allocation2 + $0x30] sm:$0xff]
    %v1098 = vld [vmem:[#allocation2 + $0x38] sm:$0xff]
    %v1099 = vadd.f32 %v1097, %v994
    %v1100 = vadd.f32 %v1098, %v996
    %v1101 = vmul.f32 %v1099, 0.5
    %v1102 = vmul.f32 %v1100, 0.5
    %v1103 = vtanh.pop %v1101
    %v1104 = vtanh.pop %v1102
    %v1105 = vmul.f32 %v1103, 0.5
    %v1106 = vmul.f32 %v1104, 0.5
    %v1107 = vadd.f32 %v1105, 0.5
    %v1108 = vadd.f32 %v1106, 0.5
    %v1109 = vtanh.pop %v1100
    %v1110 = vmul.f32 %v1107, %v915
    %1112 = vrot.lane.b32.xlu0 %v1109, 64
    %v1113 = vpop.permute.xlu0 %1112
    %v1115 = vmul.f32 %v1107, %v1113
    %1117 = vrot.lane.b32.xlu0 %v1115, 64
    %v1118 = vpop.permute.xlu0 %1117
    %v1120 = vadd.f32 %v1110, %v1118
    %v1121 = vtanh.pop %v1120
    %1123 = vrot.lane.b32.xlu0 %v1121, 64
    %v1124 = vpop.permute.xlu0 %1123
    %v1126 = vmul.f32 %v1108, %v1124
    %1128 = vrot.lane.b32.xlu0 %v1096, 64
    %v1129 = vpop.permute.xlu0 %1128
    %v1131 = vsel %vm515, %v1126, %v1129
    %1132 = vmatprep.subr.mxu0 %v424
    %1133 = vmatpush1.msra.mxu0 %v423
    %1134 = vmatprep.subr.mxu0 %v428
    %1135 = vmatpush1.msra.mxu0 %v427
    %1136 = vmatprep.subr.mxu0 %v432
    %1137 = vmatpush1.msra.mxu0 %v431
    %1138 = vmatprep.subr.mxu0 %v436
    %1139 = vmatpush1.msra.mxu0 %v435
    %1140 = vmatprep.subr.mxu0 %v440
    %1141 = vmatpush1.msra.mxu0 %v439
    %1142 = vmatprep.subr.mxu0 %v444
    %1143 = vmatpush1.msra.mxu0 %v443
    %1144 = vmatprep.subr.mxu0 %v448
    %1145 = vmatpush1.msra.mxu0 %v447
    %1146 = vmatprep.subr.mxu0 %v452
    %1147 = vmatpush1.msra.mxu0 %v451
    %1148 = vmatprep.subr.mxu0 %v456
    %1149 = vmatpush1.msra.mxu0 %v455
    %1150 = vmatprep.subr.mxu0 %v460
    %1151 = vmatpush1.msra.mxu0 %v459
    %1152 = vmatprep.subr.mxu0 %v464
    %1153 = vmatpush1.msra.mxu0 %v463
    %1154 = vmatprep.subr.mxu0 %v468
    %1155 = vmatpush1.msra.mxu0 %v467
    %1156 = vmatprep.subr.mxu0 %v472
    %1157 = vmatpush1.msra.mxu0 %v471
    %1158 = vmatprep.subr.mxu0 %v476
    %1159 = vmatpush1.msra.mxu0 %v475
    %1160 = vmatprep.subr.mxu0 %v480
    %1161 = vmatpush1.msra.mxu0 %v479
    %1162 = vmatprep.subr.mxu0 %v484
    %1163 = vmatpush1.msra.mxu0 %v483
    %1164 = vmatprep.subr.mxu0 0.0
    %1165 = vmatpush1.msra.mxu0 0.0
    %1166 = vmatprep.subr.mxu0 0.0
    %1167 = vmatpush1.msra.mxu0 0.0
    %1168 = vmatprep.subr.mxu0 0.0
    %1169 = vmatpush1.msra.mxu0 0.0
    %1170 = vmatprep.subr.mxu0 0.0
    %1171 = vmatpush1.msra.mxu0 0.0
    %1172 = vmatprep.subr.mxu0 0.0
    %1173 = vmatpush1.msra.mxu0 0.0
    %1174 = vmatprep.subr.mxu0 0.0
    %1175 = vmatpush1.msra.mxu0 0.0
    %1176 = vmatprep.subr.mxu0 0.0
    %1177 = vmatpush1.msra.mxu0 0.0
    %1178 = vmatprep.subr.mxu0 0.0
    %1179 = vmatpush1.msra.mxu0 0.0
    %1180 = vmatprep.subr.mxu0 0.0
    %1181 = vmatpush1.msra.mxu0 0.0
    %1182 = vmatprep.subr.mxu0 0.0
    %1183 = vmatpush1.msra.mxu0 0.0
    %1184 = vmatprep.subr.mxu0 0.0
    %1185 = vmatpush1.msra.mxu0 0.0
    %1186 = vmatprep.subr.mxu0 0.0
    %1187 = vmatpush1.msra.mxu0 0.0
    %1188 = vmatprep.subr.mxu0 0.0
    %1189 = vmatpush1.msra.mxu0 0.0
    %1190 = vmatprep.subr.mxu0 0.0
    %1191 = vmatpush1.msra.mxu0 0.0
    %1192 = vmatprep.subr.mxu0 0.0
    %1193 = vmatpush1.msra.mxu0 0.0
    %1194 = vmatprep.subr.mxu0 0.0
    %1195 = vmatpush1.msra.mxu0 0.0
    %1196 = vmatprep.mubr.f32.mxu0 0.0
    %1197 = vmatmul.mubr.f32.gmra.mrb[0].mxu0 %v1131
    %v1198 = vpop.f32.mrb[0].mxu0
    %v1199 = vadd.f32 0.0, %v1198
    %v1200 = vpop.f32.mrb[0].mxu0
    %v1201 = vadd.f32 0.0, %v1200
    %1202 = vdwg.mxu0
    %1203 = vmatprep.subr.mxu0 %v426
    %1204 = vmatpush1.msra.mxu0 %v425
    %1205 = vmatprep.subr.mxu0 %v430
    %1206 = vmatpush1.msra.mxu0 %v429
    %1207 = vmatprep.subr.mxu0 %v434
    %1208 = vmatpush1.msra.mxu0 %v433
    %1209 = vmatprep.subr.mxu0 %v438
    %1210 = vmatpush1.msra.mxu0 %v437
    %1211 = vmatprep.subr.mxu0 %v442
    %1212 = vmatpush1.msra.mxu0 %v441
    %1213 = vmatprep.subr.mxu0 %v446
    %1214 = vmatpush1.msra.mxu0 %v445
    %1215 = vmatprep.subr.mxu0 %v450
    %1216 = vmatpush1.msra.mxu0 %v449
    %1217 = vmatprep.subr.mxu0 %v454
    %1218 = vmatpush1.msra.mxu0 %v453
    %1219 = vmatprep.subr.mxu0 %v458
    %1220 = vmatpush1.msra.mxu0 %v457
    %1221 = vmatprep.subr.mxu0 %v462
    %1222 = vmatpush1.msra.mxu0 %v461
    %1223 = vmatprep.subr.mxu0 %v466
    %1224 = vmatpush1.msra.mxu0 %v465
    %1225 = vmatprep.subr.mxu0 %v470
    %1226 = vmatpush1.msra.mxu0 %v469
    %1227 = vmatprep.subr.mxu0 %v474
    %1228 = vmatpush1.msra.mxu0 %v473
    %1229 = vmatprep.subr.mxu0 %v478
    %1230 = vmatpush1.msra.mxu0 %v477
    %1231 = vmatprep.subr.mxu0 %v482
    %1232 = vmatpush1.msra.mxu0 %v481
    %1233 = vmatprep.subr.mxu0 %v486
    %1234 = vmatpush1.msra.mxu0 %v485
    %1235 = vmatprep.subr.mxu0 0.0
    %1236 = vmatpush1.msra.mxu0 0.0
    %1237 = vmatprep.subr.mxu0 0.0
    %1238 = vmatpush1.msra.mxu0 0.0
    %1239 = vmatprep.subr.mxu0 0.0
    %1240 = vmatpush1.msra.mxu0 0.0
    %1241 = vmatprep.subr.mxu0 0.0
    %1242 = vmatpush1.msra.mxu0 0.0
    %1243 = vmatprep.subr.mxu0 0.0
    %1244 = vmatpush1.msra.mxu0 0.0
    %1245 = vmatprep.subr.mxu0 0.0
    %1246 = vmatpush1.msra.mxu0 0.0
    %1247 = vmatprep.subr.mxu0 0.0
    %1248 = vmatpush1.msra.mxu0 0.0
    %1249 = vmatprep.subr.mxu0 0.0
    %1250 = vmatpush1.msra.mxu0 0.0
    %1251 = vmatprep.subr.mxu0 0.0
    %1252 = vmatpush1.msra.mxu0 0.0
    %1253 = vmatprep.subr.mxu0 0.0
    %1254 = vmatpush1.msra.mxu0 0.0
    %1255 = vmatprep.subr.mxu0 0.0
    %1256 = vmatpush1.msra.mxu0 0.0
    %1257 = vmatprep.subr.mxu0 0.0
    %1258 = vmatpush1.msra.mxu0 0.0
    %1259 = vmatprep.subr.mxu0 0.0
    %1260 = vmatpush1.msra.mxu0 0.0
    %1261 = vmatprep.subr.mxu0 0.0
    %1262 = vmatpush1.msra.mxu0 0.0
    %1263 = vmatprep.subr.mxu0 0.0
    %1264 = vmatpush1.msra.mxu0 0.0
    %1265 = vmatprep.subr.mxu0 0.0
    %1266 = vmatpush1.msra.mxu0 0.0
    %1267 = vmatprep.mubr.f32.mxu0 0.0
    %1268 = vmatmul.mubr.f32.gmra.mrb[0].mxu0 %v1131
    %v1269 = vpop.f32.mrb[0].mxu0
    %v1270 = vadd.f32 0.0, %v1269
    %v1271 = vpop.f32.mrb[0].mxu0
    %v1272 = vadd.f32 0.0, %v1271
    %1273 = vdwg.mxu0
    %v1274 = vadd.f32 %v1270, %v416
    %v1275 = vadd.f32 %v1272, %v420
    %v1276 = vmul.f32 %v1274, 0.5
    %v1277 = vmul.f32 %v1275, 0.5
    %v1278 = vtanh.pop %v1276
    %v1279 = vtanh.pop %v1277
    %v1280 = vmul.f32 %v1278, 0.5
    %v1281 = vmul.f32 %v1279, 0.5
    %v1282 = vadd.f32 %v1280, 0.5
    %v1283 = vadd.f32 %v1281, 0.5
    %v1284 = vtanh.pop %v1275
    %v1285 = vmul.f32 %v1282, %v1090
    %1287 = vrot.lane.b32.xlu0 %v1284, 64
    %v1288 = vpop.permute.xlu0 %1287
    %v1290 = vmul.f32 %v1282, %v1288
    %1292 = vrot.lane.b32.xlu0 %v1290, 64
    %v1293 = vpop.permute.xlu0 %1292
    %v1295 = vadd.f32 %v1285, %v1293
    %v1296 = vtanh.pop %v1295
    %1298 = vrot.lane.b32.xlu0 %v1296, 64
    %v1299 = vpop.permute.xlu0 %1298
    %v1301 = vmul.f32 %v1283, %v1299
    %v1302 = vld [vmem:[#allocation2 + $0x40] sm:$0xff]
    %v1303 = vld [vmem:[#allocation2 + $0x48] sm:$0xff]
    %v1304 = vadd.f32 %v1302, %v1199
    %v1305 = vadd.f32 %v1303, %v1201
    %v1306 = vmul.f32 %v1304, 0.5
    %v1307 = vmul.f32 %v1305, 0.5
    %v1308 = vtanh.pop %v1306
    %v1309 = vtanh.pop %v1307
    %v1310 = vmul.f32 %v1308, 0.5
    %v1311 = vmul.f32 %v1309, 0.5
    %v1312 = vadd.f32 %v1310, 0.5
    %v1313 = vadd.f32 %v1311, 0.5
    %v1314 = vtanh.pop %v1305
    %v1315 = vmul.f32 %v1312, %v1120
    %1317 = vrot.lane.b32.xlu0 %v1314, 64
    %v1318 = vpop.permute.xlu0 %1317
    %v1320 = vmul.f32 %v1312, %v1318
    %1322 = vrot.lane.b32.xlu0 %v1320, 64
    %v1323 = vpop.permute.xlu0 %1322
    %v1325 = vadd.f32 %v1315, %v1323
    %v1326 = vtanh.pop %v1325
    %1328 = vrot.lane.b32.xlu0 %v1326, 64
    %v1329 = vpop.permute.xlu0 %1328
    %v1331 = vmul.f32 %v1313, %v1329
    %1333 = vrot.lane.b32.xlu0 %v1301, 64
    %v1334 = vpop.permute.xlu0 %1333
    %v1336 = vsel %vm515, %v1331, %v1334
    %1337 = vmatprep.subr.mxu0 %v424
    %1338 = vmatpush1.msra.mxu0 %v423
    %1339 = vmatprep.subr.mxu0 %v428
    %1340 = vmatpush1.msra.mxu0 %v427
    %1341 = vmatprep.subr.mxu0 %v432
    %1342 = vmatpush1.msra.mxu0 %v431
    %1343 = vmatprep.subr.mxu0 %v436
    %1344 = vmatpush1.msra.mxu0 %v435
    %1345 = vmatprep.subr.mxu0 %v440
    %1346 = vmatpush1.msra.mxu0 %v439
    %1347 = vmatprep.subr.mxu0 %v444
    %1348 = vmatpush1.msra.mxu0 %v443
    %1349 = vmatprep.subr.mxu0 %v448
    %1350 = vmatpush1.msra.mxu0 %v447
    %1351 = vmatprep.subr.mxu0 %v452
    %1352 = vmatpush1.msra.mxu0 %v451
    %1353 = vmatprep.subr.mxu0 %v456
    %1354 = vmatpush1.msra.mxu0 %v455
    %1355 = vmatprep.subr.mxu0 %v460
    %1356 = vmatpush1.msra.mxu0 %v459
    %1357 = vmatprep.subr.mxu0 %v464
    %1358 = vmatpush1.msra.mxu0 %v463
    %1359 = vmatprep.subr.mxu0 %v468
    %1360 = vmatpush1.msra.mxu0 %v467
    %1361 = vmatprep.subr.mxu0 %v472
    %1362 = vmatpush1.msra.mxu0 %v471
    %1363 = vmatprep.subr.mxu0 %v476
    %1364 = vmatpush1.msra.mxu0 %v475
    %1365 = vmatprep.subr.mxu0 %v480
    %1366 = vmatpush1.msra.mxu0 %v479
    %1367 = vmatprep.subr.mxu0 %v484
    %1368 = vmatpush1.msra.mxu0 %v483
    %1369 = vmatprep.subr.mxu0 0.0
    %1370 = vmatpush1.msra.mxu0 0.0
    %1371 = vmatprep.subr.mxu0 0.0
    %1372 = vmatpush1.msra.mxu0 0.0
    %1373 = vmatprep.subr.mxu0 0.0
    %1374 = vmatpush1.msra.mxu0 0.0
    %1375 = vmatprep.subr.mxu0 0.0
    %1376 = vmatpush1.msra.mxu0 0.0
    %1377 = vmatprep.subr.mxu0 0.0
    %1378 = vmatpush1.msra.mxu0 0.0
    %1379 = vmatprep.subr.mxu0 0.0
    %1380 = vmatpush1.msra.mxu0 0.0
    %1381 = vmatprep.subr.mxu0 0.0
    %1382 = vmatpush1.msra.mxu0 0.0
    %1383 = vmatprep.subr.mxu0 0.0
    %1384 = vmatpush1.msra.mxu0 0.0
    %1385 = vmatprep.subr.mxu0 0.0
    %1386 = vmatpush1.msra.mxu0 0.0
    %1387 = vmatprep.subr.mxu0 0.0
    %1388 = vmatpush1.msra.mxu0 0.0
    %1389 = vmatprep.subr.mxu0 0.0
    %1390 = vmatpush1.msra.mxu0 0.0
    %1391 = vmatprep.subr.mxu0 0.0
    %1392 = vmatpush1.msra.mxu0 0.0
    %1393 = vmatprep.subr.mxu0 0.0
    %1394 = vmatpush1.msra.mxu0 0.0
    %1395 = vmatprep.subr.mxu0 0.0
    %1396 = vmatpush1.msra.mxu0 0.0
    %1397 = vmatprep.subr.mxu0 0.0
    %1398 = vmatpush1.msra.mxu0 0.0
    %1399 = vmatprep.subr.mxu0 0.0
    %1400 = vmatpush1.msra.mxu0 0.0
    %1401 = vmatprep.mubr.f32.mxu0 0.0
    %1402 = vmatmul.mubr.f32.gmra.mrb[0].mxu0 %v1336
    %v1403 = vpop.f32.mrb[0].mxu0
    %v1404 = vadd.f32 0.0, %v1403
    %v1405 = vpop.f32.mrb[0].mxu0
    %v1406 = vadd.f32 0.0, %v1405
    %1407 = vdwg.mxu0
    %1408 = vmatprep.subr.mxu0 %v426
    %1409 = vmatpush1.msra.mxu0 %v425
    %1410 = vmatprep.subr.mxu0 %v430
    %1411 = vmatpush1.msra.mxu0 %v429
    %1412 = vmatprep.subr.mxu0 %v434
    %1413 = vmatpush1.msra.mxu0 %v433
    %1414 = vmatprep.subr.mxu0 %v438
    %1415 = vmatpush1.msra.mxu0 %v437
    %1416 = vmatprep.subr.mxu0 %v442
    %1417 = vmatpush1.msra.mxu0 %v441
    %1418 = vmatprep.subr.mxu0 %v446
    %1419 = vmatpush1.msra.mxu0 %v445
    %1420 = vmatprep.subr.mxu0 %v450
    %1421 = vmatpush1.msra.mxu0 %v449
    %1422 = vmatprep.subr.mxu0 %v454
    %1423 = vmatpush1.msra.mxu0 %v453
    %1424 = vmatprep.subr.mxu0 %v458
    %1425 = vmatpush1.msra.mxu0 %v457
    %1426 = vmatprep.subr.mxu0 %v462
    %1427 = vmatpush1.msra.mxu0 %v461
    %1428 = vmatprep.subr.mxu0 %v466
    %1429 = vmatpush1.msra.mxu0 %v465
    %1430 = vmatprep.subr.mxu0 %v470
    %1431 = vmatpush1.msra.mxu0 %v469
    %1432 = vmatprep.subr.mxu0 %v474
    %1433 = vmatpush1.msra.mxu0 %v473
    %1434 = vmatprep.subr.mxu0 %v478
    %1435 = vmatpush1.msra.mxu0 %v477
    %1436 = vmatprep.subr.mxu0 %v482
    %1437 = vmatpush1.msra.mxu0 %v481
    %1438 = vmatprep.subr.mxu0 %v486
    %1439 = vmatpush1.msra.mxu0 %v485
    %1440 = vmatprep.subr.mxu0 0.0
    %1441 = vmatpush1.msra.mxu0 0.0
    %1442 = vmatprep.subr.mxu0 0.0
    %1443 = vmatpush1.msra.mxu0 0.0
    %1444 = vmatprep.subr.mxu0 0.0
    %1445 = vmatpush1.msra.mxu0 0.0
    %1446 = vmatprep.subr.mxu0 0.0
    %1447 = vmatpush1.msra.mxu0 0.0
    %1448 = vmatprep.subr.mxu0 0.0
    %1449 = vmatpush1.msra.mxu0 0.0
    %1450 = vmatprep.subr.mxu0 0.0
    %1451 = vmatpush1.msra.mxu0 0.0
    %1452 = vmatprep.subr.mxu0 0.0
    %1453 = vmatpush1.msra.mxu0 0.0
    %1454 = vmatprep.subr.mxu0 0.0
    %1455 = vmatpush1.msra.mxu0 0.0
    %1456 = vmatprep.subr.mxu0 0.0
    %1457 = vmatpush1.msra.mxu0 0.0
    %1458 = vmatprep.subr.mxu0 0.0
    %1459 = vmatpush1.msra.mxu0 0.0
    %1460 = vmatprep.subr.mxu0 0.0
    %1461 = vmatpush1.msra.mxu0 0.0
    %1462 = vmatprep.subr.mxu0 0.0
    %1463 = vmatpush1.msra.mxu0 0.0
    %1464 = vmatprep.subr.mxu0 0.0
    %1465 = vmatpush1.msra.mxu0 0.0
    %1466 = vmatprep.subr.mxu0 0.0
    %1467 = vmatpush1.msra.mxu0 0.0
    %1468 = vmatprep.subr.mxu0 0.0
    %1469 = vmatpush1.msra.mxu0 0.0
    %1470 = vmatprep.subr.mxu0 0.0
    %1471 = vmatpush1.msra.mxu0 0.0
    %1472 = vmatprep.mubr.f32.mxu0 0.0
    %1473 = vmatmul.mubr.f32.gmra.mrb[0].mxu0 %v1336
    %v1474 = vpop.f32.mrb[0].mxu0
    %v1475 = vadd.f32 0.0, %v1474
    %v1476 = vpop.f32.mrb[0].mxu0
    %v1477 = vadd.f32 0.0, %v1476
    %1478 = vdwg.mxu0
    %v1479 = vadd.f32 %v1475, %v416
    %v1480 = vadd.f32 %v1477, %v420
    %v1481 = vmul.f32 %v1479, 0.5
    %v1482 = vmul.f32 %v1480, 0.5
    %v1483 = vtanh.pop %v1481
    %v1484 = vtanh.pop %v1482
    %v1485 = vmul.f32 %v1483, 0.5
    %v1486 = vmul.f32 %v1484, 0.5
    %v1487 = vadd.f32 %v1485, 0.5
    %v1488 = vadd.f32 %v1486, 0.5
    %v1489 = vtanh.pop %v1480
    %v1490 = vmul.f32 %v1487, %v1295
    %1492 = vrot.lane.b32.xlu0 %v1489, 64
    %v1493 = vpop.permute.xlu0 %1492
    %v1495 = vmul.f32 %v1487, %v1493
    %1497 = vrot.lane.b32.xlu0 %v1495, 64
    %v1498 = vpop.permute.xlu0 %1497
    %v1500 = vadd.f32 %v1490, %v1498
    %v1501 = vtanh.pop %v1500
    %1503 = vrot.lane.b32.xlu0 %v1501, 64
    %v1504 = vpop.permute.xlu0 %1503
    %v1506 = vmul.f32 %v1488, %v1504
    %v1507 = vld [vmem:[#allocation2 + $0x50] sm:$0xff]
    %v1508 = vld [vmem:[#allocation2 + $0x58] sm:$0xff]
    %v1509 = vadd.f32 %v1507, %v1404
    %v1510 = vadd.f32 %v1508, %v1406
    %v1511 = vmul.f32 %v1509, 0.5
    %v1512 = vmul.f32 %v1510, 0.5
    %v1513 = vtanh.pop %v1511
    %v1514 = vtanh.pop %v1512
    %v1515 = vmul.f32 %v1513, 0.5
    %v1516 = vmul.f32 %v1514, 0.5
    %v1517 = vadd.f32 %v1515, 0.5
    %v1518 = vadd.f32 %v1516, 0.5
    %v1519 = vtanh.pop %v1510
    %v1520 = vmul.f32 %v1517, %v1325
    %1522 = vrot.lane.b32.xlu0 %v1519, 64
    %v1523 = vpop.permute.xlu0 %1522
    %v1525 = vmul.f32 %v1517, %v1523
    %1527 = vrot.lane.b32.xlu0 %v1525, 64
    %v1528 = vpop.permute.xlu0 %1527
    %v1530 = vadd.f32 %v1520, %v1528
    %v1531 = vtanh.pop %v1530
    %1533 = vrot.lane.b32.xlu0 %v1531, 64
    %v1534 = vpop.permute.xlu0 %1533
    %v1536 = vmul.f32 %v1518, %v1534
    %1538 = vrot.lane.b32.xlu0 %v1506, 64
    %v1539 = vpop.permute.xlu0 %1538
    %v1541 = vsel %vm515, %v1536, %v1539
    %1542 = vmatprep.subr.mxu0 %v424
    %1543 = vmatpush1.msra.mxu0 %v423
    %1544 = vmatprep.subr.mxu0 %v428
    %1545 = vmatpush1.msra.mxu0 %v427
    %1546 = vmatprep.subr.mxu0 %v432
    %1547 = vmatpush1.msra.mxu0 %v431
    %1548 = vmatprep.subr.mxu0 %v436
    %1549 = vmatpush1.msra.mxu0 %v435
    %1550 = vmatprep.subr.mxu0 %v440
    %1551 = vmatpush1.msra.mxu0 %v439
    %1552 = vmatprep.subr.mxu0 %v444
    %1553 = vmatpush1.msra.mxu0 %v443
    %1554 = vmatprep.subr.mxu0 %v448
    %1555 = vmatpush1.msra.mxu0 %v447
    %1556 = vmatprep.subr.mxu0 %v452
    %1557 = vmatpush1.msra.mxu0 %v451
    %1558 = vmatprep.subr.mxu0 %v456
    %1559 = vmatpush1.msra.mxu0 %v455
    %1560 = vmatprep.subr.mxu0 %v460
    %1561 = vmatpush1.msra.mxu0 %v459
    %1562 = vmatprep.subr.mxu0 %v464
    %1563 = vmatpush1.msra.mxu0 %v463
    %1564 = vmatprep.subr.mxu0 %v468
    %1565 = vmatpush1.msra.mxu0 %v467
    %1566 = vmatprep.subr.mxu0 %v472
    %1567 = vmatpush1.msra.mxu0 %v471
    %1568 = vmatprep.subr.mxu0 %v476
    %1569 = vmatpush1.msra.mxu0 %v475
    %1570 = vmatprep.subr.mxu0 %v480
    %1571 = vmatpush1.msra.mxu0 %v479
    %1572 = vmatprep.subr.mxu0 %v484
    %1573 = vmatpush1.msra.mxu0 %v483
    %1574 = vmatprep.subr.mxu0 0.0
    %1575 = vmatpush1.msra.mxu0 0.0
    %1576 = vmatprep.subr.mxu0 0.0
    %1577 = vmatpush1.msra.mxu0 0.0
    %1578 = vmatprep.subr.mxu0 0.0
    %1579 = vmatpush1.msra.mxu0 0.0
    %1580 = vmatprep.subr.mxu0 0.0
    %1581 = vmatpush1.msra.mxu0 0.0
    %1582 = vmatprep.subr.mxu0 0.0
    %1583 = vmatpush1.msra.mxu0 0.0
    %1584 = vmatprep.subr.mxu0 0.0
    %1585 = vmatpush1.msra.mxu0 0.0
    %1586 = vmatprep.subr.mxu0 0.0
    %1587 = vmatpush1.msra.mxu0 0.0
    %1588 = vmatprep.subr.mxu0 0.0
    %1589 = vmatpush1.msra.mxu0 0.0
    %1590 = vmatprep.subr.mxu0 0.0
    %1591 = vmatpush1.msra.mxu0 0.0
    %1592 = vmatprep.subr.mxu0 0.0
    %1593 = vmatpush1.msra.mxu0 0.0
    %1594 = vmatprep.subr.mxu0 0.0
    %1595 = vmatpush1.msra.mxu0 0.0
    %1596 = vmatprep.subr.mxu0 0.0
    %1597 = vmatpush1.msra.mxu0 0.0
    %1598 = vmatprep.subr.mxu0 0.0
    %1599 = vmatpush1.msra.mxu0 0.0
    %1600 = vmatprep.subr.mxu0 0.0
    %1601 = vmatpush1.msra.mxu0 0.0
    %1602 = vmatprep.subr.mxu0 0.0
    %1603 = vmatpush1.msra.mxu0 0.0
    %1604 = vmatprep.subr.mxu0 0.0
    %1605 = vmatpush1.msra.mxu0 0.0
    %1606 = vmatprep.mubr.f32.mxu0 0.0
    %1607 = vmatmul.mubr.f32.gmra.mrb[0].mxu0 %v1541
    %v1608 = vpop.f32.mrb[0].mxu0
    %v1609 = vadd.f32 0.0, %v1608
    %v1610 = vpop.f32.mrb[0].mxu0
    %v1611 = vadd.f32 0.0, %v1610
    %1612 = vdwg.mxu0
    %1613 = vmatprep.subr.mxu0 %v426
    %1614 = vmatpush1.msra.mxu0 %v425
    %1615 = vmatprep.subr.mxu0 %v430
    %1616 = vmatpush1.msra.mxu0 %v429
    %1617 = vmatprep.subr.mxu0 %v434
    %1618 = vmatpush1.msra.mxu0 %v433
    %1619 = vmatprep.subr.mxu0 %v438
    %1620 = vmatpush1.msra.mxu0 %v437
    %1621 = vmatprep.subr.mxu0 %v442
    %1622 = vmatpush1.msra.mxu0 %v441
    %1623 = vmatprep.subr.mxu0 %v446
    %1624 = vmatpush1.msra.mxu0 %v445
    %1625 = vmatprep.subr.mxu0 %v450
    %1626 = vmatpush1.msra.mxu0 %v449
    %1627 = vmatprep.subr.mxu0 %v454
    %1628 = vmatpush1.msra.mxu0 %v453
    %1629 = vmatprep.subr.mxu0 %v458
    %1630 = vmatpush1.msra.mxu0 %v457
    %1631 = vmatprep.subr.mxu0 %v462
    %1632 = vmatpush1.msra.mxu0 %v461
    %1633 = vmatprep.subr.mxu0 %v466
    %1634 = vmatpush1.msra.mxu0 %v465
    %1635 = vmatprep.subr.mxu0 %v470
    %1636 = vmatpush1.msra.mxu0 %v469
    %1637 = vmatprep.subr.mxu0 %v474
    %1638 = vmatpush1.msra.mxu0 %v473
    %1639 = vmatprep.subr.mxu0 %v478
    %1640 = vmatpush1.msra.mxu0 %v477
    %1641 = vmatprep.subr.mxu0 %v482
    %1642 = vmatpush1.msra.mxu0 %v481
    %1643 = vmatprep.subr.mxu0 %v486
    %1644 = vmatpush1.msra.mxu0 %v485
    %1645 = vmatprep.subr.mxu0 0.0
    %1646 = vmatpush1.msra.mxu0 0.0
    %1647 = vmatprep.subr.mxu0 0.0
    %1648 = vmatpush1.msra.mxu0 0.0
    %1649 = vmatprep.subr.mxu0 0.0
    %1650 = vmatpush1.msra.mxu0 0.0
    %1651 = vmatprep.subr.mxu0 0.0
    %1652 = vmatpush1.msra.mxu0 0.0
    %1653 = vmatprep.subr.mxu0 0.0
    %1654 = vmatpush1.msra.mxu0 0.0
    %1655 = vmatprep.subr.mxu0 0.0
    %1656 = vmatpush1.msra.mxu0 0.0
    %1657 = vmatprep.subr.mxu0 0.0
    %1658 = vmatpush1.msra.mxu0 0.0
    %1659 = vmatprep.subr.mxu0 0.0
    %1660 = vmatpush1.msra.mxu0 0.0
    %1661 = vmatprep.subr.mxu0 0.0
    %1662 = vmatpush1.msra.mxu0 0.0
    %1663 = vmatprep.subr.mxu0 0.0
    %1664 = vmatpush1.msra.mxu0 0.0
    %1665 = vmatprep.subr.mxu0 0.0
    %1666 = vmatpush1.msra.mxu0 0.0
    %1667 = vmatprep.subr.mxu0 0.0
    %1668 = vmatpush1.msra.mxu0 0.0
    %1669 = vmatprep.subr.mxu0 0.0
    %1670 = vmatpush1.msra.mxu0 0.0
    %1671 = vmatprep.subr.mxu0 0.0
    %1672 = vmatpush1.msra.mxu0 0.0
    %1673 = vmatprep.subr.mxu0 0.0
    %1674 = vmatpush1.msra.mxu0 0.0
    %1675 = vmatprep.subr.mxu0 0.0
    %1676 = vmatpush1.msra.mxu0 0.0
    %1677 = vmatprep.mubr.f32.mxu0 0.0
    %1678 = vmatmul.mubr.f32.gmra.mrb[0].mxu0 %v1541
    %v1679 = vpop.f32.mrb[0].mxu0
    %v1680 = vadd.f32 0.0, %v1679
    %v1681 = vpop.f32.mrb[0].mxu0
    %v1682 = vadd.f32 0.0, %v1681
    %1683 = vdwg.mxu0
    %v1684 = vadd.f32 %v1680, %v416
    %v1685 = vadd.f32 %v1682, %v420
    %v1686 = vmul.f32 %v1684, 0.5
    %v1687 = vmul.f32 %v1685, 0.5
    %v1688 = vtanh.pop %v1686
    %v1689 = vtanh.pop %v1687
    %v1690 = vmul.f32 %v1688, 0.5
    %v1691 = vmul.f32 %v1689, 0.5
    %v1692 = vadd.f32 %v1690, 0.5
    %v1693 = vadd.f32 %v1691, 0.5
    %v1694 = vtanh.pop %v1685
    %v1695 = vmul.f32 %v1692, %v1500
    %1697 = vrot.lane.b32.xlu0 %v1694, 64
    %v1698 = vpop.permute.xlu0 %1697
    %v1700 = vmul.f32 %v1692, %v1698
    %1702 = vrot.lane.b32.xlu0 %v1700, 64
    %v1703 = vpop.permute.xlu0 %1702
    %v1705 = vadd.f32 %v1695, %v1703
    %v1706 = vtanh.pop %v1705
    %1708 = vrot.lane.b32.xlu0 %v1706, 64
    %v1709 = vpop.permute.xlu0 %1708
    %v1711 = vmul.f32 %v1693, %v1709
    %v1712 = vld [vmem:[#allocation2 + $0x60] sm:$0xff]
    %v1713 = vld [vmem:[#allocation2 + $0x68] sm:$0xff]
    %v1714 = vadd.f32 %v1712, %v1609
    %v1715 = vadd.f32 %v1713, %v1611
    %v1716 = vmul.f32 %v1714, 0.5
    %v1717 = vmul.f32 %v1715, 0.5
    %v1718 = vtanh.pop %v1716
    %v1719 = vtanh.pop %v1717
    %v1720 = vmul.f32 %v1718, 0.5
    %v1721 = vmul.f32 %v1719, 0.5
    %v1722 = vadd.f32 %v1720, 0.5
    %v1723 = vadd.f32 %v1721, 0.5
    %v1724 = vtanh.pop %v1715
    %v1725 = vmul.f32 %v1722, %v1530
    %1727 = vrot.lane.b32.xlu0 %v1724, 64
    %v1728 = vpop.permute.xlu0 %1727
    %v1730 = vmul.f32 %v1722, %v1728
    %1732 = vrot.lane.b32.xlu0 %v1730, 64
    %v1733 = vpop.permute.xlu0 %1732
    %v1735 = vadd.f32 %v1725, %v1733
    %v1736 = vtanh.pop %v1735
    %1738 = vrot.lane.b32.xlu0 %v1736, 64
    %v1739 = vpop.permute.xlu0 %1738
    %v1741 = vmul.f32 %v1723, %v1739
    %1743 = vrot.lane.b32.xlu0 %v1711, 64
    %v1744 = vpop.permute.xlu0 %1743
    %v1746 = vsel %vm515, %v1741, %v1744
    %1747 = vmatprep.subr.mxu0 %v424
    %1748 = vmatpush1.msra.mxu0 %v423
    %1749 = vmatprep.subr.mxu0 %v428
    %1750 = vmatpush1.msra.mxu0 %v427
    %1751 = vmatprep.subr.mxu0 %v432
    %1752 = vmatpush1.msra.mxu0 %v431
    %1753 = vmatprep.subr.mxu0 %v436
    %1754 = vmatpush1.msra.mxu0 %v435
    %1755 = vmatprep.subr.mxu0 %v440
    %1756 = vmatpush1.msra.mxu0 %v439
    %1757 = vmatprep.subr.mxu0 %v444
    %1758 = vmatpush1.msra.mxu0 %v443
    %1759 = vmatprep.subr.mxu0 %v448
    %1760 = vmatpush1.msra.mxu0 %v447
    %1761 = vmatprep.subr.mxu0 %v452
    %1762 = vmatpush1.msra.mxu0 %v451
    %1763 = vmatprep.subr.mxu0 %v456
    %1764 = vmatpush1.msra.mxu0 %v455
    %1765 = vmatprep.subr.mxu0 %v460
    %1766 = vmatpush1.msra.mxu0 %v459
    %1767 = vmatprep.subr.mxu0 %v464
    %1768 = vmatpush1.msra.mxu0 %v463
    %1769 = vmatprep.subr.mxu0 %v468
    %1770 = vmatpush1.msra.mxu0 %v467
    %1771 = vmatprep.subr.mxu0 %v472
    %1772 = vmatpush1.msra.mxu0 %v471
    %1773 = vmatprep.subr.mxu0 %v476
    %1774 = vmatpush1.msra.mxu0 %v475
    %1775 = vmatprep.subr.mxu0 %v480
    %1776 = vmatpush1.msra.mxu0 %v479
    %1777 = vmatprep.subr.mxu0 %v484
    %1778 = vmatpush1.msra.mxu0 %v483
    %1779 = vmatprep.subr.mxu0 0.0
    %1780 = vmatpush1.msra.mxu0 0.0
    %1781 = vmatprep.subr.mxu0 0.0
    %1782 = vmatpush1.msra.mxu0 0.0
    %1783 = vmatprep.subr.mxu0 0.0
    %1784 = vmatpush1.msra.mxu0 0.0
    %1785 = vmatprep.subr.mxu0 0.0
    %1786 = vmatpush1.msra.mxu0 0.0
    %1787 = vmatprep.subr.mxu0 0.0
    %1788 = vmatpush1.msra.mxu0 0.0
    %1789 = vmatprep.subr.mxu0 0.0
    %1790 = vmatpush1.msra.mxu0 0.0
    %1791 = vmatprep.subr.mxu0 0.0
    %1792 = vmatpush1.msra.mxu0 0.0
    %1793 = vmatprep.subr.mxu0 0.0
    %1794 = vmatpush1.msra.mxu0 0.0
    %1795 = vmatprep.subr.mxu0 0.0
    %1796 = vmatpush1.msra.mxu0 0.0
    %1797 = vmatprep.subr.mxu0 0.0
    %1798 = vmatpush1.msra.mxu0 0.0
    %1799 = vmatprep.subr.mxu0 0.0
    %1800 = vmatpush1.msra.mxu0 0.0
    %1801 = vmatprep.subr.mxu0 0.0
    %1802 = vmatpush1.msra.mxu0 0.0
    %1803 = vmatprep.subr.mxu0 0.0
    %1804 = vmatpush1.msra.mxu0 0.0
    %1805 = vmatprep.subr.mxu0 0.0
    %1806 = vmatpush1.msra.mxu0 0.0
    %1807 = vmatprep.subr.mxu0 0.0
    %1808 = vmatpush1.msra.mxu0 0.0
    %1809 = vmatprep.subr.mxu0 0.0
    %1810 = vmatpush1.msra.mxu0 0.0
    %1811 = vmatprep.mubr.f32.mxu0 0.0
    %1812 = vmatmul.mubr.f32.gmra.mrb[0].mxu0 %v1746
    %v1813 = vpop.f32.mrb[0].mxu0
    %v1814 = vadd.f32 0.0, %v1813
    %v1815 = vpop.f32.mrb[0].mxu0
    %v1816 = vadd.f32 0.0, %v1815
    %1817 = vdwg.mxu0
    %1818 = vmatprep.subr.mxu0 %v426
    %1819 = vmatpush1.msra.mxu0 %v425
    %1820 = vmatprep.subr.mxu0 %v430
    %1821 = vmatpush1.msra.mxu0 %v429
    %1822 = vmatprep.subr.mxu0 %v434
    %1823 = vmatpush1.msra.mxu0 %v433
    %1824 = vmatprep.subr.mxu0 %v438
    %1825 = vmatpush1.msra.mxu0 %v437
    %1826 = vmatprep.subr.mxu0 %v442
    %1827 = vmatpush1.msra.mxu0 %v441
    %1828 = vmatprep.subr.mxu0 %v446
    %1829 = vmatpush1.msra.mxu0 %v445
    %1830 = vmatprep.subr.mxu0 %v450
    %1831 = vmatpush1.msra.mxu0 %v449
    %1832 = vmatprep.subr.mxu0 %v454
    %1833 = vmatpush1.msra.mxu0 %v453
    %1834 = vmatprep.subr.mxu0 %v458
    %1835 = vmatpush1.msra.mxu0 %v457
    %1836 = vmatprep.subr.mxu0 %v462
    %1837 = vmatpush1.msra.mxu0 %v461
    %1838 = vmatprep.subr.mxu0 %v466
    %1839 = vmatpush1.msra.mxu0 %v465
    %1840 = vmatprep.subr.mxu0 %v470
    %1841 = vmatpush1.msra.mxu0 %v469
    %1842 = vmatprep.subr.mxu0 %v474
    %1843 = vmatpush1.msra.mxu0 %v473
    %1844 = vmatprep.subr.mxu0 %v478
    %1845 = vmatpush1.msra.mxu0 %v477
    %1846 = vmatprep.subr.mxu0 %v482
    %1847 = vmatpush1.msra.mxu0 %v481
    %1848 = vmatprep.subr.mxu0 %v486
    %1849 = vmatpush1.msra.mxu0 %v485
    %1850 = vmatprep.subr.mxu0 0.0
    %1851 = vmatpush1.msra.mxu0 0.0
    %1852 = vmatprep.subr.mxu0 0.0
    %1853 = vmatpush1.msra.mxu0 0.0
    %1854 = vmatprep.subr.mxu0 0.0
    %1855 = vmatpush1.msra.mxu0 0.0
    %1856 = vmatprep.subr.mxu0 0.0
    %1857 = vmatpush1.msra.mxu0 0.0
    %1858 = vmatprep.subr.mxu0 0.0
    %1859 = vmatpush1.msra.mxu0 0.0
    %1860 = vmatprep.subr.mxu0 0.0
    %1861 = vmatpush1.msra.mxu0 0.0
    %1862 = vmatprep.subr.mxu0 0.0
    %1863 = vmatpush1.msra.mxu0 0.0
    %1864 = vmatprep.subr.mxu0 0.0
    %1865 = vmatpush1.msra.mxu0 0.0
    %1866 = vmatprep.subr.mxu0 0.0
    %1867 = vmatpush1.msra.mxu0 0.0
    %1868 = vmatprep.subr.mxu0 0.0
    %1869 = vmatpush1.msra.mxu0 0.0
    %1870 = vmatprep.subr.mxu0 0.0
    %1871 = vmatpush1.msra.mxu0 0.0
    %1872 = vmatprep.subr.mxu0 0.0
    %1873 = vmatpush1.msra.mxu0 0.0
    %1874 = vmatprep.subr.mxu0 0.0
    %1875 = vmatpush1.msra.mxu0 0.0
    %1876 = vmatprep.subr.mxu0 0.0
    %1877 = vmatpush1.msra.mxu0 0.0
    %1878 = vmatprep.subr.mxu0 0.0
    %1879 = vmatpush1.msra.mxu0 0.0
    %1880 = vmatprep.subr.mxu0 0.0
    %1881 = vmatpush1.msra.mxu0 0.0
    %1882 = vmatprep.mubr.f32.mxu0 0.0
    %1883 = vmatmul.mubr.f32.gmra.mrb[0].mxu0 %v1746
    %v1884 = vpop.f32.mrb[0].mxu0
    %v1885 = vadd.f32 0.0, %v1884
    %v1886 = vpop.f32.mrb[0].mxu0
    %v1887 = vadd.f32 0.0, %v1886
    %1888 = vdwg.mxu0
    %v1889 = vadd.f32 %v1885, %v416
    %v1890 = vadd.f32 %v1887, %v420
    %v1891 = vmul.f32 %v1889, 0.5
    %v1892 = vmul.f32 %v1890, 0.5
    %v1893 = vtanh.pop %v1891
    %v1894 = vtanh.pop %v1892
    %v1895 = vmul.f32 %v1893, 0.5
    %v1896 = vmul.f32 %v1894, 0.5
    %v1897 = vadd.f32 %v1895, 0.5
    %v1898 = vadd.f32 %v1896, 0.5
    %v1899 = vtanh.pop %v1890
    %v1900 = vmul.f32 %v1897, %v1705
    %1902 = vrot.lane.b32.xlu0 %v1899, 64
    %v1903 = vpop.permute.xlu0 %1902
    %v1905 = vmul.f32 %v1897, %v1903
    %1907 = vrot.lane.b32.xlu0 %v1905, 64
    %v1908 = vpop.permute.xlu0 %1907
    %v1910 = vadd.f32 %v1900, %v1908
    %v1911 = vtanh.pop %v1910
    %1913 = vrot.lane.b32.xlu0 %v1911, 64
    %v1914 = vpop.permute.xlu0 %1913
    %v1916 = vmul.f32 %v1898, %v1914
    %v1917 = vld [vmem:[#allocation2 + $0x70] sm:$0xff]
    %v1918 = vld [vmem:[#allocation2 + $0x78] sm:$0xff]
    %v1919 = vadd.f32 %v1917, %v1814
    %v1920 = vadd.f32 %v1918, %v1816
    %v1921 = vmul.f32 %v1919, 0.5
    %v1922 = vmul.f32 %v1920, 0.5
    %v1923 = vtanh.pop %v1921
    %v1924 = vtanh.pop %v1922
    %v1925 = vmul.f32 %v1923, 0.5
    %v1926 = vmul.f32 %v1924, 0.5
    %v1927 = vadd.f32 %v1925, 0.5
    %v1928 = vadd.f32 %v1926, 0.5
    %v1929 = vtanh.pop %v1920
    %v1930 = vmul.f32 %v1927, %v1735
    %1932 = vrot.lane.b32.xlu0 %v1929, 64
    %v1933 = vpop.permute.xlu0 %1932
    %v1935 = vmul.f32 %v1927, %v1933
    %1937 = vrot.lane.b32.xlu0 %v1935, 64
    %v1938 = vpop.permute.xlu0 %1937
    %v1940 = vadd.f32 %v1930, %v1938
    %v1941 = vtanh.pop %v1940
    %1943 = vrot.lane.b32.xlu0 %v1941, 64
    %v1944 = vpop.permute.xlu0 %1943
    %v1946 = vmul.f32 %v1928, %v1944
    %1948 = vrot.lane.b32.xlu0 %v1916, 64
    %v1949 = vpop.permute.xlu0 %1948
    %v1951 = vsel %vm515, %v1946, %v1949
    %1952 = vmatprep.subr.mxu0 %v424
    %1953 = vmatpush1.msra.mxu0 %v423
    %1954 = vmatprep.subr.mxu0 %v428
    %1955 = vmatpush1.msra.mxu0 %v427
    %1956 = vmatprep.subr.mxu0 %v432
    %1957 = vmatpush1.msra.mxu0 %v431
    %1958 = vmatprep.subr.mxu0 %v436
    %1959 = vmatpush1.msra.mxu0 %v435
    %1960 = vmatprep.subr.mxu0 %v440
    %1961 = vmatpush1.msra.mxu0 %v439
    %1962 = vmatprep.subr.mxu0 %v444
    %1963 = vmatpush1.msra.mxu0 %v443
    %1964 = vmatprep.subr.mxu0 %v448
    %1965 = vmatpush1.msra.mxu0 %v447
    %1966 = vmatprep.subr.mxu0 %v452
    %1967 = vmatpush1.msra.mxu0 %v451
    %1968 = vmatprep.subr.mxu0 %v456
    %1969 = vmatpush1.msra.mxu0 %v455
    %1970 = vmatprep.subr.mxu0 %v460
    %1971 = vmatpush1.msra.mxu0 %v459
    %1972 = vmatprep.subr.mxu0 %v464
    %1973 = vmatpush1.msra.mxu0 %v463
    %1974 = vmatprep.subr.mxu0 %v468
    %1975 = vmatpush1.msra.mxu0 %v467
    %1976 = vmatprep.subr.mxu0 %v472
    %1977 = vmatpush1.msra.mxu0 %v471
    %1978 = vmatprep.subr.mxu0 %v476
    %1979 = vmatpush1.msra.mxu0 %v475
    %1980 = vmatprep.subr.mxu0 %v480
    %1981 = vmatpush1.msra.mxu0 %v479
    %1982 = vmatprep.subr.mxu0 %v484
    %1983 = vmatpush1.msra.mxu0 %v483
    %1984 = vmatprep.subr.mxu0 0.0
    %1985 = vmatpush1.msra.mxu0 0.0
    %1986 = vmatprep.subr.mxu0 0.0
    %1987 = vmatpush1.msra.mxu0 0.0
    %1988 = vmatprep.subr.mxu0 0.0
    %1989 = vmatpush1.msra.mxu0 0.0
    %1990 = vmatprep.subr.mxu0 0.0
    %1991 = vmatpush1.msra.mxu0 0.0
    %1992 = vmatprep.subr.mxu0 0.0
    %1993 = vmatpush1.msra.mxu0 0.0
    %1994 = vmatprep.subr.mxu0 0.0
    %1995 = vmatpush1.msra.mxu0 0.0
    %1996 = vmatprep.subr.mxu0 0.0
    %1997 = vmatpush1.msra.mxu0 0.0
    %1998 = vmatprep.subr.mxu0 0.0
    %1999 = vmatpush1.msra.mxu0 0.0
    %2000 = vmatprep.subr.mxu0 0.0
    %2001 = vmatpush1.msra.mxu0 0.0
    %2002 = vmatprep.subr.mxu0 0.0
    %2003 = vmatpush1.msra.mxu0 0.0
    %2004 = vmatprep.subr.mxu0 0.0
    %2005 = vmatpush1.msra.mxu0 0.0
    %2006 = vmatprep.subr.mxu0 0.0
    %2007 = vmatpush1.msra.mxu0 0.0
    %2008 = vmatprep.subr.mxu0 0.0
    %2009 = vmatpush1.msra.mxu0 0.0
    %2010 = vmatprep.subr.mxu0 0.0
    %2011 = vmatpush1.msra.mxu0 0.0
    %2012 = vmatprep.subr.mxu0 0.0
    %2013 = vmatpush1.msra.mxu0 0.0
    %2014 = vmatprep.subr.mxu0 0.0
    %2015 = vmatpush1.msra.mxu0 0.0
    %2016 = vmatprep.mubr.f32.mxu0 0.0
    %2017 = vmatmul.mubr.f32.gmra.mrb[0].mxu0 %v1951
    %v2018 = vpop.f32.mrb[0].mxu0
    %v2019 = vadd.f32 0.0, %v2018
    %v2020 = vpop.f32.mrb[0].mxu0
    %v2021 = vadd.f32 0.0, %v2020
    %2022 = vdwg.mxu0
    %2023 = vmatprep.subr.mxu0 %v426
    %2024 = vmatpush1.msra.mxu0 %v425
    %2025 = vmatprep.subr.mxu0 %v430
    %2026 = vmatpush1.msra.mxu0 %v429
    %2027 = vmatprep.subr.mxu0 %v434
    %2028 = vmatpush1.msra.mxu0 %v433
    %2029 = vmatprep.subr.mxu0 %v438
    %2030 = vmatpush1.msra.mxu0 %v437
    %2031 = vmatprep.subr.mxu0 %v442
    %2032 = vmatpush1.msra.mxu0 %v441
    %2033 = vmatprep.subr.mxu0 %v446
    %2034 = vmatpush1.msra.mxu0 %v445
    %2035 = vmatprep.subr.mxu0 %v450
    %2036 = vmatpush1.msra.mxu0 %v449
    %2037 = vmatprep.subr.mxu0 %v454
    %2038 = vmatpush1.msra.mxu0 %v453
    %2039 = vmatprep.subr.mxu0 %v458
    %2040 = vmatpush1.msra.mxu0 %v457
    %2041 = vmatprep.subr.mxu0 %v462
    %2042 = vmatpush1.msra.mxu0 %v461
    %2043 = vmatprep.subr.mxu0 %v466
    %2044 = vmatpush1.msra.mxu0 %v465
    %2045 = vmatprep.subr.mxu0 %v470
    %2046 = vmatpush1.msra.mxu0 %v469
    %2047 = vmatprep.subr.mxu0 %v474
    %2048 = vmatpush1.msra.mxu0 %v473
    %2049 = vmatprep.subr.mxu0 %v478
    %2050 = vmatpush1.msra.mxu0 %v477
    %2051 = vmatprep.subr.mxu0 %v482
    %2052 = vmatpush1.msra.mxu0 %v481
    %2053 = vmatprep.subr.mxu0 %v486
    %2054 = vmatpush1.msra.mxu0 %v485
    %2055 = vmatprep.subr.mxu0 0.0
    %2056 = vmatpush1.msra.mxu0 0.0
    %2057 = vmatprep.subr.mxu0 0.0
    %2058 = vmatpush1.msra.mxu0 0.0
    %2059 = vmatprep.subr.mxu0 0.0
    %2060 = vmatpush1.msra.mxu0 0.0
    %2061 = vmatprep.subr.mxu0 0.0
    %2062 = vmatpush1.msra.mxu0 0.0
    %2063 = vmatprep.subr.mxu0 0.0
    %2064 = vmatpush1.msra.mxu0 0.0
    %2065 = vmatprep.subr.mxu0 0.0
    %2066 = vmatpush1.msra.mxu0 0.0
    %2067 = vmatprep.subr.mxu0 0.0
    %2068 = vmatpush1.msra.mxu0 0.0
    %2069 = vmatprep.subr.mxu0 0.0
    %2070 = vmatpush1.msra.mxu0 0.0
    %2071 = vmatprep.subr.mxu0 0.0
    %2072 = vmatpush1.msra.mxu0 0.0
    %2073 = vmatprep.subr.mxu0 0.0
    %2074 = vmatpush1.msra.mxu0 0.0
    %2075 = vmatprep.subr.mxu0 0.0
    %2076 = vmatpush1.msra.mxu0 0.0
    %2077 = vmatprep.subr.mxu0 0.0
    %2078 = vmatpush1.msra.mxu0 0.0
    %2079 = vmatprep.subr.mxu0 0.0
    %2080 = vmatpush1.msra.mxu0 0.0
    %2081 = vmatprep.subr.mxu0 0.0
    %2082 = vmatpush1.msra.mxu0 0.0
    %2083 = vmatprep.subr.mxu0 0.0
    %2084 = vmatpush1.msra.mxu0 0.0
    %2085 = vmatprep.subr.mxu0 0.0
    %2086 = vmatpush1.msra.mxu0 0.0
    %2087 = vmatprep.mubr.f32.mxu0 0.0
    %2088 = vmatmul.mubr.f32.gmra.mrb[0].mxu0 %v1951
    %v2089 = vpop.f32.mrb[0].mxu0
    %v2090 = vadd.f32 0.0, %v2089
    %v2091 = vpop.f32.mrb[0].mxu0
    %v2092 = vadd.f32 0.0, %v2091
    %2093 = vdwg.mxu0
    %v2094 = vadd.f32 %v2090, %v416
    %v2095 = vadd.f32 %v2092, %v420
    %v2096 = vmul.f32 %v2094, 0.5
    %v2097 = vmul.f32 %v2095, 0.5
    %v2098 = vtanh.pop %v2096
    %v2099 = vtanh.pop %v2097
    %v2100 = vmul.f32 %v2098, 0.5
    %v2101 = vmul.f32 %v2099, 0.5
    %v2102 = vadd.f32 %v2100, 0.5
    %v2103 = vadd.f32 %v2101, 0.5
    %v2104 = vtanh.pop %v2095
    %v2105 = vmul.f32 %v2102, %v1910
    %2107 = vrot.lane.b32.xlu0 %v2104, 64
    %v2108 = vpop.permute.xlu0 %2107
    %v2110 = vmul.f32 %v2102, %v2108
    %2112 = vrot.lane.b32.xlu0 %v2110, 64
    %v2113 = vpop.permute.xlu0 %2112
    %v2115 = vadd.f32 %v2105, %v2113
    %v2116 = vtanh.pop %v2115
    %2118 = vrot.lane.b32.xlu0 %v2116, 64
    %v2119 = vpop.permute.xlu0 %2118
    %v2121 = vmul.f32 %v2103, %v2119
    %v2122 = vld [vmem:[#allocation2 + $0x80] sm:$0xff]
    %v2123 = vld [vmem:[#allocation2 + $0x88] sm:$0xff]
    %v2124 = vadd.f32 %v2122, %v2019
    %v2125 = vadd.f32 %v2123, %v2021
    %v2126 = vmul.f32 %v2124, 0.5
    %v2127 = vmul.f32 %v2125, 0.5
    %v2128 = vtanh.pop %v2126
    %v2129 = vtanh.pop %v2127
    %v2130 = vmul.f32 %v2128, 0.5
    %v2131 = vmul.f32 %v2129, 0.5
    %v2132 = vadd.f32 %v2130, 0.5
    %v2133 = vadd.f32 %v2131, 0.5
    %v2134 = vtanh.pop %v2125
    %v2135 = vmul.f32 %v2132, %v1940
    %2137 = vrot.lane.b32.xlu0 %v2134, 64
    %v2138 = vpop.permute.xlu0 %2137
    %v2140 = vmul.f32 %v2132, %v2138
    %2142 = vrot.lane.b32.xlu0 %v2140, 64
    %v2143 = vpop.permute.xlu0 %2142
    %v2145 = vadd.f32 %v2135, %v2143
    %v2146 = vtanh.pop %v2145
    %2148 = vrot.lane.b32.xlu0 %v2146, 64
    %v2149 = vpop.permute.xlu0 %2148
    %v2151 = vmul.f32 %v2133, %v2149
    %2153 = vrot.lane.b32.xlu0 %v2121, 64
    %v2154 = vpop.permute.xlu0 %2153
    %v2156 = vsel %vm515, %v2151, %v2154
    %2157 = vmatprep.subr.mxu0 %v424
    %2158 = vmatpush1.msra.mxu0 %v423
    %2159 = vmatprep.subr.mxu0 %v428
    %2160 = vmatpush1.msra.mxu0 %v427
    %2161 = vmatprep.subr.mxu0 %v432
    %2162 = vmatpush1.msra.mxu0 %v431
    %2163 = vmatprep.subr.mxu0 %v436
    %2164 = vmatpush1.msra.mxu0 %v435
    %2165 = vmatprep.subr.mxu0 %v440
    %2166 = vmatpush1.msra.mxu0 %v439
    %2167 = vmatprep.subr.mxu0 %v444
    %2168 = vmatpush1.msra.mxu0 %v443
    %2169 = vmatprep.subr.mxu0 %v448
    %2170 = vmatpush1.msra.mxu0 %v447
    %2171 = vmatprep.subr.mxu0 %v452
    %2172 = vmatpush1.msra.mxu0 %v451
    %2173 = vmatprep.subr.mxu0 %v456
    %2174 = vmatpush1.msra.mxu0 %v455
    %2175 = vmatprep.subr.mxu0 %v460
    %2176 = vmatpush1.msra.mxu0 %v459
    %2177 = vmatprep.subr.mxu0 %v464
    %2178 = vmatpush1.msra.mxu0 %v463
    %2179 = vmatprep.subr.mxu0 %v468
    %2180 = vmatpush1.msra.mxu0 %v467
    %2181 = vmatprep.subr.mxu0 %v472
    %2182 = vmatpush1.msra.mxu0 %v471
    %2183 = vmatprep.subr.mxu0 %v476
    %2184 = vmatpush1.msra.mxu0 %v475
    %2185 = vmatprep.subr.mxu0 %v480
    %2186 = vmatpush1.msra.mxu0 %v479
    %2187 = vmatprep.subr.mxu0 %v484
    %2188 = vmatpush1.msra.mxu0 %v483
    %2189 = vmatprep.subr.mxu0 0.0
    %2190 = vmatpush1.msra.mxu0 0.0
    %2191 = vmatprep.subr.mxu0 0.0
    %2192 = vmatpush1.msra.mxu0 0.0
    %2193 = vmatprep.subr.mxu0 0.0
    %2194 = vmatpush1.msra.mxu0 0.0
    %2195 = vmatprep.subr.mxu0 0.0
    %2196 = vmatpush1.msra.mxu0 0.0
    %2197 = vmatprep.subr.mxu0 0.0
    %2198 = vmatpush1.msra.mxu0 0.0
    %2199 = vmatprep.subr.mxu0 0.0
    %2200 = vmatpush1.msra.mxu0 0.0
    %2201 = vmatprep.subr.mxu0 0.0
    %2202 = vmatpush1.msra.mxu0 0.0
    %2203 = vmatprep.subr.mxu0 0.0
    %2204 = vmatpush1.msra.mxu0 0.0
    %2205 = vmatprep.subr.mxu0 0.0
    %2206 = vmatpush1.msra.mxu0 0.0
    %2207 = vmatprep.subr.mxu0 0.0
    %2208 = vmatpush1.msra.mxu0 0.0
    %2209 = vmatprep.subr.mxu0 0.0
    %2210 = vmatpush1.msra.mxu0 0.0
    %2211 = vmatprep.subr.mxu0 0.0
    %2212 = vmatpush1.msra.mxu0 0.0
    %2213 = vmatprep.subr.mxu0 0.0
    %2214 = vmatpush1.msra.mxu0 0.0
    %2215 = vmatprep.subr.mxu0 0.0
    %2216 = vmatpush1.msra.mxu0 0.0
    %2217 = vmatprep.subr.mxu0 0.0
    %2218 = vmatpush1.msra.mxu0 0.0
    %2219 = vmatprep.subr.mxu0 0.0
    %2220 = vmatpush1.msra.mxu0 0.0
    %2221 = vmatprep.mubr.f32.mxu0 0.0
    %2222 = vmatmul.mubr.f32.gmra.mrb[0].mxu0 %v2156
    %v2223 = vpop.f32.mrb[0].mxu0
    %v2224 = vadd.f32 0.0, %v2223
    %v2225 = vpop.f32.mrb[0].mxu0
    %v2226 = vadd.f32 0.0, %v2225
    %2227 = vdwg.mxu0
    %2228 = vmatprep.subr.mxu0 %v426
    %2229 = vmatpush1.msra.mxu0 %v425
    %2230 = vmatprep.subr.mxu0 %v430
    %2231 = vmatpush1.msra.mxu0 %v429
    %2232 = vmatprep.subr.mxu0 %v434
    %2233 = vmatpush1.msra.mxu0 %v433
    %2234 = vmatprep.subr.mxu0 %v438
    %2235 = vmatpush1.msra.mxu0 %v437
    %2236 = vmatprep.subr.mxu0 %v442
    %2237 = vmatpush1.msra.mxu0 %v441
    %2238 = vmatprep.subr.mxu0 %v446
    %2239 = vmatpush1.msra.mxu0 %v445
    %2240 = vmatprep.subr.mxu0 %v450
    %2241 = vmatpush1.msra.mxu0 %v449
    %2242 = vmatprep.subr.mxu0 %v454
    %2243 = vmatpush1.msra.mxu0 %v453
    %2244 = vmatprep.subr.mxu0 %v458
    %2245 = vmatpush1.msra.mxu0 %v457
    %2246 = vmatprep.subr.mxu0 %v462
    %2247 = vmatpush1.msra.mxu0 %v461
    %2248 = vmatprep.subr.mxu0 %v466
    %2249 = vmatpush1.msra.mxu0 %v465
    %2250 = vmatprep.subr.mxu0 %v470
    %2251 = vmatpush1.msra.mxu0 %v469
    %2252 = vmatprep.subr.mxu0 %v474
    %2253 = vmatpush1.msra.mxu0 %v473
    %2254 = vmatprep.subr.mxu0 %v478
    %2255 = vmatpush1.msra.mxu0 %v477
    %2256 = vmatprep.subr.mxu0 %v482
    %2257 = vmatpush1.msra.mxu0 %v481
    %2258 = vmatprep.subr.mxu0 %v486
    %2259 = vmatpush1.msra.mxu0 %v485
    %2260 = vmatprep.subr.mxu0 0.0
    %2261 = vmatpush1.msra.mxu0 0.0
    %2262 = vmatprep.subr.mxu0 0.0
    %2263 = vmatpush1.msra.mxu0 0.0
    %2264 = vmatprep.subr.mxu0 0.0
    %2265 = vmatpush1.msra.mxu0 0.0
    %2266 = vmatprep.subr.mxu0 0.0
    %2267 = vmatpush1.msra.mxu0 0.0
    %2268 = vmatprep.subr.mxu0 0.0
    %2269 = vmatpush1.msra.mxu0 0.0
    %2270 = vmatprep.subr.mxu0 0.0
    %2271 = vmatpush1.msra.mxu0 0.0
    %2272 = vmatprep.subr.mxu0 0.0
    %2273 = vmatpush1.msra.mxu0 0.0
    %2274 = vmatprep.subr.mxu0 0.0
    %2275 = vmatpush1.msra.mxu0 0.0
    %2276 = vmatprep.subr.mxu0 0.0
    %2277 = vmatpush1.msra.mxu0 0.0
    %2278 = vmatprep.subr.mxu0 0.0
    %2279 = vmatpush1.msra.mxu0 0.0
    %2280 = vmatprep.subr.mxu0 0.0
    %2281 = vmatpush1.msra.mxu0 0.0
    %2282 = vmatprep.subr.mxu0 0.0
    %2283 = vmatpush1.msra.mxu0 0.0
    %2284 = vmatprep.subr.mxu0 0.0
    %2285 = vmatpush1.msra.mxu0 0.0
    %2286 = vmatprep.subr.mxu0 0.0
    %2287 = vmatpush1.msra.mxu0 0.0
    %2288 = vmatprep.subr.mxu0 0.0
    %2289 = vmatpush1.msra.mxu0 0.0
    %2290 = vmatprep.subr.mxu0 0.0
    %2291 = vmatpush1.msra.mxu0 0.0
    %2292 = vmatprep.mubr.f32.mxu0 0.0
    %2293 = vmatmul.mubr.f32.gmra.mrb[0].mxu0 %v2156
    %v2294 = vpop.f32.mrb[0].mxu0
    %v2295 = vadd.f32 0.0, %v2294
    %v2296 = vpop.f32.mrb[0].mxu0
    %v2297 = vadd.f32 0.0, %v2296
    %2298 = vdwg.mxu0
    %v2299 = vadd.f32 %v2295, %v416
    %v2300 = vadd.f32 %v2297, %v420
    %v2301 = vmul.f32 %v2299, 0.5
    %v2302 = vmul.f32 %v2300, 0.5
    %v2303 = vtanh.pop %v2301
    %v2304 = vtanh.pop %v2302
    %v2305 = vmul.f32 %v2303, 0.5
    %v2306 = vmul.f32 %v2304, 0.5
    %v2307 = vadd.f32 %v2305, 0.5
    %v2308 = vadd.f32 %v2306, 0.5
    %v2309 = vtanh.pop %v2300
    %v2310 = vmul.f32 %v2307, %v2115
    %2312 = vrot.lane.b32.xlu0 %v2309, 64
    %v2313 = vpop.permute.xlu0 %2312
    %v2315 = vmul.f32 %v2307, %v2313
    %2317 = vrot.lane.b32.xlu0 %v2315, 64
    %v2318 = vpop.permute.xlu0 %2317
    %v2320 = vadd.f32 %v2310, %v2318
    %v2321 = vtanh.pop %v2320
    %2323 = vrot.lane.b32.xlu0 %v2321, 64
    %v2324 = vpop.permute.xlu0 %2323
    %v2326 = vmul.f32 %v2308, %v2324
    %v2327 = vld [vmem:[#allocation2 + $0x90] sm:$0xff]
    %v2328 = vld [vmem:[#allocation2 + $0x98] sm:$0xff]
    %v2329 = vadd.f32 %v2327, %v2224
    %v2330 = vadd.f32 %v2328, %v2226
    %v2331 = vmul.f32 %v2329, 0.5
    %v2332 = vmul.f32 %v2330, 0.5
    %v2333 = vtanh.pop %v2331
    %v2334 = vtanh.pop %v2332
    %v2335 = vmul.f32 %v2333, 0.5
    %v2336 = vmul.f32 %v2334, 0.5
    %v2337 = vadd.f32 %v2335, 0.5
    %v2338 = vadd.f32 %v2336, 0.5
    %v2339 = vtanh.pop %v2330
    %v2340 = vmul.f32 %v2337, %v2145
    %2342 = vrot.lane.b32.xlu0 %v2339, 64
    %v2343 = vpop.permute.xlu0 %2342
    %v2345 = vmul.f32 %v2337, %v2343
    %2347 = vrot.lane.b32.xlu0 %v2345, 64
    %v2348 = vpop.permute.xlu0 %2347
    %v2350 = vadd.f32 %v2340, %v2348
    %v2351 = vtanh.pop %v2350
    %2353 = vrot.lane.b32.xlu0 %v2351, 64
    %v2354 = vpop.permute.xlu0 %2353
    %v2356 = vmul.f32 %v2338, %v2354
    %2358 = vrot.lane.b32.xlu0 %v2326, 64
    %v2359 = vpop.permute.xlu0 %2358
    %v2361 = vsel %vm515, %v2356, %v2359
    %2362 = vmatprep.subr.mxu0 %v424
    %2363 = vmatpush1.msra.mxu0 %v423
    %2364 = vmatprep.subr.mxu0 %v428
    %2365 = vmatpush1.msra.mxu0 %v427
    %2366 = vmatprep.subr.mxu0 %v432
    %2367 = vmatpush1.msra.mxu0 %v431
    %2368 = vmatprep.subr.mxu0 %v436
    %2369 = vmatpush1.msra.mxu0 %v435
    %2370 = vmatprep.subr.mxu0 %v440
    %2371 = vmatpush1.msra.mxu0 %v439
    %2372 = vmatprep.subr.mxu0 %v444
    %2373 = vmatpush1.msra.mxu0 %v443
    %2374 = vmatprep.subr.mxu0 %v448
    %2375 = vmatpush1.msra.mxu0 %v447
    %2376 = vmatprep.subr.mxu0 %v452
    %2377 = vmatpush1.msra.mxu0 %v451
    %2378 = vmatprep.subr.mxu0 %v456
    %2379 = vmatpush1.msra.mxu0 %v455
    %2380 = vmatprep.subr.mxu0 %v460
    %2381 = vmatpush1.msra.mxu0 %v459
    %2382 = vmatprep.subr.mxu0 %v464
    %2383 = vmatpush1.msra.mxu0 %v463
    %2384 = vmatprep.subr.mxu0 %v468
    %2385 = vmatpush1.msra.mxu0 %v467
    %2386 = vmatprep.subr.mxu0 %v472
    %2387 = vmatpush1.msra.mxu0 %v471
    %2388 = vmatprep.subr.mxu0 %v476
    %2389 = vmatpush1.msra.mxu0 %v475
    %2390 = vmatprep.subr.mxu0 %v480
    %2391 = vmatpush1.msra.mxu0 %v479
    %2392 = vmatprep.subr.mxu0 %v484
    %2393 = vmatpush1.msra.mxu0 %v483
    %2394 = vmatprep.subr.mxu0 0.0
    %2395 = vmatpush1.msra.mxu0 0.0
    %2396 = vmatprep.subr.mxu0 0.0
    %2397 = vmatpush1.msra.mxu0 0.0
    %2398 = vmatprep.subr.mxu0 0.0
    %2399 = vmatpush1.msra.mxu0 0.0
    %2400 = vmatprep.subr.mxu0 0.0
    %2401 = vmatpush1.msra.mxu0 0.0
    %2402 = vmatprep.subr.mxu0 0.0
    %2403 = vmatpush1.msra.mxu0 0.0
    %2404 = vmatprep.subr.mxu0 0.0
    %2405 = vmatpush1.msra.mxu0 0.0
    %2406 = vmatprep.subr.mxu0 0.0
    %2407 = vmatpush1.msra.mxu0 0.0
    %2408 = vmatprep.subr.mxu0 0.0
    %2409 = vmatpush1.msra.mxu0 0.0
    %2410 = vmatprep.subr.mxu0 0.0
    %2411 = vmatpush1.msra.mxu0 0.0
    %2412 = vmatprep.subr.mxu0 0.0
    %2413 = vmatpush1.msra.mxu0 0.0
    %2414 = vmatprep.subr.mxu0 0.0
    %2415 = vmatpush1.msra.mxu0 0.0
    %2416 = vmatprep.subr.mxu0 0.0
    %2417 = vmatpush1.msra.mxu0 0.0
    %2418 = vmatprep.subr.mxu0 0.0
    %2419 = vmatpush1.msra.mxu0 0.0
    %2420 = vmatprep.subr.mxu0 0.0
    %2421 = vmatpush1.msra.mxu0 0.0
    %2422 = vmatprep.subr.mxu0 0.0
    %2423 = vmatpush1.msra.mxu0 0.0
    %2424 = vmatprep.subr.mxu0 0.0
    %2425 = vmatpush1.msra.mxu0 0.0
    %2426 = vmatprep.mubr.f32.mxu0 0.0
    %2427 = vmatmul.mubr.f32.gmra.mrb[0].mxu0 %v2361
    %v2428 = vpop.f32.mrb[0].mxu0
    %v2429 = vadd.f32 0.0, %v2428
    %v2430 = vpop.f32.mrb[0].mxu0
    %v2431 = vadd.f32 0.0, %v2430
    %2432 = vdwg.mxu0
    %2433 = vmatprep.subr.mxu0 %v426
    %2434 = vmatpush1.msra.mxu0 %v425
    %2435 = vmatprep.subr.mxu0 %v430
    %2436 = vmatpush1.msra.mxu0 %v429
    %2437 = vmatprep.subr.mxu0 %v434
    %2438 = vmatpush1.msra.mxu0 %v433
    %2439 = vmatprep.subr.mxu0 %v438
    %2440 = vmatpush1.msra.mxu0 %v437
    %2441 = vmatprep.subr.mxu0 %v442
    %2442 = vmatpush1.msra.mxu0 %v441
    %2443 = vmatprep.subr.mxu0 %v446
    %2444 = vmatpush1.msra.mxu0 %v445
    %2445 = vmatprep.subr.mxu0 %v450
    %2446 = vmatpush1.msra.mxu0 %v449
    %2447 = vmatprep.subr.mxu0 %v454
    %2448 = vmatpush1.msra.mxu0 %v453
    %2449 = vmatprep.subr.mxu0 %v458
    %2450 = vmatpush1.msra.mxu0 %v457
    %2451 = vmatprep.subr.mxu0 %v462
    %2452 = vmatpush1.msra.mxu0 %v461
    %2453 = vmatprep.subr.mxu0 %v466
    %2454 = vmatpush1.msra.mxu0 %v465
    %2455 = vmatprep.subr.mxu0 %v470
    %2456 = vmatpush1.msra.mxu0 %v469
    %2457 = vmatprep.subr.mxu0 %v474
    %2458 = vmatpush1.msra.mxu0 %v473
    %2459 = vmatprep.subr.mxu0 %v478
    %2460 = vmatpush1.msra.mxu0 %v477
    %2461 = vmatprep.subr.mxu0 %v482
    %2462 = vmatpush1.msra.mxu0 %v481
    %2463 = vmatprep.subr.mxu0 %v486
    %2464 = vmatpush1.msra.mxu0 %v485
    %2465 = vmatprep.subr.mxu0 0.0
    %2466 = vmatpush1.msra.mxu0 0.0
    %2467 = vmatprep.subr.mxu0 0.0
    %2468 = vmatpush1.msra.mxu0 0.0
    %2469 = vmatprep.subr.mxu0 0.0
    %2470 = vmatpush1.msra.mxu0 0.0
    %2471 = vmatprep.subr.mxu0 0.0
    %2472 = vmatpush1.msra.mxu0 0.0
    %2473 = vmatprep.subr.mxu0 0.0
    %2474 = vmatpush1.msra.mxu0 0.0
    %2475 = vmatprep.subr.mxu0 0.0
    %2476 = vmatpush1.msra.mxu0 0.0
    %2477 = vmatprep.subr.mxu0 0.0
    %2478 = vmatpush1.msra.mxu0 0.0
    %2479 = vmatprep.subr.mxu0 0.0
    %2480 = vmatpush1.msra.mxu0 0.0
    %2481 = vmatprep.subr.mxu0 0.0
    %2482 = vmatpush1.msra.mxu0 0.0
    %2483 = vmatprep.subr.mxu0 0.0
    %2484 = vmatpush1.msra.mxu0 0.0
    %2485 = vmatprep.subr.mxu0 0.0
    %2486 = vmatpush1.msra.mxu0 0.0
    %2487 = vmatprep.subr.mxu0 0.0
    %2488 = vmatpush1.msra.mxu0 0.0
    %2489 = vmatprep.subr.mxu0 0.0
    %2490 = vmatpush1.msra.mxu0 0.0
    %2491 = vmatprep.subr.mxu0 0.0
    %2492 = vmatpush1.msra.mxu0 0.0
    %2493 = vmatprep.subr.mxu0 0.0
    %2494 = vmatpush1.msra.mxu0 0.0
    %2495 = vmatprep.subr.mxu0 0.0
    %2496 = vmatpush1.msra.mxu0 0.0
    %2497 = vmatprep.mubr.f32.mxu0 0.0
    %2498 = vmatmul.mubr.f32.gmra.mrb[0].mxu0 %v2361
    %v2499 = vpop.f32.mrb[0].mxu0
    %v2500 = vadd.f32 0.0, %v2499
    %v2501 = vpop.f32.mrb[0].mxu0
    %v2502 = vadd.f32 0.0, %v2501
    %2503 = vdwg.mxu0
    %v2504 = vadd.f32 %v2500, %v416
    %v2505 = vadd.f32 %v2502, %v420
    %v2506 = vmul.f32 %v2504, 0.5
    %v2507 = vmul.f32 %v2505, 0.5
    %v2508 = vtanh.pop %v2506
    %v2509 = vtanh.pop %v2507
    %v2510 = vmul.f32 %v2508, 0.5
    %v2511 = vmul.f32 %v2509, 0.5
    %v2512 = vadd.f32 %v2510, 0.5
    %v2513 = vadd.f32 %v2511, 0.5
    %v2514 = vtanh.pop %v2505
    %v2515 = vmul.f32 %v2512, %v2320
    %2517 = vrot.lane.b32.xlu0 %v2514, 64
    %v2518 = vpop.permute.xlu0 %2517
    %v2520 = vmul.f32 %v2512, %v2518
    %2522 = vrot.lane.b32.xlu0 %v2520, 64
    %v2523 = vpop.permute.xlu0 %2522
    %v2525 = vadd.f32 %v2515, %v2523
    %v2526 = vtanh.pop %v2525
    %2528 = vrot.lane.b32.xlu0 %v2526, 64
    %v2529 = vpop.permute.xlu0 %2528
    %v2531 = vmul.f32 %v2513, %v2529
    %v2532 = vld [vmem:[#allocation2 + $0xa0] sm:$0xff]
    %v2533 = vld [vmem:[#allocation2 + $0xa8] sm:$0xff]
    %v2534 = vadd.f32 %v2532, %v2429
    %v2535 = vadd.f32 %v2533, %v2431
    %v2536 = vmul.f32 %v2534, 0.5
    %v2537 = vmul.f32 %v2535, 0.5
    %v2538 = vtanh.pop %v2536
    %v2539 = vtanh.pop %v2537
    %v2540 = vmul.f32 %v2538, 0.5
    %v2541 = vmul.f32 %v2539, 0.5
    %v2542 = vadd.f32 %v2540, 0.5
    %v2543 = vadd.f32 %v2541, 0.5
    %v2544 = vtanh.pop %v2535
    %v2545 = vmul.f32 %v2542, %v2350
    %2547 = vrot.lane.b32.xlu0 %v2544, 64
    %v2548 = vpop.permute.xlu0 %2547
    %v2550 = vmul.f32 %v2542, %v2548
    %2552 = vrot.lane.b32.xlu0 %v2550, 64
    %v2553 = vpop.permute.xlu0 %2552
    %v2555 = vadd.f32 %v2545, %v2553
    %v2556 = vtanh.pop %v2555
    %2558 = vrot.lane.b32.xlu0 %v2556, 64
    %v2559 = vpop.permute.xlu0 %2558
    %v2561 = vmul.f32 %v2543, %v2559
    %2563 = vrot.lane.b32.xlu0 %v2531, 64
    %v2564 = vpop.permute.xlu0 %2563
    %v2566 = vsel %vm515, %v2561, %v2564
    %2567 = vmatprep.subr.mxu0 %v424
    %2568 = vmatpush1.msra.mxu0 %v423
    %2569 = vmatprep.subr.mxu0 %v428
    %2570 = vmatpush1.msra.mxu0 %v427
    %2571 = vmatprep.subr.mxu0 %v432
    %2572 = vmatpush1.msra.mxu0 %v431
    %2573 = vmatprep.subr.mxu0 %v436
    %2574 = vmatpush1.msra.mxu0 %v435
    %2575 = vmatprep.subr.mxu0 %v440
    %2576 = vmatpush1.msra.mxu0 %v439
    %2577 = vmatprep.subr.mxu0 %v444
    %2578 = vmatpush1.msra.mxu0 %v443
    %2579 = vmatprep.subr.mxu0 %v448
    %2580 = vmatpush1.msra.mxu0 %v447
    %2581 = vmatprep.subr.mxu0 %v452
    %2582 = vmatpush1.msra.mxu0 %v451
    %2583 = vmatprep.subr.mxu0 %v456
    %2584 = vmatpush1.msra.mxu0 %v455
    %2585 = vmatprep.subr.mxu0 %v460
    %2586 = vmatpush1.msra.mxu0 %v459
    %2587 = vmatprep.subr.mxu0 %v464
    %2588 = vmatpush1.msra.mxu0 %v463
    %2589 = vmatprep.subr.mxu0 %v468
    %2590 = vmatpush1.msra.mxu0 %v467
    %2591 = vmatprep.subr.mxu0 %v472
    %2592 = vmatpush1.msra.mxu0 %v471
    %2593 = vmatprep.subr.mxu0 %v476
    %2594 = vmatpush1.msra.mxu0 %v475
    %2595 = vmatprep.subr.mxu0 %v480
    %2596 = vmatpush1.msra.mxu0 %v479
    %2597 = vmatprep.subr.mxu0 %v484
    %2598 = vmatpush1.msra.mxu0 %v483
    %2599 = vmatprep.subr.mxu0 0.0
    %2600 = vmatpush1.msra.mxu0 0.0
    %2601 = vmatprep.subr.mxu0 0.0
    %2602 = vmatpush1.msra.mxu0 0.0
    %2603 = vmatprep.subr.mxu0 0.0
    %2604 = vmatpush1.msra.mxu0 0.0
    %2605 = vmatprep.subr.mxu0 0.0
    %2606 = vmatpush1.msra.mxu0 0.0
    %2607 = vmatprep.subr.mxu0 0.0
    %2608 = vmatpush1.msra.mxu0 0.0
    %2609 = vmatprep.subr.mxu0 0.0
    %2610 = vmatpush1.msra.mxu0 0.0
    %2611 = vmatprep.subr.mxu0 0.0
    %2612 = vmatpush1.msra.mxu0 0.0
    %2613 = vmatprep.subr.mxu0 0.0
    %2614 = vmatpush1.msra.mxu0 0.0
    %2615 = vmatprep.subr.mxu0 0.0
    %2616 = vmatpush1.msra.mxu0 0.0
    %2617 = vmatprep.subr.mxu0 0.0
    %2618 = vmatpush1.msra.mxu0 0.0
    %2619 = vmatprep.subr.mxu0 0.0
    %2620 = vmatpush1.msra.mxu0 0.0
    %2621 = vmatprep.subr.mxu0 0.0
    %2622 = vmatpush1.msra.mxu0 0.0
    %2623 = vmatprep.subr.mxu0 0.0
    %2624 = vmatpush1.msra.mxu0 0.0
    %2625 = vmatprep.subr.mxu0 0.0
    %2626 = vmatpush1.msra.mxu0 0.0
    %2627 = vmatprep.subr.mxu0 0.0
    %2628 = vmatpush1.msra.mxu0 0.0
    %2629 = vmatprep.subr.mxu0 0.0
    %2630 = vmatpush1.msra.mxu0 0.0
    %2631 = vmatprep.mubr.f32.mxu0 0.0
    %2632 = vmatmul.mubr.f32.gmra.mrb[0].mxu0 %v2566
    %v2633 = vpop.f32.mrb[0].mxu0
    %v2634 = vadd.f32 0.0, %v2633
    %v2635 = vpop.f32.mrb[0].mxu0
    %v2636 = vadd.f32 0.0, %v2635
    %2637 = vdwg.mxu0
    %2638 = vmatprep.subr.mxu0 %v426
    %2639 = vmatpush1.msra.mxu0 %v425
    %2640 = vmatprep.subr.mxu0 %v430
    %2641 = vmatpush1.msra.mxu0 %v429
    %2642 = vmatprep.subr.mxu0 %v434
    %2643 = vmatpush1.msra.mxu0 %v433
    %2644 = vmatprep.subr.mxu0 %v438
    %2645 = vmatpush1.msra.mxu0 %v437
    %2646 = vmatprep.subr.mxu0 %v442
    %2647 = vmatpush1.msra.mxu0 %v441
    %2648 = vmatprep.subr.mxu0 %v446
    %2649 = vmatpush1.msra.mxu0 %v445
    %2650 = vmatprep.subr.mxu0 %v450
    %2651 = vmatpush1.msra.mxu0 %v449
    %2652 = vmatprep.subr.mxu0 %v454
    %2653 = vmatpush1.msra.mxu0 %v453
    %2654 = vmatprep.subr.mxu0 %v458
    %2655 = vmatpush1.msra.mxu0 %v457
    %2656 = vmatprep.subr.mxu0 %v462
    %2657 = vmatpush1.msra.mxu0 %v461
    %2658 = vmatprep.subr.mxu0 %v466
    %2659 = vmatpush1.msra.mxu0 %v465
    %2660 = vmatprep.subr.mxu0 %v470
    %2661 = vmatpush1.msra.mxu0 %v469
    %2662 = vmatprep.subr.mxu0 %v474
    %2663 = vmatpush1.msra.mxu0 %v473
    %2664 = vmatprep.subr.mxu0 %v478
    %2665 = vmatpush1.msra.mxu0 %v477
    %2666 = vmatprep.subr.mxu0 %v482
    %2667 = vmatpush1.msra.mxu0 %v481
    %2668 = vmatprep.subr.mxu0 %v486
    %2669 = vmatpush1.msra.mxu0 %v485
    %2670 = vmatprep.subr.mxu0 0.0
    %2671 = vmatpush1.msra.mxu0 0.0
    %2672 = vmatprep.subr.mxu0 0.0
    %2673 = vmatpush1.msra.mxu0 0.0
    %2674 = vmatprep.subr.mxu0 0.0
    %2675 = vmatpush1.msra.mxu0 0.0
    %2676 = vmatprep.subr.mxu0 0.0
    %2677 = vmatpush1.msra.mxu0 0.0
    %2678 = vmatprep.subr.mxu0 0.0
    %2679 = vmatpush1.msra.mxu0 0.0
    %2680 = vmatprep.subr.mxu0 0.0
    %2681 = vmatpush1.msra.mxu0 0.0
    %2682 = vmatprep.subr.mxu0 0.0
    %2683 = vmatpush1.msra.mxu0 0.0
    %2684 = vmatprep.subr.mxu0 0.0
    %2685 = vmatpush1.msra.mxu0 0.0
    %2686 = vmatprep.subr.mxu0 0.0
    %2687 = vmatpush1.msra.mxu0 0.0
    %2688 = vmatprep.subr.mxu0 0.0
    %2689 = vmatpush1.msra.mxu0 0.0
    %2690 = vmatprep.subr.mxu0 0.0
    %2691 = vmatpush1.msra.mxu0 0.0
    %2692 = vmatprep.subr.mxu0 0.0
    %2693 = vmatpush1.msra.mxu0 0.0
    %2694 = vmatprep.subr.mxu0 0.0
    %2695 = vmatpush1.msra.mxu0 0.0
    %2696 = vmatprep.subr.mxu0 0.0
    %2697 = vmatpush1.msra.mxu0 0.0
    %2698 = vmatprep.subr.mxu0 0.0
    %2699 = vmatpush1.msra.mxu0 0.0
    %2700 = vmatprep.subr.mxu0 0.0
    %2701 = vmatpush1.msra.mxu0 0.0
    %2702 = vmatprep.mubr.f32.mxu0 0.0
    %2703 = vmatmul.mubr.f32.gmra.mrb[0].mxu0 %v2566
    %v2704 = vpop.f32.mrb[0].mxu0
    %v2705 = vadd.f32 0.0, %v2704
    %v2706 = vpop.f32.mrb[0].mxu0
    %v2707 = vadd.f32 0.0, %v2706
    %2708 = vdwg.mxu0
    %v2709 = vadd.f32 %v2705, %v416
    %v2710 = vadd.f32 %v2707, %v420
    %v2711 = vmul.f32 %v2709, 0.5
    %v2712 = vmul.f32 %v2710, 0.5
    %v2713 = vtanh.pop %v2711
    %v2714 = vtanh.pop %v2712
    %v2715 = vmul.f32 %v2713, 0.5
    %v2716 = vmul.f32 %v2714, 0.5
    %v2717 = vadd.f32 %v2715, 0.5
    %v2718 = vadd.f32 %v2716, 0.5
    %v2719 = vtanh.pop %v2710
    %v2720 = vmul.f32 %v2717, %v2525
    %2722 = vrot.lane.b32.xlu0 %v2719, 64
    %v2723 = vpop.permute.xlu0 %2722
    %v2725 = vmul.f32 %v2717, %v2723
    %2727 = vrot.lane.b32.xlu0 %v2725, 64
    %v2728 = vpop.permute.xlu0 %2727
    %v2730 = vadd.f32 %v2720, %v2728
    %v2731 = vtanh.pop %v2730
    %2733 = vrot.lane.b32.xlu0 %v2731, 64
    %v2734 = vpop.permute.xlu0 %2733
    %v2736 = vmul.f32 %v2718, %v2734
    %v2737 = vld [vmem:[#allocation2 + $0xb0] sm:$0xff]
    %v2738 = vld [vmem:[#allocation2 + $0xb8] sm:$0xff]
    %v2739 = vadd.f32 %v2737, %v2634
    %v2740 = vadd.f32 %v2738, %v2636
    %v2741 = vmul.f32 %v2739, 0.5
    %v2742 = vmul.f32 %v2740, 0.5
    %v2743 = vtanh.pop %v2741
    %v2744 = vtanh.pop %v2742
    %v2745 = vmul.f32 %v2743, 0.5
    %v2746 = vmul.f32 %v2744, 0.5
    %v2747 = vadd.f32 %v2745, 0.5
    %v2748 = vadd.f32 %v2746, 0.5
    %v2749 = vtanh.pop %v2740
    %v2750 = vmul.f32 %v2747, %v2555
    %2752 = vrot.lane.b32.xlu0 %v2749, 64
    %v2753 = vpop.permute.xlu0 %2752
    %v2755 = vmul.f32 %v2747, %v2753
    %2757 = vrot.lane.b32.xlu0 %v2755, 64
    %v2758 = vpop.permute.xlu0 %2757
    %v2760 = vadd.f32 %v2750, %v2758
    %v2761 = vtanh.pop %v2760
    %2763 = vrot.lane.b32.xlu0 %v2761, 64
    %v2764 = vpop.permute.xlu0 %2763
    %v2766 = vmul.f32 %v2748, %v2764
    %2768 = vrot.lane.b32.xlu0 %v2736, 64
    %v2769 = vpop.permute.xlu0 %2768
    %v2771 = vsel %vm515, %v2766, %v2769
    %2772 = vmatprep.subr.mxu0 %v424
    %2773 = vmatpush1.msra.mxu0 %v423
    %2774 = vmatprep.subr.mxu0 %v428
    %2775 = vmatpush1.msra.mxu0 %v427
    %2776 = vmatprep.subr.mxu0 %v432
    %2777 = vmatpush1.msra.mxu0 %v431
    %2778 = vmatprep.subr.mxu0 %v436
    %2779 = vmatpush1.msra.mxu0 %v435
    %2780 = vmatprep.subr.mxu0 %v440
    %2781 = vmatpush1.msra.mxu0 %v439
    %2782 = vmatprep.subr.mxu0 %v444
    %2783 = vmatpush1.msra.mxu0 %v443
    %2784 = vmatprep.subr.mxu0 %v448
    %2785 = vmatpush1.msra.mxu0 %v447
    %2786 = vmatprep.subr.mxu0 %v452
    %2787 = vmatpush1.msra.mxu0 %v451
    %2788 = vmatprep.subr.mxu0 %v456
    %2789 = vmatpush1.msra.mxu0 %v455
    %2790 = vmatprep.subr.mxu0 %v460
    %2791 = vmatpush1.msra.mxu0 %v459
    %2792 = vmatprep.subr.mxu0 %v464
    %2793 = vmatpush1.msra.mxu0 %v463
    %2794 = vmatprep.subr.mxu0 %v468
    %2795 = vmatpush1.msra.mxu0 %v467
    %2796 = vmatprep.subr.mxu0 %v472
    %2797 = vmatpush1.msra.mxu0 %v471
    %2798 = vmatprep.subr.mxu0 %v476
    %2799 = vmatpush1.msra.mxu0 %v475
    %2800 = vmatprep.subr.mxu0 %v480
    %2801 = vmatpush1.msra.mxu0 %v479
    %2802 = vmatprep.subr.mxu0 %v484
    %2803 = vmatpush1.msra.mxu0 %v483
    %2804 = vmatprep.subr.mxu0 0.0
    %2805 = vmatpush1.msra.mxu0 0.0
    %2806 = vmatprep.subr.mxu0 0.0
    %2807 = vmatpush1.msra.mxu0 0.0
    %2808 = vmatprep.subr.mxu0 0.0
    %2809 = vmatpush1.msra.mxu0 0.0
    %2810 = vmatprep.subr.mxu0 0.0
    %2811 = vmatpush1.msra.mxu0 0.0
    %2812 = vmatprep.subr.mxu0 0.0
    %2813 = vmatpush1.msra.mxu0 0.0
    %2814 = vmatprep.subr.mxu0 0.0
    %2815 = vmatpush1.msra.mxu0 0.0
    %2816 = vmatprep.subr.mxu0 0.0
    %2817 = vmatpush1.msra.mxu0 0.0
    %2818 = vmatprep.subr.mxu0 0.0
    %2819 = vmatpush1.msra.mxu0 0.0
    %2820 = vmatprep.subr.mxu0 0.0
    %2821 = vmatpush1.msra.mxu0 0.0
    %2822 = vmatprep.subr.mxu0 0.0
    %2823 = vmatpush1.msra.mxu0 0.0
    %2824 = vmatprep.subr.mxu0 0.0
    %2825 = vmatpush1.msra.mxu0 0.0
    %2826 = vmatprep.subr.mxu0 0.0
    %2827 = vmatpush1.msra.mxu0 0.0
    %2828 = vmatprep.subr.mxu0 0.0
    %2829 = vmatpush1.msra.mxu0 0.0
    %2830 = vmatprep.subr.mxu0 0.0
    %2831 = vmatpush1.msra.mxu0 0.0
    %2832 = vmatprep.subr.mxu0 0.0
    %2833 = vmatpush1.msra.mxu0 0.0
    %2834 = vmatprep.subr.mxu0 0.0
    %2835 = vmatpush1.msra.mxu0 0.0
    %2836 = vmatprep.mubr.f32.mxu0 0.0
    %2837 = vmatmul.mubr.f32.gmra.mrb[0].mxu0 %v2771
    %v2838 = vpop.f32.mrb[0].mxu0
    %v2839 = vadd.f32 0.0, %v2838
    %v2840 = vpop.f32.mrb[0].mxu0
    %v2841 = vadd.f32 0.0, %v2840
    %2842 = vdwg.mxu0
    %2843 = vmatprep.subr.mxu0 %v426
    %2844 = vmatpush1.msra.mxu0 %v425
    %2845 = vmatprep.subr.mxu0 %v430
    %2846 = vmatpush1.msra.mxu0 %v429
    %2847 = vmatprep.subr.mxu0 %v434
    %2848 = vmatpush1.msra.mxu0 %v433
    %2849 = vmatprep.subr.mxu0 %v438
    %2850 = vmatpush1.msra.mxu0 %v437
    %2851 = vmatprep.subr.mxu0 %v442
    %2852 = vmatpush1.msra.mxu0 %v441
    %2853 = vmatprep.subr.mxu0 %v446
    %2854 = vmatpush1.msra.mxu0 %v445
    %2855 = vmatprep.subr.mxu0 %v450
    %2856 = vmatpush1.msra.mxu0 %v449
    %2857 = vmatprep.subr.mxu0 %v454
    %2858 = vmatpush1.msra.mxu0 %v453
    %2859 = vmatprep.subr.mxu0 %v458
    %2860 = vmatpush1.msra.mxu0 %v457
    %2861 = vmatprep.subr.mxu0 %v462
    %2862 = vmatpush1.msra.mxu0 %v461
    %2863 = vmatprep.subr.mxu0 %v466
    %2864 = vmatpush1.msra.mxu0 %v465
    %2865 = vmatprep.subr.mxu0 %v470
    %2866 = vmatpush1.msra.mxu0 %v469
    %2867 = vmatprep.subr.mxu0 %v474
    %2868 = vmatpush1.msra.mxu0 %v473
    %2869 = vmatprep.subr.mxu0 %v478
    %2870 = vmatpush1.msra.mxu0 %v477
    %2871 = vmatprep.subr.mxu0 %v482
    %2872 = vmatpush1.msra.mxu0 %v481
    %2873 = vmatprep.subr.mxu0 %v486
    %2874 = vmatpush1.msra.mxu0 %v485
    %2875 = vmatprep.subr.mxu0 0.0
    %2876 = vmatpush1.msra.mxu0 0.0
    %2877 = vmatprep.subr.mxu0 0.0
    %2878 = vmatpush1.msra.mxu0 0.0
    %2879 = vmatprep.subr.mxu0 0.0
    %2880 = vmatpush1.msra.mxu0 0.0
    %2881 = vmatprep.subr.mxu0 0.0
    %2882 = vmatpush1.msra.mxu0 0.0
    %2883 = vmatprep.subr.mxu0 0.0
    %2884 = vmatpush1.msra.mxu0 0.0
    %2885 = vmatprep.subr.mxu0 0.0
    %2886 = vmatpush1.msra.mxu0 0.0
    %2887 = vmatprep.subr.mxu0 0.0
    %2888 = vmatpush1.msra.mxu0 0.0
    %2889 = vmatprep.subr.mxu0 0.0
    %2890 = vmatpush1.msra.mxu0 0.0
    %2891 = vmatprep.subr.mxu0 0.0
    %2892 = vmatpush1.msra.mxu0 0.0
    %2893 = vmatprep.subr.mxu0 0.0
    %2894 = vmatpush1.msra.mxu0 0.0
    %2895 = vmatprep.subr.mxu0 0.0
    %2896 = vmatpush1.msra.mxu0 0.0
    %2897 = vmatprep.subr.mxu0 0.0
    %2898 = vmatpush1.msra.mxu0 0.0
    %2899 = vmatprep.subr.mxu0 0.0
    %2900 = vmatpush1.msra.mxu0 0.0
    %2901 = vmatprep.subr.mxu0 0.0
    %2902 = vmatpush1.msra.mxu0 0.0
    %2903 = vmatprep.subr.mxu0 0.0
    %2904 = vmatpush1.msra.mxu0 0.0
    %2905 = vmatprep.subr.mxu0 0.0
    %2906 = vmatpush1.msra.mxu0 0.0
    %2907 = vmatprep.mubr.f32.mxu0 0.0
    %2908 = vmatmul.mubr.f32.gmra.mrb[0].mxu0 %v2771
    %v2909 = vpop.f32.mrb[0].mxu0
    %v2910 = vadd.f32 0.0, %v2909
    %v2911 = vpop.f32.mrb[0].mxu0
    %v2912 = vadd.f32 0.0, %v2911
    %2913 = vdwg.mxu0
    %v2914 = vadd.f32 %v2910, %v416
    %v2915 = vadd.f32 %v2912, %v420
    %v2916 = vmul.f32 %v2914, 0.5
    %v2917 = vmul.f32 %v2915, 0.5
    %v2918 = vtanh.pop %v2916
    %v2919 = vtanh.pop %v2917
    %v2920 = vmul.f32 %v2918, 0.5
    %v2921 = vmul.f32 %v2919, 0.5
    %v2922 = vadd.f32 %v2920, 0.5
    %v2923 = vadd.f32 %v2921, 0.5
    %v2924 = vtanh.pop %v2915
    %v2925 = vmul.f32 %v2922, %v2730
    %2927 = vrot.lane.b32.xlu0 %v2924, 64
    %v2928 = vpop.permute.xlu0 %2927
    %v2930 = vmul.f32 %v2922, %v2928
    %2932 = vrot.lane.b32.xlu0 %v2930, 64
    %v2933 = vpop.permute.xlu0 %2932
    %v2935 = vadd.f32 %v2925, %v2933
    %v2936 = vtanh.pop %v2935
    %2938 = vrot.lane.b32.xlu0 %v2936, 64
    %v2939 = vpop.permute.xlu0 %2938
    %v2941 = vmul.f32 %v2923, %v2939
    %v2942 = vld [vmem:[#allocation2 + $0xc0] sm:$0xff]
    %v2943 = vld [vmem:[#allocation2 + $0xc8] sm:$0xff]
    %v2944 = vadd.f32 %v2942, %v2839
    %v2945 = vadd.f32 %v2943, %v2841
    %v2946 = vmul.f32 %v2944, 0.5
    %v2947 = vmul.f32 %v2945, 0.5
    %v2948 = vtanh.pop %v2946
    %v2949 = vtanh.pop %v2947
    %v2950 = vmul.f32 %v2948, 0.5
    %v2951 = vmul.f32 %v2949, 0.5
    %v2952 = vadd.f32 %v2950, 0.5
    %v2953 = vadd.f32 %v2951, 0.5
    %v2954 = vtanh.pop %v2945
    %v2955 = vmul.f32 %v2952, %v2760
    %2957 = vrot.lane.b32.xlu0 %v2954, 64
    %v2958 = vpop.permute.xlu0 %2957
    %v2960 = vmul.f32 %v2952, %v2958
    %2962 = vrot.lane.b32.xlu0 %v2960, 64
    %v2963 = vpop.permute.xlu0 %2962
    %v2965 = vadd.f32 %v2955, %v2963
    %v2966 = vtanh.pop %v2965
    %2968 = vrot.lane.b32.xlu0 %v2966, 64
    %v2969 = vpop.permute.xlu0 %2968
    %v2971 = vmul.f32 %v2953, %v2969
    %2973 = vrot.lane.b32.xlu0 %v2941, 64
    %v2974 = vpop.permute.xlu0 %2973
    %v2976 = vsel %vm515, %v2971, %v2974
    %2977 = vmatprep.subr.mxu0 %v424
    %2978 = vmatpush1.msra.mxu0 %v423
    %2979 = vmatprep.subr.mxu0 %v428
    %2980 = vmatpush1.msra.mxu0 %v427
    %2981 = vmatprep.subr.mxu0 %v432
    %2982 = vmatpush1.msra.mxu0 %v431
    %2983 = vmatprep.subr.mxu0 %v436
    %2984 = vmatpush1.msra.mxu0 %v435
    %2985 = vmatprep.subr.mxu0 %v440
    %2986 = vmatpush1.msra.mxu0 %v439
    %2987 = vmatprep.subr.mxu0 %v444
    %2988 = vmatpush1.msra.mxu0 %v443
    %2989 = vmatprep.subr.mxu0 %v448
    %2990 = vmatpush1.msra.mxu0 %v447
    %2991 = vmatprep.subr.mxu0 %v452
    %2992 = vmatpush1.msra.mxu0 %v451
    %2993 = vmatprep.subr.mxu0 %v456
    %2994 = vmatpush1.msra.mxu0 %v455
    %2995 = vmatprep.subr.mxu0 %v460
    %2996 = vmatpush1.msra.mxu0 %v459
    %2997 = vmatprep.subr.mxu0 %v464
    %2998 = vmatpush1.msra.mxu0 %v463
    %2999 = vmatprep.subr.mxu0 %v468
    %3000 = vmatpush1.msra.mxu0 %v467
    %3001 = vmatprep.subr.mxu0 %v472
    %3002 = vmatpush1.msra.mxu0 %v471
    %3003 = vmatprep.subr.mxu0 %v476
    %3004 = vmatpush1.msra.mxu0 %v475
    %3005 = vmatprep.subr.mxu0 %v480
    %3006 = vmatpush1.msra.mxu0 %v479
    %3007 = vmatprep.subr.mxu0 %v484
    %3008 = vmatpush1.msra.mxu0 %v483
    %3009 = vmatprep.subr.mxu0 0.0
    %3010 = vmatpush1.msra.mxu0 0.0
    %3011 = vmatprep.subr.mxu0 0.0
    %3012 = vmatpush1.msra.mxu0 0.0
    %3013 = vmatprep.subr.mxu0 0.0
    %3014 = vmatpush1.msra.mxu0 0.0
    %3015 = vmatprep.subr.mxu0 0.0
    %3016 = vmatpush1.msra.mxu0 0.0
    %3017 = vmatprep.subr.mxu0 0.0
    %3018 = vmatpush1.msra.mxu0 0.0
    %3019 = vmatprep.subr.mxu0 0.0
    %3020 = vmatpush1.msra.mxu0 0.0
    %3021 = vmatprep.subr.mxu0 0.0
    %3022 = vmatpush1.msra.mxu0 0.0
    %3023 = vmatprep.subr.mxu0 0.0
    %3024 = vmatpush1.msra.mxu0 0.0
    %3025 = vmatprep.subr.mxu0 0.0
    %3026 = vmatpush1.msra.mxu0 0.0
    %3027 = vmatprep.subr.mxu0 0.0
    %3028 = vmatpush1.msra.mxu0 0.0
    %3029 = vmatprep.subr.mxu0 0.0
    %3030 = vmatpush1.msra.mxu0 0.0
    %3031 = vmatprep.subr.mxu0 0.0
    %3032 = vmatpush1.msra.mxu0 0.0
    %3033 = vmatprep.subr.mxu0 0.0
    %3034 = vmatpush1.msra.mxu0 0.0
    %3035 = vmatprep.subr.mxu0 0.0
    %3036 = vmatpush1.msra.mxu0 0.0
    %3037 = vmatprep.subr.mxu0 0.0
    %3038 = vmatpush1.msra.mxu0 0.0
    %3039 = vmatprep.subr.mxu0 0.0
    %3040 = vmatpush1.msra.mxu0 0.0
    %3041 = vmatprep.mubr.f32.mxu0 0.0
    %3042 = vmatmul.mubr.f32.gmra.mrb[0].mxu0 %v2976
    %v3043 = vpop.f32.mrb[0].mxu0
    %v3044 = vadd.f32 0.0, %v3043
    %v3045 = vpop.f32.mrb[0].mxu0
    %v3046 = vadd.f32 0.0, %v3045
    %3047 = vdwg.mxu0
    %3048 = vmatprep.subr.mxu0 %v426
    %3049 = vmatpush1.msra.mxu0 %v425
    %3050 = vmatprep.subr.mxu0 %v430
    %3051 = vmatpush1.msra.mxu0 %v429
    %3052 = vmatprep.subr.mxu0 %v434
    %3053 = vmatpush1.msra.mxu0 %v433
    %3054 = vmatprep.subr.mxu0 %v438
    %3055 = vmatpush1.msra.mxu0 %v437
    %3056 = vmatprep.subr.mxu0 %v442
    %3057 = vmatpush1.msra.mxu0 %v441
    %3058 = vmatprep.subr.mxu0 %v446
    %3059 = vmatpush1.msra.mxu0 %v445
    %3060 = vmatprep.subr.mxu0 %v450
    %3061 = vmatpush1.msra.mxu0 %v449
    %3062 = vmatprep.subr.mxu0 %v454
    %3063 = vmatpush1.msra.mxu0 %v453
    %3064 = vmatprep.subr.mxu0 %v458
    %3065 = vmatpush1.msra.mxu0 %v457
    %3066 = vmatprep.subr.mxu0 %v462
    %3067 = vmatpush1.msra.mxu0 %v461
    %3068 = vmatprep.subr.mxu0 %v466
    %3069 = vmatpush1.msra.mxu0 %v465
    %3070 = vmatprep.subr.mxu0 %v470
    %3071 = vmatpush1.msra.mxu0 %v469
    %3072 = vmatprep.subr.mxu0 %v474
    %3073 = vmatpush1.msra.mxu0 %v473
    %3074 = vmatprep.subr.mxu0 %v478
    %3075 = vmatpush1.msra.mxu0 %v477
    %3076 = vmatprep.subr.mxu0 %v482
    %3077 = vmatpush1.msra.mxu0 %v481
    %3078 = vmatprep.subr.mxu0 %v486
    %3079 = vmatpush1.msra.mxu0 %v485
    %3080 = vmatprep.subr.mxu0 0.0
    %3081 = vmatpush1.msra.mxu0 0.0
    %3082 = vmatprep.subr.mxu0 0.0
    %3083 = vmatpush1.msra.mxu0 0.0
    %3084 = vmatprep.subr.mxu0 0.0
    %3085 = vmatpush1.msra.mxu0 0.0
    %3086 = vmatprep.subr.mxu0 0.0
    %3087 = vmatpush1.msra.mxu0 0.0
    %3088 = vmatprep.subr.mxu0 0.0
    %3089 = vmatpush1.msra.mxu0 0.0
    %3090 = vmatprep.subr.mxu0 0.0
    %3091 = vmatpush1.msra.mxu0 0.0
    %3092 = vmatprep.subr.mxu0 0.0
    %3093 = vmatpush1.msra.mxu0 0.0
    %3094 = vmatprep.subr.mxu0 0.0
    %3095 = vmatpush1.msra.mxu0 0.0
    %3096 = vmatprep.subr.mxu0 0.0
    %3097 = vmatpush1.msra.mxu0 0.0
    %3098 = vmatprep.subr.mxu0 0.0
    %3099 = vmatpush1.msra.mxu0 0.0
    %3100 = vmatprep.subr.mxu0 0.0
    %3101 = vmatpush1.msra.mxu0 0.0
    %3102 = vmatprep.subr.mxu0 0.0
    %3103 = vmatpush1.msra.mxu0 0.0
    %3104 = vmatprep.subr.mxu0 0.0
    %3105 = vmatpush1.msra.mxu0 0.0
    %3106 = vmatprep.subr.mxu0 0.0
    %3107 = vmatpush1.msra.mxu0 0.0
    %3108 = vmatprep.subr.mxu0 0.0
    %3109 = vmatpush1.msra.mxu0 0.0
    %3110 = vmatprep.subr.mxu0 0.0
    %3111 = vmatpush1.msra.mxu0 0.0
    %3112 = vmatprep.mubr.f32.mxu0 0.0
    %3113 = vmatmul.mubr.f32.gmra.mrb[0].mxu0 %v2976
    %v3114 = vpop.f32.mrb[0].mxu0
    %v3115 = vadd.f32 0.0, %v3114
    %v3116 = vpop.f32.mrb[0].mxu0
    %v3117 = vadd.f32 0.0, %v3116
    %3118 = vdwg.mxu0
    %v3119 = vadd.f32 %v3115, %v416
    %v3120 = vadd.f32 %v3117, %v420
    %v3121 = vmul.f32 %v3119, 0.5
    %v3122 = vmul.f32 %v3120, 0.5
    %v3123 = vtanh.pop %v3121
    %v3124 = vtanh.pop %v3122
    %v3125 = vmul.f32 %v3123, 0.5
    %v3126 = vmul.f32 %v3124, 0.5
    %v3127 = vadd.f32 %v3125, 0.5
    %v3128 = vadd.f32 %v3126, 0.5
    %v3129 = vtanh.pop %v3120
    %v3130 = vmul.f32 %v3127, %v2935
    %3132 = vrot.lane.b32.xlu0 %v3129, 64
    %v3133 = vpop.permute.xlu0 %3132
    %v3135 = vmul.f32 %v3127, %v3133
    %3137 = vrot.lane.b32.xlu0 %v3135, 64
    %v3138 = vpop.permute.xlu0 %3137
    %v3140 = vadd.f32 %v3130, %v3138
    %v3141 = vtanh.pop %v3140
    %3143 = vrot.lane.b32.xlu0 %v3141, 64
    %v3144 = vpop.permute.xlu0 %3143
    %v3146 = vmul.f32 %v3128, %v3144
    %v3147 = vld [vmem:[#allocation2 + $0xd0] sm:$0xff]
    %v3148 = vld [vmem:[#allocation2 + $0xd8] sm:$0xff]
    %v3149 = vadd.f32 %v3147, %v3044
    %v3150 = vadd.f32 %v3148, %v3046
    %v3151 = vmul.f32 %v3149, 0.5
    %v3152 = vmul.f32 %v3150, 0.5
    %v3153 = vtanh.pop %v3151
    %v3154 = vtanh.pop %v3152
    %v3155 = vmul.f32 %v3153, 0.5
    %v3156 = vmul.f32 %v3154, 0.5
    %v3157 = vadd.f32 %v3155, 0.5
    %v3158 = vadd.f32 %v3156, 0.5
    %v3159 = vtanh.pop %v3150
    %v3160 = vmul.f32 %v3157, %v2965
    %3162 = vrot.lane.b32.xlu0 %v3159, 64
    %v3163 = vpop.permute.xlu0 %3162
    %v3165 = vmul.f32 %v3157, %v3163
    %3167 = vrot.lane.b32.xlu0 %v3165, 64
    %v3168 = vpop.permute.xlu0 %3167
    %v3170 = vadd.f32 %v3160, %v3168
    %v3171 = vtanh.pop %v3170
    %3173 = vrot.lane.b32.xlu0 %v3171, 64
    %v3174 = vpop.permute.xlu0 %3173
    %v3176 = vmul.f32 %v3158, %v3174
    %3178 = vrot.lane.b32.xlu0 %v3146, 64
    %v3179 = vpop.permute.xlu0 %3178
    %v3181 = vsel %vm515, %v3176, %v3179
    %3182 = vmatprep.subr.mxu0 %v424
    %3183 = vmatpush1.msra.mxu0 %v423
    %3184 = vmatprep.subr.mxu0 %v428
    %3185 = vmatpush1.msra.mxu0 %v427
    %3186 = vmatprep.subr.mxu0 %v432
    %3187 = vmatpush1.msra.mxu0 %v431
    %3188 = vmatprep.subr.mxu0 %v436
    %3189 = vmatpush1.msra.mxu0 %v435
    %3190 = vmatprep.subr.mxu0 %v440
    %3191 = vmatpush1.msra.mxu0 %v439
    %3192 = vmatprep.subr.mxu0 %v444
    %3193 = vmatpush1.msra.mxu0 %v443
    %3194 = vmatprep.subr.mxu0 %v448
    %3195 = vmatpush1.msra.mxu0 %v447
    %3196 = vmatprep.subr.mxu0 %v452
    %3197 = vmatpush1.msra.mxu0 %v451
    %3198 = vmatprep.subr.mxu0 %v456
    %3199 = vmatpush1.msra.mxu0 %v455
    %3200 = vmatprep.subr.mxu0 %v460
    %3201 = vmatpush1.msra.mxu0 %v459
    %3202 = vmatprep.subr.mxu0 %v464
    %3203 = vmatpush1.msra.mxu0 %v463
    %3204 = vmatprep.subr.mxu0 %v468
    %3205 = vmatpush1.msra.mxu0 %v467
    %3206 = vmatprep.subr.mxu0 %v472
    %3207 = vmatpush1.msra.mxu0 %v471
    %3208 = vmatprep.subr.mxu0 %v476
    %3209 = vmatpush1.msra.mxu0 %v475
    %3210 = vmatprep.subr.mxu0 %v480
    %3211 = vmatpush1.msra.mxu0 %v479
    %3212 = vmatprep.subr.mxu0 %v484
    %3213 = vmatpush1.msra.mxu0 %v483
    %3214 = vmatprep.subr.mxu0 0.0
    %3215 = vmatpush1.msra.mxu0 0.0
    %3216 = vmatprep.subr.mxu0 0.0
    %3217 = vmatpush1.msra.mxu0 0.0
    %3218 = vmatprep.subr.mxu0 0.0
    %3219 = vmatpush1.msra.mxu0 0.0
    %3220 = vmatprep.subr.mxu0 0.0
    %3221 = vmatpush1.msra.mxu0 0.0
    %3222 = vmatprep.subr.mxu0 0.0
    %3223 = vmatpush1.msra.mxu0 0.0
    %3224 = vmatprep.subr.mxu0 0.0
    %3225 = vmatpush1.msra.mxu0 0.0
    %3226 = vmatprep.subr.mxu0 0.0
    %3227 = vmatpush1.msra.mxu0 0.0
    %3228 = vmatprep.subr.mxu0 0.0
    %3229 = vmatpush1.msra.mxu0 0.0
    %3230 = vmatprep.subr.mxu0 0.0
    %3231 = vmatpush1.msra.mxu0 0.0
    %3232 = vmatprep.subr.mxu0 0.0
    %3233 = vmatpush1.msra.mxu0 0.0
    %3234 = vmatprep.subr.mxu0 0.0
    %3235 = vmatpush1.msra.mxu0 0.0
    %3236 = vmatprep.subr.mxu0 0.0
    %3237 = vmatpush1.msra.mxu0 0.0
    %3238 = vmatprep.subr.mxu0 0.0
    %3239 = vmatpush1.msra.mxu0 0.0
    %3240 = vmatprep.subr.mxu0 0.0
    %3241 = vmatpush1.msra.mxu0 0.0
    %3242 = vmatprep.subr.mxu0 0.0
    %3243 = vmatpush1.msra.mxu0 0.0
    %3244 = vmatprep.subr.mxu0 0.0
    %3245 = vmatpush1.msra.mxu0 0.0
    %3246 = vmatprep.mubr.f32.mxu0 0.0
    %3247 = vmatmul.mubr.f32.gmra.mrb[0].mxu0 %v3181
    %v3248 = vpop.f32.mrb[0].mxu0
    %v3249 = vadd.f32 0.0, %v3248
    %v3250 = vpop.f32.mrb[0].mxu0
    %v3251 = vadd.f32 0.0, %v3250
    %3252 = vdwg.mxu0
    %3253 = vmatprep.subr.mxu0 %v426
    %3254 = vmatpush1.msra.mxu0 %v425
    %3255 = vmatprep.subr.mxu0 %v430
    %3256 = vmatpush1.msra.mxu0 %v429
    %3257 = vmatprep.subr.mxu0 %v434
    %3258 = vmatpush1.msra.mxu0 %v433
    %3259 = vmatprep.subr.mxu0 %v438
    %3260 = vmatpush1.msra.mxu0 %v437
    %3261 = vmatprep.subr.mxu0 %v442
    %3262 = vmatpush1.msra.mxu0 %v441
    %3263 = vmatprep.subr.mxu0 %v446
    %3264 = vmatpush1.msra.mxu0 %v445
    %3265 = vmatprep.subr.mxu0 %v450
    %3266 = vmatpush1.msra.mxu0 %v449
    %3267 = vmatprep.subr.mxu0 %v454
    %3268 = vmatpush1.msra.mxu0 %v453
    %3269 = vmatprep.subr.mxu0 %v458
    %3270 = vmatpush1.msra.mxu0 %v457
    %3271 = vmatprep.subr.mxu0 %v462
    %3272 = vmatpush1.msra.mxu0 %v461
    %3273 = vmatprep.subr.mxu0 %v466
    %3274 = vmatpush1.msra.mxu0 %v465
    %3275 = vmatprep.subr.mxu0 %v470
    %3276 = vmatpush1.msra.mxu0 %v469
    %3277 = vmatprep.subr.mxu0 %v474
    %3278 = vmatpush1.msra.mxu0 %v473
    %3279 = vmatprep.subr.mxu0 %v478
    %3280 = vmatpush1.msra.mxu0 %v477
    %3281 = vmatprep.subr.mxu0 %v482
    %3282 = vmatpush1.msra.mxu0 %v481
    %3283 = vmatprep.subr.mxu0 %v486
    %3284 = vmatpush1.msra.mxu0 %v485
    %3285 = vmatprep.subr.mxu0 0.0
    %3286 = vmatpush1.msra.mxu0 0.0
    %3287 = vmatprep.subr.mxu0 0.0
    %3288 = vmatpush1.msra.mxu0 0.0
    %3289 = vmatprep.subr.mxu0 0.0
    %3290 = vmatpush1.msra.mxu0 0.0
    %3291 = vmatprep.subr.mxu0 0.0
    %3292 = vmatpush1.msra.mxu0 0.0
    %3293 = vmatprep.subr.mxu0 0.0
    %3294 = vmatpush1.msra.mxu0 0.0
    %3295 = vmatprep.subr.mxu0 0.0
    %3296 = vmatpush1.msra.mxu0 0.0
    %3297 = vmatprep.subr.mxu0 0.0
    %3298 = vmatpush1.msra.mxu0 0.0
    %3299 = vmatprep.subr.mxu0 0.0
    %3300 = vmatpush1.msra.mxu0 0.0
    %3301 = vmatprep.subr.mxu0 0.0
    %3302 = vmatpush1.msra.mxu0 0.0
    %3303 = vmatprep.subr.mxu0 0.0
    %3304 = vmatpush1.msra.mxu0 0.0
    %3305 = vmatprep.subr.mxu0 0.0
    %3306 = vmatpush1.msra.mxu0 0.0
    %3307 = vmatprep.subr.mxu0 0.0
    %3308 = vmatpush1.msra.mxu0 0.0
    %3309 = vmatprep.subr.mxu0 0.0
    %3310 = vmatpush1.msra.mxu0 0.0
    %3311 = vmatprep.subr.mxu0 0.0
    %3312 = vmatpush1.msra.mxu0 0.0
    %3313 = vmatprep.subr.mxu0 0.0
    %3314 = vmatpush1.msra.mxu0 0.0
    %3315 = vmatprep.subr.mxu0 0.0
    %3316 = vmatpush1.msra.mxu0 0.0
    %3317 = vmatprep.mubr.f32.mxu0 0.0
    %3318 = vmatmul.mubr.f32.gmra.mrb[0].mxu0 %v3181
    %v3319 = vpop.f32.mrb[0].mxu0
    %v3320 = vadd.f32 0.0, %v3319
    %v3321 = vpop.f32.mrb[0].mxu0
    %v3322 = vadd.f32 0.0, %v3321
    %3323 = vdwg.mxu0
    %v3324 = vadd.f32 %v3320, %v416
    %v3325 = vadd.f32 %v3322, %v420
    %v3326 = vmul.f32 %v3324, 0.5
    %v3327 = vmul.f32 %v3325, 0.5
    %v3328 = vtanh.pop %v3326
    %v3329 = vtanh.pop %v3327
    %v3330 = vmul.f32 %v3328, 0.5
    %v3331 = vmul.f32 %v3329, 0.5
    %v3332 = vadd.f32 %v3330, 0.5
    %v3333 = vadd.f32 %v3331, 0.5
    %v3334 = vtanh.pop %v3325
    %v3335 = vmul.f32 %v3332, %v3140
    %3337 = vrot.lane.b32.xlu0 %v3334, 64
    %v3338 = vpop.permute.xlu0 %3337
    %v3340 = vmul.f32 %v3332, %v3338
    %3342 = vrot.lane.b32.xlu0 %v3340, 64
    %v3343 = vpop.permute.xlu0 %3342
    %v3345 = vadd.f32 %v3335, %v3343
    %v3346 = vtanh.pop %v3345
    %3348 = vrot.lane.b32.xlu0 %v3346, 64
    %v3349 = vpop.permute.xlu0 %3348
    %v3351 = vmul.f32 %v3333, %v3349
    %v3352 = vld [vmem:[#allocation2 + $0xe0] sm:$0xff]
    %v3353 = vld [vmem:[#allocation2 + $0xe8] sm:$0xff]
    %v3354 = vadd.f32 %v3352, %v3249
    %v3355 = vadd.f32 %v3353, %v3251
    %v3356 = vmul.f32 %v3354, 0.5
    %v3357 = vmul.f32 %v3355, 0.5
    %v3358 = vtanh.pop %v3356
    %v3359 = vtanh.pop %v3357
    %v3360 = vmul.f32 %v3358, 0.5
    %v3361 = vmul.f32 %v3359, 0.5
    %v3362 = vadd.f32 %v3360, 0.5
    %v3363 = vadd.f32 %v3361, 0.5
    %v3364 = vtanh.pop %v3355
    %v3365 = vmul.f32 %v3362, %v3170
    %3367 = vrot.lane.b32.xlu0 %v3364, 64
    %v3368 = vpop.permute.xlu0 %3367
    %v3370 = vmul.f32 %v3362, %v3368
    %3372 = vrot.lane.b32.xlu0 %v3370, 64
    %v3373 = vpop.permute.xlu0 %3372
    %v3375 = vadd.f32 %v3365, %v3373
    %v3376 = vtanh.pop %v3375
    %3378 = vrot.lane.b32.xlu0 %v3376, 64
    %v3379 = vpop.permute.xlu0 %3378
    %v3381 = vmul.f32 %v3363, %v3379
    %3383 = vrot.lane.b32.xlu0 %v3351, 64
    %v3384 = vpop.permute.xlu0 %3383
    %v3386 = vsel %vm515, %v3381, %v3384
    %3387 = vmatprep.subr.mxu0 %v424
    %3388 = vmatpush1.msra.mxu0 %v423
    %3389 = vmatprep.subr.mxu0 %v428
    %3390 = vmatpush1.msra.mxu0 %v427
    %3391 = vmatprep.subr.mxu0 %v432
    %3392 = vmatpush1.msra.mxu0 %v431
    %3393 = vmatprep.subr.mxu0 %v436
    %3394 = vmatpush1.msra.mxu0 %v435
    %3395 = vmatprep.subr.mxu0 %v440
    %3396 = vmatpush1.msra.mxu0 %v439
    %3397 = vmatprep.subr.mxu0 %v444
    %3398 = vmatpush1.msra.mxu0 %v443
    %3399 = vmatprep.subr.mxu0 %v448
    %3400 = vmatpush1.msra.mxu0 %v447
    %3401 = vmatprep.subr.mxu0 %v452
    %3402 = vmatpush1.msra.mxu0 %v451
    %3403 = vmatprep.subr.mxu0 %v456
    %3404 = vmatpush1.msra.mxu0 %v455
    %3405 = vmatprep.subr.mxu0 %v460
    %3406 = vmatpush1.msra.mxu0 %v459
    %3407 = vmatprep.subr.mxu0 %v464
    %3408 = vmatpush1.msra.mxu0 %v463
    %3409 = vmatprep.subr.mxu0 %v468
    %3410 = vmatpush1.msra.mxu0 %v467
    %3411 = vmatprep.subr.mxu0 %v472
    %3412 = vmatpush1.msra.mxu0 %v471
    %3413 = vmatprep.subr.mxu0 %v476
    %3414 = vmatpush1.msra.mxu0 %v475
    %3415 = vmatprep.subr.mxu0 %v480
    %3416 = vmatpush1.msra.mxu0 %v479
    %3417 = vmatprep.subr.mxu0 %v484
    %3418 = vmatpush1.msra.mxu0 %v483
    %3419 = vmatprep.subr.mxu0 0.0
    %3420 = vmatpush1.msra.mxu0 0.0
    %3421 = vmatprep.subr.mxu0 0.0
    %3422 = vmatpush1.msra.mxu0 0.0
    %3423 = vmatprep.subr.mxu0 0.0
    %3424 = vmatpush1.msra.mxu0 0.0
    %3425 = vmatprep.subr.mxu0 0.0
    %3426 = vmatpush1.msra.mxu0 0.0
    %3427 = vmatprep.subr.mxu0 0.0
    %3428 = vmatpush1.msra.mxu0 0.0
    %3429 = vmatprep.subr.mxu0 0.0
    %3430 = vmatpush1.msra.mxu0 0.0
    %3431 = vmatprep.subr.mxu0 0.0
    %3432 = vmatpush1.msra.mxu0 0.0
    %3433 = vmatprep.subr.mxu0 0.0
    %3434 = vmatpush1.msra.mxu0 0.0
    %3435 = vmatprep.subr.mxu0 0.0
    %3436 = vmatpush1.msra.mxu0 0.0
    %3437 = vmatprep.subr.mxu0 0.0
    %3438 = vmatpush1.msra.mxu0 0.0
    %3439 = vmatprep.subr.mxu0 0.0
    %3440 = vmatpush1.msra.mxu0 0.0
    %3441 = vmatprep.subr.mxu0 0.0
    %3442 = vmatpush1.msra.mxu0 0.0
    %3443 = vmatprep.subr.mxu0 0.0
    %3444 = vmatpush1.msra.mxu0 0.0
    %3445 = vmatprep.subr.mxu0 0.0
    %3446 = vmatpush1.msra.mxu0 0.0
    %3447 = vmatprep.subr.mxu0 0.0
    %3448 = vmatpush1.msra.mxu0 0.0
    %3449 = vmatprep.subr.mxu0 0.0
    %3450 = vmatpush1.msra.mxu0 0.0
    %3451 = vmatprep.mubr.f32.mxu0 0.0
    %3452 = vmatmul.mubr.f32.gmra.mrb[0].mxu0 %v3386
    %v3453 = vpop.f32.mrb[0].mxu0
    %v3454 = vadd.f32 0.0, %v3453
    %v3455 = vpop.f32.mrb[0].mxu0
    %v3456 = vadd.f32 0.0, %v3455
    %3457 = vdwg.mxu0
    %3458 = vmatprep.subr.mxu0 %v426
    %3459 = vmatpush1.msra.mxu0 %v425
    %3460 = vmatprep.subr.mxu0 %v430
    %3461 = vmatpush1.msra.mxu0 %v429
    %3462 = vmatprep.subr.mxu0 %v434
    %3463 = vmatpush1.msra.mxu0 %v433
    %3464 = vmatprep.subr.mxu0 %v438
    %3465 = vmatpush1.msra.mxu0 %v437
    %3466 = vmatprep.subr.mxu0 %v442
    %3467 = vmatpush1.msra.mxu0 %v441
    %3468 = vmatprep.subr.mxu0 %v446
    %3469 = vmatpush1.msra.mxu0 %v445
    %3470 = vmatprep.subr.mxu0 %v450
    %3471 = vmatpush1.msra.mxu0 %v449
    %3472 = vmatprep.subr.mxu0 %v454
    %3473 = vmatpush1.msra.mxu0 %v453
    %3474 = vmatprep.subr.mxu0 %v458
    %3475 = vmatpush1.msra.mxu0 %v457
    %3476 = vmatprep.subr.mxu0 %v462
    %3477 = vmatpush1.msra.mxu0 %v461
    %3478 = vmatprep.subr.mxu0 %v466
    %3479 = vmatpush1.msra.mxu0 %v465
    %3480 = vmatprep.subr.mxu0 %v470
    %3481 = vmatpush1.msra.mxu0 %v469
    %3482 = vmatprep.subr.mxu0 %v474
    %3483 = vmatpush1.msra.mxu0 %v473
    %3484 = vmatprep.subr.mxu0 %v478
    %3485 = vmatpush1.msra.mxu0 %v477
    %3486 = vmatprep.subr.mxu0 %v482
    %3487 = vmatpush1.msra.mxu0 %v481
    %3488 = vmatprep.subr.mxu0 %v486
    %3489 = vmatpush1.msra.mxu0 %v485
    %3490 = vmatprep.subr.mxu0 0.0
    %3491 = vmatpush1.msra.mxu0 0.0
    %3492 = vmatprep.subr.mxu0 0.0
    %3493 = vmatpush1.msra.mxu0 0.0
    %3494 = vmatprep.subr.mxu0 0.0
    %3495 = vmatpush1.msra.mxu0 0.0
    %3496 = vmatprep.subr.mxu0 0.0
    %3497 = vmatpush1.msra.mxu0 0.0
    %3498 = vmatprep.subr.mxu0 0.0
    %3499 = vmatpush1.msra.mxu0 0.0
    %3500 = vmatprep.subr.mxu0 0.0
    %3501 = vmatpush1.msra.mxu0 0.0
    %3502 = vmatprep.subr.mxu0 0.0
    %3503 = vmatpush1.msra.mxu0 0.0
    %3504 = vmatprep.subr.mxu0 0.0
    %3505 = vmatpush1.msra.mxu0 0.0
    %3506 = vmatprep.subr.mxu0 0.0
    %3507 = vmatpush1.msra.mxu0 0.0
    %3508 = vmatprep.subr.mxu0 0.0
    %3509 = vmatpush1.msra.mxu0 0.0
    %3510 = vmatprep.subr.mxu0 0.0
    %3511 = vmatpush1.msra.mxu0 0.0
    %3512 = vmatprep.subr.mxu0 0.0
    %3513 = vmatpush1.msra.mxu0 0.0
    %3514 = vmatprep.subr.mxu0 0.0
    %3515 = vmatpush1.msra.mxu0 0.0
    %3516 = vmatprep.subr.mxu0 0.0
    %3517 = vmatpush1.msra.mxu0 0.0
    %3518 = vmatprep.subr.mxu0 0.0
    %3519 = vmatpush1.msra.mxu0 0.0
    %3520 = vmatprep.subr.mxu0 0.0
    %3521 = vmatpush1.msra.mxu0 0.0
    %3522 = vmatprep.mubr.f32.mxu0 0.0
    %3523 = vmatmul.mubr.f32.gmra.mrb[0].mxu0 %v3386
    %v3524 = vpop.f32.mrb[0].mxu0
    %v3525 = vadd.f32 0.0, %v3524
    %v3526 = vpop.f32.mrb[0].mxu0
    %v3527 = vadd.f32 0.0, %v3526
    %3528 = vdwg.mxu0
    %v3529 = vadd.f32 %v3525, %v416
    %v3530 = vadd.f32 %v3527, %v420
    %v3531 = vmul.f32 %v3529, 0.5
    %v3532 = vmul.f32 %v3530, 0.5
    %v3533 = vtanh.pop %v3531
    %v3534 = vtanh.pop %v3532
    %v3535 = vmul.f32 %v3533, 0.5
    %v3536 = vmul.f32 %v3534, 0.5
    %v3537 = vadd.f32 %v3535, 0.5
    %v3538 = vadd.f32 %v3536, 0.5
    %v3539 = vtanh.pop %v3530
    %v3540 = vmul.f32 %v3537, %v3345
    %3542 = vrot.lane.b32.xlu0 %v3539, 64
    %v3543 = vpop.permute.xlu0 %3542
    %v3545 = vmul.f32 %v3537, %v3543
    %3547 = vrot.lane.b32.xlu0 %v3545, 64
    %v3548 = vpop.permute.xlu0 %3547
    %v3550 = vadd.f32 %v3540, %v3548
    %v3551 = vtanh.pop %v3550
    %3553 = vrot.lane.b32.xlu0 %v3551, 64
    %v3554 = vpop.permute.xlu0 %3553
    %v3556 = vmul.f32 %v3538, %v3554
    %v3557 = vld [vmem:[#allocation2 + $0xf0] sm:$0xff]
    %v3558 = vld [vmem:[#allocation2 + $0xf8] sm:$0xff]
    %v3559 = vadd.f32 %v3557, %v3454
    %v3560 = vadd.f32 %v3558, %v3456
    %v3561 = vmul.f32 %v3559, 0.5
    %v3562 = vmul.f32 %v3560, 0.5
    %v3563 = vtanh.pop %v3561
    %v3564 = vtanh.pop %v3562
    %v3565 = vmul.f32 %v3563, 0.5
    %v3566 = vmul.f32 %v3564, 0.5
    %v3567 = vadd.f32 %v3565, 0.5
    %v3568 = vadd.f32 %v3566, 0.5
    %v3569 = vtanh.pop %v3560
    %v3570 = vmul.f32 %v3567, %v3375
    %3572 = vrot.lane.b32.xlu0 %v3569, 64
    %v3573 = vpop.permute.xlu0 %3572
    %v3575 = vmul.f32 %v3567, %v3573
    %3577 = vrot.lane.b32.xlu0 %v3575, 64
    %v3578 = vpop.permute.xlu0 %3577
    %v3580 = vadd.f32 %v3570, %v3578
    %v3581 = vtanh.pop %v3580
    %3583 = vrot.lane.b32.xlu0 %v3581, 64
    %v3584 = vpop.permute.xlu0 %3583
    %v3586 = vmul.f32 %v3568, %v3584
    %3588 = vrot.lane.b32.xlu0 %v3556, 64
    %v3589 = vpop.permute.xlu0 %3588
    %v3591 = vsel %vm515, %v3586, %v3589
    %3592 = vmatprep.subr.mxu0 %v426
    %3593 = vmatpush1.msra.mxu0 %v425
    %3594 = vmatprep.subr.mxu0 %v430
    %3595 = vmatpush1.msra.mxu0 %v429
    %3596 = vmatprep.subr.mxu0 %v434
    %3597 = vmatpush1.msra.mxu0 %v433
    %3598 = vmatprep.subr.mxu0 %v438
    %3599 = vmatpush1.msra.mxu0 %v437
    %3600 = vmatprep.subr.mxu0 %v442
    %3601 = vmatpush1.msra.mxu0 %v441
    %3602 = vmatprep.subr.mxu0 %v446
    %3603 = vmatpush1.msra.mxu0 %v445
    %3604 = vmatprep.subr.mxu0 %v450
    %3605 = vmatpush1.msra.mxu0 %v449
    %3606 = vmatprep.subr.mxu0 %v454
    %3607 = vmatpush1.msra.mxu0 %v453
    %3608 = vmatprep.subr.mxu0 %v458
    %3609 = vmatpush1.msra.mxu0 %v457
    %3610 = vmatprep.subr.mxu0 %v462
    %3611 = vmatpush1.msra.mxu0 %v461
    %3612 = vmatprep.subr.mxu0 %v466
    %3613 = vmatpush1.msra.mxu0 %v465
    %3614 = vmatprep.subr.mxu0 %v470
    %3615 = vmatpush1.msra.mxu0 %v469
    %3616 = vmatprep.subr.mxu0 %v474
    %3617 = vmatpush1.msra.mxu0 %v473
    %3618 = vmatprep.subr.mxu0 %v478
    %3619 = vmatpush1.msra.mxu0 %v477
    %3620 = vmatprep.subr.mxu0 %v482
    %3621 = vmatpush1.msra.mxu0 %v481
    %3622 = vmatprep.subr.mxu0 %v486
    %3623 = vmatpush1.msra.mxu0 %v485
    %3624 = vmatprep.subr.mxu0 0.0
    %3625 = vmatpush1.msra.mxu0 0.0
    %3626 = vmatprep.subr.mxu0 0.0
    %3627 = vmatpush1.msra.mxu0 0.0
    %3628 = vmatprep.subr.mxu0 0.0
    %3629 = vmatpush1.msra.mxu0 0.0
    %3630 = vmatprep.subr.mxu0 0.0
    %3631 = vmatpush1.msra.mxu0 0.0
    %3632 = vmatprep.subr.mxu0 0.0
    %3633 = vmatpush1.msra.mxu0 0.0
    %3634 = vmatprep.subr.mxu0 0.0
    %3635 = vmatpush1.msra.mxu0 0.0
    %3636 = vmatprep.subr.mxu0 0.0
    %3637 = vmatpush1.msra.mxu0 0.0
    %3638 = vmatprep.subr.mxu0 0.0
    %3639 = vmatpush1.msra.mxu0 0.0
    %3640 = vmatprep.subr.mxu0 0.0
    %3641 = vmatpush1.msra.mxu0 0.0
    %3642 = vmatprep.subr.mxu0 0.0
    %3643 = vmatpush1.msra.mxu0 0.0
    %3644 = vmatprep.subr.mxu0 0.0
    %3645 = vmatpush1.msra.mxu0 0.0
    %3646 = vmatprep.subr.mxu0 0.0
    %3647 = vmatpush1.msra.mxu0 0.0
    %3648 = vmatprep.subr.mxu0 0.0
    %3649 = vmatpush1.msra.mxu0 0.0
    %3650 = vmatprep.subr.mxu0 0.0
    %3651 = vmatpush1.msra.mxu0 0.0
    %3652 = vmatprep.subr.mxu0 0.0
    %3653 = vmatpush1.msra.mxu0 0.0
    %3654 = vmatprep.subr.mxu0 0.0
    %3655 = vmatpush1.msra.mxu0 0.0
    %3656 = vmatprep.mubr.f32.mxu0 0.0
    %3657 = vmatmul.mubr.f32.gmra.mrb[0].mxu0 %v3591
    %v3658 = vpop.f32.mrb[0].mxu0
    %v3659 = vadd.f32 0.0, %v3658
    %v3660 = vpop.f32.mrb[0].mxu0
    %v3661 = vadd.f32 0.0, %v3660
    %3662 = vdwg.mxu0
    %v3663 = vadd.f32 %v3659, %v416
    %v3664 = vadd.f32 %v3661, %v420
    %v3665 = vmul.f32 %v3663, 0.5
    %v3666 = vmul.f32 %v3664, 0.5
    %v3667 = vtanh.pop %v3665
    %v3668 = vtanh.pop %v3666
    %v3669 = vmul.f32 %v3667, 0.5
    %v3670 = vmul.f32 %v3668, 0.5
    %v3671 = vadd.f32 %v3669, 0.5
    %v3672 = vadd.f32 %v3670, 0.5
    %v3673 = vtanh.pop %v3664
    %v3674 = vmul.f32 %v3671, %v3550
    %3676 = vrot.lane.b32.xlu0 %v3673, 64
    %v3677 = vpop.permute.xlu0 %3676
    %v3679 = vmul.f32 %v3671, %v3677
    %3681 = vrot.lane.b32.xlu0 %v3679, 64
    %v3682 = vpop.permute.xlu0 %3681
    %v3684 = vadd.f32 %v3674, %v3682
    %v3685 = vtanh.pop %v3684
    %3687 = vrot.lane.b32.xlu0 %v3685, 64
    %v3688 = vpop.permute.xlu0 %3687
    %v3690 = vmul.f32 %v3672, %v3688
    %v3691 = vld [vmem:[%s5] sm:$0xff]
    %v3692 = vld [vmem:[%s5 + $0x8] sm:$0xff]
    %v3693 = vld [vmem:[%s5 + $0x10] sm:$0xff]
    %v3694 = vld [vmem:[%s5 + $0x18] sm:$0xff]
    %v3695 = vld [vmem:[%s5 + $0x20] sm:$0xff]
    %v3696 = vld [vmem:[%s5 + $0x28] sm:$0xff]
    %v3697 = vld [vmem:[%s5 + $0x30] sm:$0xff]
    %v3698 = vld [vmem:[%s5 + $0x38] sm:$0xff]
    %v3699 = vld [vmem:[%s6] sm:$0x1]
    %v3701 = vlaneseq
    %v3702 = vshrl.u32 %v3701, 7
    %v3703 = vsub.s32 0, %v3702
    %v3704 = vrot.slane %v3699, %v3703
    %v3707 = vsel %vm515, %v3690, 0
    %3709 = vmatprep.subr.mxu0 0.0
    %3710 = vmatpush1.msra.mxu0 %v3691
    %3711 = vmatprep.subr.mxu0 0.0
    %3712 = vmatpush1.msra.mxu0 %v3692
    %3713 = vmatprep.subr.mxu0 0.0
    %3714 = vmatpush1.msra.mxu0 %v3693
    %3715 = vmatprep.subr.mxu0 0.0
    %3716 = vmatpush1.msra.mxu0 %v3694
    %3717 = vmatprep.subr.mxu0 0.0
    %3718 = vmatpush1.msra.mxu0 %v3695
    %3719 = vmatprep.subr.mxu0 0.0
    %3720 = vmatpush1.msra.mxu0 %v3696
    %3721 = vmatprep.subr.mxu0 0.0
    %3722 = vmatpush1.msra.mxu0 %v3697
    %3723 = vmatprep.subr.mxu0 0.0
    %3724 = vmatpush1.msra.mxu0 %v3698
    %3725 = vmatprep.subr.mxu0 0.0
    %3726 = vmatpush1.msra.mxu0 0.0
    %3727 = vmatprep.subr.mxu0 0.0
    %3728 = vmatpush1.msra.mxu0 0.0
    %3729 = vmatprep.subr.mxu0 0.0
    %3730 = vmatpush1.msra.mxu0 0.0
    %3731 = vmatprep.subr.mxu0 0.0
    %3732 = vmatpush1.msra.mxu0 0.0
    %3733 = vmatprep.subr.mxu0 0.0
    %3734 = vmatpush1.msra.mxu0 0.0
    %3735 = vmatprep.subr.mxu0 0.0
    %3736 = vmatpush1.msra.mxu0 0.0
    %3737 = vmatprep.subr.mxu0 0.0
    %3738 = vmatpush1.msra.mxu0 0.0
    %3739 = vmatprep.subr.mxu0 0.0
    %3740 = vmatpush1.msra.mxu0 0.0
    %3741 = vmatprep.subr.mxu0 0.0
    %3742 = vmatpush1.msra.mxu0 0.0
    %3743 = vmatprep.subr.mxu0 0.0
    %3744 = vmatpush1.msra.mxu0 0.0
    %3745 = vmatprep.subr.mxu0 0.0
    %3746 = vmatpush1.msra.mxu0 0.0
    %3747 = vmatprep.subr.mxu0 0.0
    %3748 = vmatpush1.msra.mxu0 0.0
    %3749 = vmatprep.subr.mxu0 0.0
    %3750 = vmatpush1.msra.mxu0 0.0
    %3751 = vmatprep.subr.mxu0 0.0
    %3752 = vmatpush1.msra.mxu0 0.0
    %3753 = vmatprep.subr.mxu0 0.0
    %3754 = vmatpush1.msra.mxu0 0.0
    %3755 = vmatprep.subr.mxu0 0.0
    %3756 = vmatpush1.msra.mxu0 0.0
    %3757 = vmatprep.subr.mxu0 0.0
    %3758 = vmatpush1.msra.mxu0 0.0
    %3759 = vmatprep.subr.mxu0 0.0
    %3760 = vmatpush1.msra.mxu0 0.0
    %3761 = vmatprep.subr.mxu0 0.0
    %3762 = vmatpush1.msra.mxu0 0.0
    %3763 = vmatprep.subr.mxu0 0.0
    %3764 = vmatpush1.msra.mxu0 0.0
    %3765 = vmatprep.subr.mxu0 0.0
    %3766 = vmatpush1.msra.mxu0 0.0
    %3767 = vmatprep.subr.mxu0 0.0
    %3768 = vmatpush1.msra.mxu0 0.0
    %3769 = vmatprep.subr.mxu0 0.0
    %3770 = vmatpush1.msra.mxu0 0.0
    %3771 = vmatprep.subr.mxu0 0.0
    %3772 = vmatpush1.msra.mxu0 0.0
    %3773 = vmatprep.mubr.f32.mxu0 0.0
    %3774 = vmatmul.mubr.f32.gmra.mrb[0].mxu0 %v3707
    %v3775 = vpop.f32.mrb[0].mxu0
    %v3776 = vadd.f32 %v3704, %v3775
    %v3777 = vpop.f32.mrb[0].mxu0
    %3778 = vdwg.mxu0
    %3779 = vst [vmem:[#allocation6] sm:$0xff] %v3776
    // Predicated region
    $region34: #{tpu_custom_call.1} parent=1 // pred_check
      _
    $region35: #{tpu_custom_call.1} parent=1 // pred_check_branch
      %3781 = sbr.rel (0) target = $region37
    $region36: #{tpu_custom_call.1} parent=1 // pred_region
      %s3783 = ssub.s32 128, 128
      %3784 = vsyncadd [#allocation5], %s3783
      %s3786 = sshll.u32 [#allocation6], 4
      %s3787 = int_to_ptr.vmem [resolvable:$true] %s3786
      %3789 = dma.vmem_to_hbm [thread:$0]  %s3787, 128, %s7, [#allocation5]
    $region37: #{tpu_custom_call.1} parent=1 // pred_fallthru
      _
    // Predicated region
    $region38: #{tpu_custom_call.1} parent=1 // pred_check
      _
    $region39: #{tpu_custom_call.1} parent=1 // pred_check_branch
      %3791 = sbr.rel (0) target = $region41
    $region40: #{tpu_custom_call.1} parent=1 // pred_region
      %3792 = dma.done [#allocation5], 128
    $region41: #{tpu_custom_call.1} parent=1 // pred_fallthru
      _
    %3793 = vsyncpa [#allocation4], 1
    %3794 = vsyncpa [#allocation5], 1

</llo_original>
